<compile_context>
chip_gen: v7x
topology: tpu7x:2x2x1
jax: 0.10.0
libtpu: 0.0.40
codegen_flags: <defaults>
</compile_context>

<pallas_src>
import jax
import jax.numpy as jnp
import numpy as np
from jax.experimental import pallas as pl
from jax.experimental.pallas import tpu as pltpu


def _make_kernel(s_chunk, b_pad, hidden, alpha, coeff, num_steps):
    """Builds the per-chunk Pallas kernel for fixed static shapes / constants."""
    H = hidden
    H2 = H * H
    assert num_steps >= 1

    def kernel(x_ref, h0_ref, eye_ref,
               wi_ref, bi_ref,            # input2h (pre-transposed): (I,H),(1,H)
               txrep_ref,                 # [transform[:, :H].T | rep_mat]: (H, 2*H2)
               twwh_ref,                  # [transform[:, H:].T | W_h2h.T]: (H, H2+H)
               bh_ref,                    # (1, H)
               sel_ref,                   # (H2, H) segmented-sum (0/1) matrix
               wf_ref, bf_ref,            # fc (pre-transposed): (H, O), (1, O)
               out_ref, rnn_ref,          # per-chunk outputs
               h_carry, thid_carry):      # VMEM state carried across chunks
        c = pl.program_id(0)

        @pl.when(c == 0)
        def _init():
            h_carry[...] = h0_ref[...]
            thid_carry[...] = jnp.broadcast_to(eye_ref[...], (b_pad, H2))

        # ---- hoist all weight / bias reads once ----
        wi = wi_ref[...]
        bi = bi_ref[...]
        txrep = txrep_ref[...]
        twwh = twwh_ref[...]
        bh = bh_ref[...]
        sel = sel_ref[...]
        wf = wf_ref[...]
        bf = bf_ref[...]

        # ---- x-only work for this time chunk, off the serial recurrence ----
        x_c = x_ref[...]                                                  # (sc*bp, I)
        ip_all = jnp.dot(x_c, wi, preferred_element_type=jnp.float32) + bi
        # one fused matmul: x-part of the transform matrix AND the
        # lane-replication of input_proj (rep[b, i*H+j] == ip[b, j]).
        txrep_all = jnp.dot(ip_all, txrep, preferred_element_type=jnp.float32)
        tmx_all = txrep_all[:, :H2]                                       # (sc*bp, H2)
        rep_all = txrep_all[:, H2:]                                       # (sc*bp, H2)

        h = h_carry[...]                                                  # (bp, H)
        thid = thid_carry[...]                                            # (bp, H2)

        for t in range(s_chunk):                     # static, chunk-bounded unroll
            r0 = t * b_pad                           # multiple of 8 -> aligned slices
            tmx_t = tmx_all[r0:r0 + b_pad, :]
            rep_t = rep_all[r0:r0 + b_pad, :]
            for _ in range(num_steps):               # static inner loop
                # single fused h-matmul per step: h @ [transform_h | W_h2h]
                hcat = jnp.dot(h, twwh, preferred_element_type=jnp.float32)
                tm = tmx_t + hcat[:, :H2]
                thid = thid * (1.0 - coeff) + tm * coeff
                # bmm(transform_hidden, input_proj) as an MXU segmented sum:
                # ti[b, i] = sum_j thid[b, i*H+j] * ip[b, j]
                ti = jnp.dot(thid * rep_t, sel,
                             preferred_element_type=jnp.float32)          # (bp, H)
                hh = hcat[:, H2:] + bh                                     # h2h(h)
                h = h * (1.0 - alpha) + jnp.maximum(ti + hh, 0.0) * alpha
            # per-step write straight to the output ref (no list / concat)
            rnn_ref[r0:r0 + b_pad, :] = h

        h_carry[...] = h
        thid_carry[...] = thid

        # output Linear over the whole chunk in one matmul
        out_ref[...] = jnp.dot(rnn_ref[...], wf,
                               preferred_element_type=jnp.float32) + bf

    return kernel


def transform_rnn_net2_forward(x, h0, params, *, alpha, coeff=None,
                               num_steps=1, s_chunk=4):
    """Pallas forward for TransformRNNNet2. Returns (out, rnn_output)."""
    if coeff is None:            # transform_increment_coeff defaults to alpha
        coeff = alpha
    S, B, I = x.shape
    H = h0.shape[-1]
    O = params["wf_t"].shape[-1]
    H2 = H * H

    # pad batch to the f32 sublane tile (8) and seq to a multiple of the chunk
    b_pad = ((B + 7) // 8) * 8
    s_chunk = max(1, min(int(s_chunk), S))
    S_pad = ((S + s_chunk - 1) // s_chunk) * s_chunk
    n_chunks = S_pad // s_chunk
    rows = s_chunk * b_pad

    x_p = jnp.zeros((S_pad, b_pad, I), jnp.float32).at[:S, :B, :].set(x)
    h0_p = jnp.zeros((b_pad, H), jnp.float32).at[:B, :].set(h0)
    x_flat = x_p.reshape(S_pad * b_pad, I)

    eye_flat = jnp.eye(H, dtype=jnp.float32).reshape(1, H2)
    # rep_mat[j, k] = 1 iff (k % H) == j   -> ip @ rep_mat replicates ip along lanes
    rep_mat = (jnp.arange(H)[:, None] ==
               (jnp.arange(H2)[None, :] % H)).astype(jnp.float32)           # (H, H2)
    # sel[k, i]    = 1 iff (k // H) == i   -> segmented sum over each H-block
    sel = ((jnp.arange(H2)[:, None] // H) ==
           jnp.arange(H)[None, :]).astype(jnp.float32)                      # (H2, H)
    # fused RHS matrices (built once in the wrapper)
    txrep = jnp.concatenate([params["tx_t"], rep_mat], axis=1)              # (H, 2*H2)
    twwh = jnp.concatenate([params["th_t"], params["wh_t"]], axis=1)        # (H, H2+H)

    kernel = _make_kernel(s_chunk, b_pad, H, float(alpha), float(coeff),
                          int(num_steps))

    def full(shape):
        return pl.BlockSpec(shape, lambda c, _n=len(shape): (0,) * _n)

    grid_spec = pltpu.PrefetchScalarGridSpec(
        num_scalar_prefetch=0,
        grid=(n_chunks,),
        in_specs=[
            pl.BlockSpec((rows, I), lambda c: (c, 0)),     # x (time-chunked)
            full((b_pad, H)),                              # h0
            full((1, H2)),                                 # flat identity
            full((I, H)), full((1, H)),                    # input2h
            full((H, 2 * H2)),                             # [transform_x.T | rep]
            full((H, H2 + H)),                             # [transform_h.T | W_h2h.T]
            full((1, H)),                                  # b_h2h
            full((H2, H)),                                 # sel
            full((H, O)), full((1, O)),                    # fc
        ],
        out_specs=(
            pl.BlockSpec((rows, O), lambda c: (c, 0)),
            pl.BlockSpec((rows, H), lambda c: (c, 0)),
        ),
        scratch_shapes=[
            pltpu.VMEM((b_pad, H), jnp.float32),           # h carry
            pltpu.VMEM((b_pad, H2), jnp.float32),          # transform_hidden carry
        ],
    )
    out_shapes = (
        jax.ShapeDtypeStruct((S_pad * b_pad, O), jnp.float32),
        jax.ShapeDtypeStruct((S_pad * b_pad, H), jnp.float32),
    )
    fn = pl.pallas_call(
        kernel,
        grid_spec=grid_spec,
        out_shape=out_shapes,
        compiler_params=pltpu.CompilerParams(
            dimension_semantics=("arbitrary",)),
    )
    out_flat, rnn_flat = fn(
        x_flat, h0_p, eye_flat,
        params["wi_t"], params["bi"],
        txrep, twwh, params["bh"],
        sel, params["wf_t"], params["bf"])
    out = out_flat.reshape(S_pad, b_pad, O)[:S, :B]
    rnn = rnn_flat.reshape(S_pad, b_pad, H)[:S, :B]
    return out, rnn


def init_params(key, I, H, O, scale=0.1, transform_scale=0.05):
    ks = jax.random.split(key, 7)
    w_i2h = jax.random.normal(ks[0], (H, I), jnp.float32) * scale
    b_i2h = jax.random.normal(ks[1], (H,), jnp.float32) * scale
    w_h2h = jax.random.normal(ks[2], (H, H), jnp.float32) * scale
    b_h2h = jax.random.normal(ks[3], (H,), jnp.float32) * scale
    transform = jax.random.normal(ks[4], (H * H, 2 * H), jnp.float32) * transform_scale
    w_fc = jax.random.normal(ks[5], (O, H), jnp.float32) * scale
    b_fc = jax.random.normal(ks[6], (O,), jnp.float32) * scale
    return dict(
        wi_t=w_i2h.T, bi=b_i2h[None, :],
        wh_t=w_h2h.T, bh=b_h2h[None, :],
        tx_t=transform[:, :H].T, th_t=transform[:, H:].T,
        wf_t=w_fc.T, bf=b_fc[None, :],
        transform=transform,   # kept only for the numpy reference
    )


def reference_forward_np(x, h0, params, *, alpha, coeff=None, num_steps=1):
    """Pure-numpy f32 reference mirroring the PyTorch forward exactly."""
    if coeff is None:
        coeff = alpha
    x = np.asarray(x)
    h = np.asarray(h0).copy()
    wi_t = np.asarray(params["wi_t"]); bi = np.asarray(params["bi"])
    wh_t = np.asarray(params["wh_t"]); bh = np.asarray(params["bh"])
    wf_t = np.asarray(params["wf_t"]); bf = np.asarray(params["bf"])
    transform = np.asarray(params["transform"])
    S, B, _ = x.shape
    H = h.shape[-1]
    thid = np.broadcast_to(np.eye(H, dtype=np.float32), (B, H, H)).copy()
    outs = []
    for t in range(S):
        xt = x[t]
        for _ in range(num_steps):
            ip = xt @ wi_t + bi                                   # input2h
            combined = np.concatenate([ip, h], axis=1)            # (B, 2H)
            tm = (combined @ transform.T).reshape(B, H, H)
            thid = thid * (1.0 - coeff) + tm * coeff
            ti = np.einsum("bij,bj->bi", thid, ip)
            hh = h @ wh_t + bh
            h_new = np.maximum(ti + hh, 0.0)
            h = h * (1.0 - alpha) + h_new * alpha
        outs.append(h.copy())
    rnn_out = np.stack(outs, axis=0)                              # (S, B, H)
    out = rnn_out @ wf_t + bf
    return out, rnn_out


if __name__ == "__main__":
    # Small shapes: seq=8, batch=4, input=16, hidden=32, output=8
    S, B, I, H, O = 8, 4, 16, 32, 8
    alpha = 0.5   # dt=50ms, tau=100ms  (transform_increment_coeff == alpha)
    key = jax.random.PRNGKey(0)
    kx, kp = jax.random.split(key)
    x = jax.random.normal(kx, (S, B, I), jnp.float32)
    h0 = jnp.zeros((B, H), jnp.float32)
    params = init_params(kp, I, H, O)

    out, rnn_out = transform_rnn_net2_forward(x, h0, params, alpha=alpha,
                                              num_steps=1, s_chunk=4)
    jax.block_until_ready((out, rnn_out))

    ref_out, ref_rnn = reference_forward_np(x, h0, params, alpha=alpha,
                                            num_steps=1)
    np.testing.assert_allclose(np.asarray(out), ref_out, rtol=1e-3, atol=1e-3)
    np.testing.assert_allclose(np.asarray(rnn_out), ref_rnn, rtol=1e-3, atol=1e-3)

    print("KERNEL_OK")
</pallas_src>

<mosaic_0001>
module attributes {stable_mosaic.version = 11 : i64} {
  func.func @kernel(%arg0: i32, %arg1: memref<32x16xf32, #tpu.memory_space<vmem>>, %arg2: memref<8x32xf32, #tpu.memory_space<vmem>>, %arg3: memref<1x1024xf32, #tpu.memory_space<vmem>>, %arg4: memref<16x32xf32, #tpu.memory_space<vmem>>, %arg5: memref<1x32xf32, #tpu.memory_space<vmem>>, %arg6: memref<32x2048xf32, #tpu.memory_space<vmem>>, %arg7: memref<32x1056xf32, #tpu.memory_space<vmem>>, %arg8: memref<1x32xf32, #tpu.memory_space<vmem>>, %arg9: memref<1024x32xf32, #tpu.memory_space<vmem>>, %arg10: memref<32x8xf32, #tpu.memory_space<vmem>>, %arg11: memref<1x8xf32, #tpu.memory_space<vmem>>, %arg12: memref<32x8xf32, #tpu.memory_space<vmem>>, %arg13: memref<32x32xf32, #tpu.memory_space<vmem>>, %arg14: memref<8x32xf32, #tpu.memory_space<vmem>>, %arg15: memref<8x1024xf32, #tpu.memory_space<vmem>>) attributes {dimension_semantics = [#tpu.dimension_semantics<arbitrary>], iteration_bounds = array<i64: 2>, scalar_prefetch = 0 : i64, scratch_operands = 2 : i64, tpu.core_type = #tpu.core_type<tc>, window_params = [{transform_indices = @transform_0, window_bounds = array<i64: 32, 16>}, {pipeline_mode = #tpu.pipeline_mode<synchronous>, transform_indices = @transform_1, window_bounds = array<i64: 8, 32>}, {pipeline_mode = #tpu.pipeline_mode<synchronous>, transform_indices = @transform_2, window_bounds = array<i64: 1, 1024>}, {pipeline_mode = #tpu.pipeline_mode<synchronous>, transform_indices = @transform_3, window_bounds = array<i64: 16, 32>}, {pipeline_mode = #tpu.pipeline_mode<synchronous>, transform_indices = @transform_4, window_bounds = array<i64: 1, 32>}, {pipeline_mode = #tpu.pipeline_mode<synchronous>, transform_indices = @transform_5, window_bounds = array<i64: 32, 2048>}, {pipeline_mode = #tpu.pipeline_mode<synchronous>, transform_indices = @transform_6, window_bounds = array<i64: 32, 1056>}, {pipeline_mode = #tpu.pipeline_mode<synchronous>, transform_indices = @transform_7, window_bounds = array<i64: 1, 32>}, {pipeline_mode = #tpu.pipeline_mode<synchronous>, transform_indices = @transform_8, window_bounds = array<i64: 1024, 32>}, {pipeline_mode = #tpu.pipeline_mode<synchronous>, transform_indices = @transform_9, window_bounds = array<i64: 32, 8>}, {pipeline_mode = #tpu.pipeline_mode<synchronous>, transform_indices = @transform_10, window_bounds = array<i64: 1, 8>}, {transform_indices = @transform_11, window_bounds = array<i64: 32, 8>}, {transform_indices = @transform_12, window_bounds = array<i64: 32, 32>}]} {
    %c0_i32 = arith.constant 0 : i32
    %0 = arith.cmpi eq, %arg0, %c0_i32 : i32
    %1 = arith.extui %0 : i1 to i32
    %c0_i32_0 = arith.constant 0 : i32
    %2 = arith.cmpi ne, %1, %c0_i32_0 : i32
    scf.if %2 {
      %c0_65 = arith.constant 0 : index
      %c0_66 = arith.constant 0 : index
      %123 = vector.load %arg2[%c0_65, %c0_66] : memref<8x32xf32, #tpu.memory_space<vmem>>, vector<8x32xf32>
      %c0_67 = arith.constant 0 : index
      %c0_68 = arith.constant 0 : index
      %124 = vector.load %arg14[%c0_67, %c0_68] : memref<8x32xf32, #tpu.memory_space<vmem>>, vector<8x32xf32>
      tpu.vector_store %arg14[%c0_67, %c0_68], %123 {strides = array<i32>} : memref<8x32xf32, #tpu.memory_space<vmem>>, vector<8x32xf32>,
      %c0_69 = arith.constant 0 : index
      %c0_70 = arith.constant 0 : index
      %125 = vector.load %arg3[%c0_69, %c0_70] : memref<1x1024xf32, #tpu.memory_space<vmem>>, vector<1x1024xf32>
      %126 = vector.shape_cast %125 : vector<1x1024xf32> to vector<1x1024xf32>
      %127 = vector.broadcast %126 : vector<1x1024xf32> to vector<8x1024xf32>
      %c0_71 = arith.constant 0 : index
      %c0_72 = arith.constant 0 : index
      %128 = vector.load %arg15[%c0_71, %c0_72] : memref<8x1024xf32, #tpu.memory_space<vmem>>, vector<8x1024xf32>
      tpu.vector_store %arg15[%c0_71, %c0_72], %127 {strides = array<i32>} : memref<8x1024xf32, #tpu.memory_space<vmem>>, vector<8x1024xf32>,
    } else {
    }
    %c0 = arith.constant 0 : index
    %c0_1 = arith.constant 0 : index
    %3 = vector.load %arg4[%c0, %c0_1] : memref<16x32xf32, #tpu.memory_space<vmem>>, vector<16x32xf32>
    %c0_2 = arith.constant 0 : index
    %c0_3 = arith.constant 0 : index
    %4 = vector.load %arg5[%c0_2, %c0_3] : memref<1x32xf32, #tpu.memory_space<vmem>>, vector<1x32xf32>
    %c0_4 = arith.constant 0 : index
    %c0_5 = arith.constant 0 : index
    %5 = vector.load %arg6[%c0_4, %c0_5] : memref<32x2048xf32, #tpu.memory_space<vmem>>, vector<32x2048xf32>
    %c0_6 = arith.constant 0 : index
    %c0_7 = arith.constant 0 : index
    %6 = vector.load %arg7[%c0_6, %c0_7] : memref<32x1056xf32, #tpu.memory_space<vmem>>, vector<32x1056xf32>
    %c0_8 = arith.constant 0 : index
    %c0_9 = arith.constant 0 : index
    %7 = vector.load %arg8[%c0_8, %c0_9] : memref<1x32xf32, #tpu.memory_space<vmem>>, vector<1x32xf32>
    %c0_10 = arith.constant 0 : index
    %c0_11 = arith.constant 0 : index
    %8 = vector.load %arg9[%c0_10, %c0_11] : memref<1024x32xf32, #tpu.memory_space<vmem>>, vector<1024x32xf32>
    %c0_12 = arith.constant 0 : index
    %c0_13 = arith.constant 0 : index
    %9 = vector.load %arg10[%c0_12, %c0_13] : memref<32x8xf32, #tpu.memory_space<vmem>>, vector<32x8xf32>
    %c0_14 = arith.constant 0 : index
    %c0_15 = arith.constant 0 : index
    %10 = vector.load %arg11[%c0_14, %c0_15] : memref<1x8xf32, #tpu.memory_space<vmem>>, vector<1x8xf32>
    %c0_16 = arith.constant 0 : index
    %c0_17 = arith.constant 0 : index
    %11 = vector.load %arg1[%c0_16, %c0_17] : memref<32x16xf32, #tpu.memory_space<vmem>>, vector<32x16xf32>
    %cst = arith.constant dense<0.000000e+00> : vector<32x32xf32>
    %12 = tpu.matmul %11, %3, %cst {dimension_numbers = #tpu.dot_dimension_numbers<[1], [0], [0], [1], [0, 0, 1, 1], [], []>} : vector<32x16xf32>, vector<16x32xf32>, vector<32x32xf32> -> vector<32x32xf32>
    %13 = vector.broadcast %4 : vector<1x32xf32> to vector<32x32xf32>
    %14 = arith.addf %12, %13 : vector<32x32xf32>
    %cst_18 = arith.constant dense<0.000000e+00> : vector<32x2048xf32>
    %15 = tpu.matmul %14, %5, %cst_18 {dimension_numbers = #tpu.dot_dimension_numbers<[1], [0], [0], [1], [0, 0, 1, 1], [], []>} : vector<32x32xf32>, vector<32x2048xf32>, vector<32x2048xf32> -> vector<32x2048xf32>
    %16 = vector.extract_strided_slice %15 {offsets = [0, 0], sizes = [32, 1024], strides = [1, 1]} : vector<32x2048xf32> to vector<32x1024xf32>
    %17 = vector.extract_strided_slice %15 {offsets = [0, 1024], sizes = [32, 1024], strides = [1, 1]} : vector<32x2048xf32> to vector<32x1024xf32>
    %c0_19 = arith.constant 0 : index
    %c0_20 = arith.constant 0 : index
    %18 = vector.load %arg14[%c0_19, %c0_20] : memref<8x32xf32, #tpu.memory_space<vmem>>, vector<8x32xf32>
    %c0_21 = arith.constant 0 : index
    %c0_22 = arith.constant 0 : index
    %19 = vector.load %arg15[%c0_21, %c0_22] : memref<8x1024xf32, #tpu.memory_space<vmem>>, vector<8x1024xf32>
    %20 = vector.extract_strided_slice %16 {offsets = [0, 0], sizes = [8, 1024], strides = [1, 1]} : vector<32x1024xf32> to vector<8x1024xf32>
    %21 = vector.extract_strided_slice %17 {offsets = [0, 0], sizes = [8, 1024], strides = [1, 1]} : vector<32x1024xf32> to vector<8x1024xf32>
    %cst_23 = arith.constant dense<0.000000e+00> : vector<8x1056xf32>
    %22 = tpu.matmul %18, %6, %cst_23 {dimension_numbers = #tpu.dot_dimension_numbers<[1], [0], [0], [1], [0, 0, 1, 1], [], []>} : vector<8x32xf32>, vector<32x1056xf32>, vector<8x1056xf32> -> vector<8x1056xf32>
    %23 = vector.extract_strided_slice %22 {offsets = [0, 0], sizes = [8, 1024], strides = [1, 1]} : vector<8x1056xf32> to vector<8x1024xf32>
    %24 = arith.addf %20, %23 : vector<8x1024xf32>
    %cst_24 = arith.constant 5.000000e-01 : f32
    %25 = vector.broadcast %cst_24 : f32 to vector<8x1024xf32>
    %26 = arith.mulf %19, %25 : vector<8x1024xf32>
    %cst_25 = arith.constant 5.000000e-01 : f32
    %27 = vector.broadcast %cst_25 : f32 to vector<8x1024xf32>
    %28 = arith.mulf %24, %27 : vector<8x1024xf32>
    %29 = arith.addf %26, %28 : vector<8x1024xf32>
    %30 = arith.mulf %29, %21 : vector<8x1024xf32>
    %cst_26 = arith.constant dense<0.000000e+00> : vector<8x32xf32>
    %31 = tpu.matmul %30, %8, %cst_26 {dimension_numbers = #tpu.dot_dimension_numbers<[1], [0], [0], [1], [0, 0, 1, 1], [], []>} : vector<8x1024xf32>, vector<1024x32xf32>, vector<8x32xf32> -> vector<8x32xf32>
    %32 = vector.extract_strided_slice %22 {offsets = [0, 1024], sizes = [8, 32], strides = [1, 1]} : vector<8x1056xf32> to vector<8x32xf32>
    %33 = vector.broadcast %7 : vector<1x32xf32> to vector<8x32xf32>
    %34 = arith.addf %32, %33 : vector<8x32xf32>
    %cst_27 = arith.constant 5.000000e-01 : f32
    %35 = vector.broadcast %cst_27 : f32 to vector<8x32xf32>
    %36 = arith.mulf %18, %35 : vector<8x32xf32>
    %37 = arith.addf %31, %34 : vector<8x32xf32>
    %cst_28 = arith.constant 0.000000e+00 : f32
    %38 = vector.broadcast %cst_28 : f32 to vector<8x32xf32>
    %39 = arith.maximumf %37, %38 : vector<8x32xf32>
    %cst_29 = arith.constant 5.000000e-01 : f32
    %40 = vector.broadcast %cst_29 : f32 to vector<8x32xf32>
    %41 = arith.mulf %39, %40 : vector<8x32xf32>
    %42 = arith.addf %36, %41 : vector<8x32xf32>
    %c0_30 = arith.constant 0 : index
    %c0_31 = arith.constant 0 : index
    %43 = vector.load %arg13[%c0_30, %c0_31] : memref<32x32xf32, #tpu.memory_space<vmem>>, vector<8x32xf32>
    tpu.vector_store %arg13[%c0_30, %c0_31], %42 {strides = array<i32>} : memref<32x32xf32, #tpu.memory_space<vmem>>, vector<8x32xf32>,
    %44 = vector.extract_strided_slice %16 {offsets = [8, 0], sizes = [8, 1024], strides = [1, 1]} : vector<32x1024xf32> to vector<8x1024xf32>
    %45 = vector.extract_strided_slice %17 {offsets = [8, 0], sizes = [8, 1024], strides = [1, 1]} : vector<32x1024xf32> to vector<8x1024xf32>
    %cst_32 = arith.constant dense<0.000000e+00> : vector<8x1056xf32>
    %46 = tpu.matmul %42, %6, %cst_32 {dimension_numbers = #tpu.dot_dimension_numbers<[1], [0], [0], [1], [0, 0, 1, 1], [], []>} : vector<8x32xf32>, vector<32x1056xf32>, vector<8x1056xf32> -> vector<8x1056xf32>
    %47 = vector.extract_strided_slice %46 {offsets = [0, 0], sizes = [8, 1024], strides = [1, 1]} : vector<8x1056xf32> to vector<8x1024xf32>
    %48 = arith.addf %44, %47 : vector<8x1024xf32>
    %cst_33 = arith.constant 5.000000e-01 : f32
    %49 = vector.broadcast %cst_33 : f32 to vector<8x1024xf32>
    %50 = arith.mulf %29, %49 : vector<8x1024xf32>
    %cst_34 = arith.constant 5.000000e-01 : f32
    %51 = vector.broadcast %cst_34 : f32 to vector<8x1024xf32>
    %52 = arith.mulf %48, %51 : vector<8x1024xf32>
    %53 = arith.addf %50, %52 : vector<8x1024xf32>
    %54 = arith.mulf %53, %45 : vector<8x1024xf32>
    %cst_35 = arith.constant dense<0.000000e+00> : vector<8x32xf32>
    %55 = tpu.matmul %54, %8, %cst_35 {dimension_numbers = #tpu.dot_dimension_numbers<[1], [0], [0], [1], [0, 0, 1, 1], [], []>} : vector<8x1024xf32>, vector<1024x32xf32>, vector<8x32xf32> -> vector<8x32xf32>
    %56 = vector.extract_strided_slice %46 {offsets = [0, 1024], sizes = [8, 32], strides = [1, 1]} : vector<8x1056xf32> to vector<8x32xf32>
    %57 = vector.broadcast %7 : vector<1x32xf32> to vector<8x32xf32>
    %58 = arith.addf %56, %57 : vector<8x32xf32>
    %cst_36 = arith.constant 5.000000e-01 : f32
    %59 = vector.broadcast %cst_36 : f32 to vector<8x32xf32>
    %60 = arith.mulf %42, %59 : vector<8x32xf32>
    %61 = arith.addf %55, %58 : vector<8x32xf32>
    %cst_37 = arith.constant 0.000000e+00 : f32
    %62 = vector.broadcast %cst_37 : f32 to vector<8x32xf32>
    %63 = arith.maximumf %61, %62 : vector<8x32xf32>
    %cst_38 = arith.constant 5.000000e-01 : f32
    %64 = vector.broadcast %cst_38 : f32 to vector<8x32xf32>
    %65 = arith.mulf %63, %64 : vector<8x32xf32>
    %66 = arith.addf %60, %65 : vector<8x32xf32>
    %c8 = arith.constant 8 : index
    %c0_39 = arith.constant 0 : index
    %67 = vector.load %arg13[%c8, %c0_39] : memref<32x32xf32, #tpu.memory_space<vmem>>, vector<8x32xf32>
    tpu.vector_store %arg13[%c8, %c0_39], %66 {strides = array<i32>} : memref<32x32xf32, #tpu.memory_space<vmem>>, vector<8x32xf32>,
    %68 = vector.extract_strided_slice %16 {offsets = [16, 0], sizes = [8, 1024], strides = [1, 1]} : vector<32x1024xf32> to vector<8x1024xf32>
    %69 = vector.extract_strided_slice %17 {offsets = [16, 0], sizes = [8, 1024], strides = [1, 1]} : vector<32x1024xf32> to vector<8x1024xf32>
    %cst_40 = arith.constant dense<0.000000e+00> : vector<8x1056xf32>
    %70 = tpu.matmul %66, %6, %cst_40 {dimension_numbers = #tpu.dot_dimension_numbers<[1], [0], [0], [1], [0, 0, 1, 1], [], []>} : vector<8x32xf32>, vector<32x1056xf32>, vector<8x1056xf32> -> vector<8x1056xf32>
    %71 = vector.extract_strided_slice %70 {offsets = [0, 0], sizes = [8, 1024], strides = [1, 1]} : vector<8x1056xf32> to vector<8x1024xf32>
    %72 = arith.addf %68, %71 : vector<8x1024xf32>
    %cst_41 = arith.constant 5.000000e-01 : f32
    %73 = vector.broadcast %cst_41 : f32 to vector<8x1024xf32>
    %74 = arith.mulf %53, %73 : vector<8x1024xf32>
    %cst_42 = arith.constant 5.000000e-01 : f32
    %75 = vector.broadcast %cst_42 : f32 to vector<8x1024xf32>
    %76 = arith.mulf %72, %75 : vector<8x1024xf32>
    %77 = arith.addf %74, %76 : vector<8x1024xf32>
    %78 = arith.mulf %77, %69 : vector<8x1024xf32>
    %cst_43 = arith.constant dense<0.000000e+00> : vector<8x32xf32>
    %79 = tpu.matmul %78, %8, %cst_43 {dimension_numbers = #tpu.dot_dimension_numbers<[1], [0], [0], [1], [0, 0, 1, 1], [], []>} : vector<8x1024xf32>, vector<1024x32xf32>, vector<8x32xf32> -> vector<8x32xf32>
    %80 = vector.extract_strided_slice %70 {offsets = [0, 1024], sizes = [8, 32], strides = [1, 1]} : vector<8x1056xf32> to vector<8x32xf32>
    %81 = vector.broadcast %7 : vector<1x32xf32> to vector<8x32xf32>
    %82 = arith.addf %80, %81 : vector<8x32xf32>
    %cst_44 = arith.constant 5.000000e-01 : f32
    %83 = vector.broadcast %cst_44 : f32 to vector<8x32xf32>
    %84 = arith.mulf %66, %83 : vector<8x32xf32>
    %85 = arith.addf %79, %82 : vector<8x32xf32>
    %cst_45 = arith.constant 0.000000e+00 : f32
    %86 = vector.broadcast %cst_45 : f32 to vector<8x32xf32>
    %87 = arith.maximumf %85, %86 : vector<8x32xf32>
    %cst_46 = arith.constant 5.000000e-01 : f32
    %88 = vector.broadcast %cst_46 : f32 to vector<8x32xf32>
    %89 = arith.mulf %87, %88 : vector<8x32xf32>
    %90 = arith.addf %84, %89 : vector<8x32xf32>
    %c16 = arith.constant 16 : index
    %c0_47 = arith.constant 0 : index
    %91 = vector.load %arg13[%c16, %c0_47] : memref<32x32xf32, #tpu.memory_space<vmem>>, vector<8x32xf32>
    tpu.vector_store %arg13[%c16, %c0_47], %90 {strides = array<i32>} : memref<32x32xf32, #tpu.memory_space<vmem>>, vector<8x32xf32>,
    %92 = vector.extract_strided_slice %16 {offsets = [24, 0], sizes = [8, 1024], strides = [1, 1]} : vector<32x1024xf32> to vector<8x1024xf32>
    %93 = vector.extract_strided_slice %17 {offsets = [24, 0], sizes = [8, 1024], strides = [1, 1]} : vector<32x1024xf32> to vector<8x1024xf32>
    %cst_48 = arith.constant dense<0.000000e+00> : vector<8x1056xf32>
    %94 = tpu.matmul %90, %6, %cst_48 {dimension_numbers = #tpu.dot_dimension_numbers<[1], [0], [0], [1], [0, 0, 1, 1], [], []>} : vector<8x32xf32>, vector<32x1056xf32>, vector<8x1056xf32> -> vector<8x1056xf32>
    %95 = vector.extract_strided_slice %94 {offsets = [0, 0], sizes = [8, 1024], strides = [1, 1]} : vector<8x1056xf32> to vector<8x1024xf32>
    %96 = arith.addf %92, %95 : vector<8x1024xf32>
    %cst_49 = arith.constant 5.000000e-01 : f32
    %97 = vector.broadcast %cst_49 : f32 to vector<8x1024xf32>
    %98 = arith.mulf %77, %97 : vector<8x1024xf32>
    %cst_50 = arith.constant 5.000000e-01 : f32
    %99 = vector.broadcast %cst_50 : f32 to vector<8x1024xf32>
    %100 = arith.mulf %96, %99 : vector<8x1024xf32>
    %101 = arith.addf %98, %100 : vector<8x1024xf32>
    %102 = arith.mulf %101, %93 : vector<8x1024xf32>
    %cst_51 = arith.constant dense<0.000000e+00> : vector<8x32xf32>
    %103 = tpu.matmul %102, %8, %cst_51 {dimension_numbers = #tpu.dot_dimension_numbers<[1], [0], [0], [1], [0, 0, 1, 1], [], []>} : vector<8x1024xf32>, vector<1024x32xf32>, vector<8x32xf32> -> vector<8x32xf32>
    %104 = vector.extract_strided_slice %94 {offsets = [0, 1024], sizes = [8, 32], strides = [1, 1]} : vector<8x1056xf32> to vector<8x32xf32>
    %105 = vector.broadcast %7 : vector<1x32xf32> to vector<8x32xf32>
    %106 = arith.addf %104, %105 : vector<8x32xf32>
    %cst_52 = arith.constant 5.000000e-01 : f32
    %107 = vector.broadcast %cst_52 : f32 to vector<8x32xf32>
    %108 = arith.mulf %90, %107 : vector<8x32xf32>
    %109 = arith.addf %103, %106 : vector<8x32xf32>
    %cst_53 = arith.constant 0.000000e+00 : f32
    %110 = vector.broadcast %cst_53 : f32 to vector<8x32xf32>
    %111 = arith.maximumf %109, %110 : vector<8x32xf32>
    %cst_54 = arith.constant 5.000000e-01 : f32
    %112 = vector.broadcast %cst_54 : f32 to vector<8x32xf32>
    %113 = arith.mulf %111, %112 : vector<8x32xf32>
    %114 = arith.addf %108, %113 : vector<8x32xf32>
    %c24 = arith.constant 24 : index
    %c0_55 = arith.constant 0 : index
    %115 = vector.load %arg13[%c24, %c0_55] : memref<32x32xf32, #tpu.memory_space<vmem>>, vector<8x32xf32>
    tpu.vector_store %arg13[%c24, %c0_55], %114 {strides = array<i32>} : memref<32x32xf32, #tpu.memory_space<vmem>>, vector<8x32xf32>,
    %c0_56 = arith.constant 0 : index
    %c0_57 = arith.constant 0 : index
    %116 = vector.load %arg14[%c0_56, %c0_57] : memref<8x32xf32, #tpu.memory_space<vmem>>, vector<8x32xf32>
    tpu.vector_store %arg14[%c0_56, %c0_57], %114 {strides = array<i32>} : memref<8x32xf32, #tpu.memory_space<vmem>>, vector<8x32xf32>,
    %c0_58 = arith.constant 0 : index
    %c0_59 = arith.constant 0 : index
    %117 = vector.load %arg15[%c0_58, %c0_59] : memref<8x1024xf32, #tpu.memory_space<vmem>>, vector<8x1024xf32>
    tpu.vector_store %arg15[%c0_58, %c0_59], %101 {strides = array<i32>} : memref<8x1024xf32, #tpu.memory_space<vmem>>, vector<8x1024xf32>,
    %c0_60 = arith.constant 0 : index
    %c0_61 = arith.constant 0 : index
    %118 = vector.load %arg13[%c0_60, %c0_61] : memref<32x32xf32, #tpu.memory_space<vmem>>, vector<32x32xf32>
    %cst_62 = arith.constant dense<0.000000e+00> : vector<32x8xf32>
    %119 = tpu.matmul %118, %9, %cst_62 {dimension_numbers = #tpu.dot_dimension_numbers<[1], [0], [0], [1], [0, 0, 1, 1], [], []>} : vector<32x32xf32>, vector<32x8xf32>, vector<32x8xf32> -> vector<32x8xf32>
    %120 = vector.broadcast %10 : vector<1x8xf32> to vector<32x8xf32>
    %121 = arith.addf %119, %120 : vector<32x8xf32>
    %c0_63 = arith.constant 0 : index
    %c0_64 = arith.constant 0 : index
    %122 = vector.load %arg12[%c0_63, %c0_64] : memref<32x8xf32, #tpu.memory_space<vmem>>, vector<32x8xf32>
    tpu.vector_store %arg12[%c0_63, %c0_64], %121 {strides = array<i32>} : memref<32x8xf32, #tpu.memory_space<vmem>>, vector<32x8xf32>,
    return
  }
  func.func @transform_0(%arg0: i32) -> (i32, i32) {
    %c0_i32 = arith.constant 0 : i32
    %c0_i32_0 = arith.constant 0 : i32
    return %arg0, %c0_i32 : i32, i32
  }
  func.func @transform_1(%arg0: i32) -> (i32, i32) {
    %c0_i32 = arith.constant 0 : i32
    %c0_i32_0 = arith.constant 0 : i32
    %c0_i32_1 = arith.constant 0 : i32
    return %c0_i32, %c0_i32_0 : i32, i32
  }
  func.func @transform_2(%arg0: i32) -> (i32, i32) {
    %c0_i32 = arith.constant 0 : i32
    %c0_i32_0 = arith.constant 0 : i32
    %c0_i32_1 = arith.constant 0 : i32
    return %c0_i32, %c0_i32_0 : i32, i32
  }
  func.func @transform_3(%arg0: i32) -> (i32, i32) {
    %c0_i32 = arith.constant 0 : i32
    %c0_i32_0 = arith.constant 0 : i32
    %c0_i32_1 = arith.constant 0 : i32
    return %c0_i32, %c0_i32_0 : i32, i32
  }
  func.func @transform_4(%arg0: i32) -> (i32, i32) {
    %c0_i32 = arith.constant 0 : i32
    %c0_i32_0 = arith.constant 0 : i32
    %c0_i32_1 = arith.constant 0 : i32
    return %c0_i32, %c0_i32_0 : i32, i32
  }
  func.func @transform_5(%arg0: i32) -> (i32, i32) {
    %c0_i32 = arith.constant 0 : i32
    %c0_i32_0 = arith.constant 0 : i32
    %c0_i32_1 = arith.constant 0 : i32
    return %c0_i32, %c0_i32_0 : i32, i32
  }
  func.func @transform_6(%arg0: i32) -> (i32, i32) {
    %c0_i32 = arith.constant 0 : i32
    %c0_i32_0 = arith.constant 0 : i32
    %c0_i32_1 = arith.constant 0 : i32
    return %c0_i32, %c0_i32_0 : i32, i32
  }
  func.func @transform_7(%arg0: i32) -> (i32, i32) {
    %c0_i32 = arith.constant 0 : i32
    %c0_i32_0 = arith.constant 0 : i32
    %c0_i32_1 = arith.constant 0 : i32
    return %c0_i32, %c0_i32_0 : i32, i32
  }
  func.func @transform_8(%arg0: i32) -> (i32, i32) {
    %c0_i32 = arith.constant 0 : i32
    %c0_i32_0 = arith.constant 0 : i32
    %c0_i32_1 = arith.constant 0 : i32
    return %c0_i32, %c0_i32_0 : i32, i32
  }
  func.func @transform_9(%arg0: i32) -> (i32, i32) {
    %c0_i32 = arith.constant 0 : i32
    %c0_i32_0 = arith.constant 0 : i32
    %c0_i32_1 = arith.constant 0 : i32
    return %c0_i32, %c0_i32_0 : i32, i32
  }
  func.func @transform_10(%arg0: i32) -> (i32, i32) {
    %c0_i32 = arith.constant 0 : i32
    %c0_i32_0 = arith.constant 0 : i32
    %c0_i32_1 = arith.constant 0 : i32
    return %c0_i32, %c0_i32_0 : i32, i32
  }
  func.func @transform_11(%arg0: i32) -> (i32, i32) {
    %c0_i32 = arith.constant 0 : i32
    %c0_i32_0 = arith.constant 0 : i32
    return %arg0, %c0_i32 : i32, i32
  }
  func.func @transform_12(%arg0: i32) -> (i32, i32) {
    %c0_i32 = arith.constant 0 : i32
    %c0_i32_0 = arith.constant 0 : i32
    return %arg0, %c0_i32 : i32, i32
  }
}

</mosaic_0001>

<llo_original>
// kernel: tpu_custom_call.1
$region0: #{tpu_custom_call.1}
  #allocation0 [shape = 'u32[]', space=smem, size = 0x4, offset = 0x4, fixed_abs, tag = 'smem constant byte address 0x4 - core index']
  #allocation1 [shape = 'u32[144,128]{1,0:T(1,128)}', space=vmem, size = 0x12000, scoped, tag = 'internal scratch']
  #allocation2 [shape = 'f32[8,32]{1,0:T(8,128)}', space=vmem, size = 0x1000, scoped, tag = 'scratch operand']
  #allocation3 [shape = 'f32[8,1024]{1,0:T(8,128)}', space=vmem, size = 0x8000, scoped, tag = 'scratch operand']
  %s0 = inlined_call_operand.vmem [shape: f32[64,16], index: 0, kind: input, shape index: {}]
  %s1 = inlined_call_operand.vmem [shape: f32[8,32], index: 1, kind: input, shape index: {}]
  %s2 = inlined_call_operand.vmem [shape: f32[1,1024], index: 2, kind: input, shape index: {}]
  %s3 = inlined_call_operand.vmem [shape: f32[16,32], index: 3, kind: input, shape index: {}]
  %s4 = inlined_call_operand.vmem [shape: f32[1,32], index: 4, kind: input, shape index: {}]
  %s5 = inlined_call_operand.vmem [shape: f32[32,2048], index: 5, kind: input, shape index: {}]
  %s6 = inlined_call_operand.vmem [shape: f32[32,1056], index: 6, kind: input, shape index: {}]
  %s7 = inlined_call_operand.vmem [shape: f32[1,32], index: 7, kind: input, shape index: {}]
  %s8 = inlined_call_operand.vmem [shape: f32[1024,32], index: 8, kind: input, shape index: {}]
  %s9 = inlined_call_operand.vmem [shape: f32[32,8], index: 9, kind: input, shape index: {}]
  %s10 = inlined_call_operand.vmem [shape: f32[1,8], index: 10, kind: input, shape index: {}]
  %s11 = inlined_call_operand.vmem [shape: f32[64,8], index: 11, kind: output, shape index: {0}]
  %s12 = inlined_call_operand.vmem [shape: f32[64,32], index: 12, kind: output, shape index: {1}]
  %13 = xla_tuple %s11, %s12
  %s14 = sld [smem:[#allocation0]]
  $region89: #{tpu_custom_call.1} parent=0
    _
  %s16 = ssub.s32 1, %s14
  %s17 = scalar_select 0, %s16, %s14
  loop: start=0, step=1, limit=4
  $region2: #{tpu_custom_call.1} parent=0 // loop_pre_header
    _
  $region3: #{tpu_custom_call.1} parent=0 // loop_header
    %s19 = sphi 0, %s23
    %p20 = scmp.ge.s32.totalorder %s19, 4
    %s29 = sphi 0, %s31
    %s32 = sphi 0, %s29
    %s33 = sphi 0, %s32
    %s49 = sphi 0, %s33
    %s53 = sphi 0, %s53
    %s55 = sphi 0, %s53
    %s56 = sphi 0, %s55
    %s70 = sphi 0, %s56
    %s74 = sphi 0, %s74
    %s76 = sphi 0, %s74
    %s77 = sphi 0, %s76
    %s91 = sphi 0, %s77
    %s95 = sphi 0, %s95
    %s97 = sphi 0, %s95
    %s98 = sphi 0, %s97
    %s112 = sphi 0, %s98
    %s116 = sphi 0, %s116
    %s118 = sphi 0, %s116
    %s119 = sphi 0, %s118
    %s133 = sphi 0, %s119
    %s137 = sphi 0, %s137
    %s139 = sphi 0, %s137
    %s140 = sphi 0, %s139
    %s154 = sphi 0, %s140
    %s158 = sphi 0, %s158
    %s160 = sphi 0, %s158
    %s161 = sphi 0, %s160
    %s175 = sphi 0, %s161
    %s179 = sphi 0, %s179
    %s181 = sphi 0, %s179
    %s182 = sphi 0, %s181
    %s196 = sphi 0, %s182
    %s200 = sphi 0, %s200
    %s202 = sphi 0, %s200
    %s203 = sphi 0, %s202
    %s217 = sphi 0, %s203
    %s221 = sphi 0, %s221
    %s223 = sphi 0, %s221
    %s224 = sphi 0, %s223
    %s238 = sphi 0, %s224
    %s242 = sphi 0, %s242
    %s244 = sphi 0, %s242
    %s245 = sphi 0, %s244
    %s259 = sphi 0, %s245
    %s265 = sphi 0, %s267
    %s268 = sphi 0, %s265
    %s269 = sphi 0, %s268
    %s285 = sphi 0, %s269
    %s291 = sphi 0, %s293
    %s294 = sphi 0, %s291
    %s295 = sphi 0, %s294
    %s311 = sphi 0, %s295
  $region4: #{tpu_custom_call.1} parent=0 // loop_header_branch
    %22 = sbr.rel (%p20) target = $region8
  $region5: #{tpu_custom_call.1} parent=0 // loop_body
    %s24 = ssub.s32 %s19, 1
    %s25 = ssub.s32 %s19, 2
    %s26 = sadd.s32 %s19, 1
    %s27 = ssub.s32 %s19, %s26
    %p28 = scmp.eq.s32.totalorder %s27, 0
    %s30 = sadd.s32 %s29, 1
    %s31 = scalar_select %p28, %s29, %s30
    %p34 = pneg %p28
    %p35 = scmp.eq.s32.totalorder %s19, 1
    %p36 = por %p34, %p35
    %p37 = scmp.ne.s32.totalorder %s29, %s32
    %p38 = scmp.eq.s32.totalorder %s19, 0
    %p39 = por %p37, %p38
    %p40 = scmp.ne.s32.totalorder %s29, %s32
    %p41 = scmp.eq.s32.totalorder %s24, 1
    %p42 = por %p40, %p41
    %p43 = scmp.ne.s32.totalorder %s32, %s33
    %p44 = scmp.eq.s32.totalorder %s24, 0
    %p45 = por %p43, %p44
    %p46 = scmp.ne.s32.totalorder %s32, %s33
    %p47 = scmp.eq.s32.totalorder %s25, 1
    %p48 = por %p46, %p47
    %p50 = scmp.ne.s32.totalorder %s33, %s49
    %p51 = scmp.eq.s32.totalorder %s25, 0
    %p52 = por %p50, %p51
    %s54 = sadd.s32 %s53, 1
    %p57 = scmp.eq.s32.totalorder %s19, 1
    %p58 = scmp.ne.s32.totalorder %s53, %s55
    %p59 = scmp.eq.s32.totalorder %s19, 0
    %p60 = por %p58, %p59
    %p61 = scmp.ne.s32.totalorder %s53, %s55
    %p62 = scmp.eq.s32.totalorder %s24, 1
    %p63 = por %p61, %p62
    %p64 = scmp.ne.s32.totalorder %s55, %s56
    %p65 = scmp.eq.s32.totalorder %s24, 0
    %p66 = por %p64, %p65
    %p67 = scmp.ne.s32.totalorder %s55, %s56
    %p68 = scmp.eq.s32.totalorder %s25, 1
    %p69 = por %p67, %p68
    %p71 = scmp.ne.s32.totalorder %s56, %s70
    %p72 = scmp.eq.s32.totalorder %s25, 0
    %p73 = por %p71, %p72
    %s75 = sadd.s32 %s74, 1
    %p78 = scmp.eq.s32.totalorder %s19, 1
    %p79 = scmp.ne.s32.totalorder %s74, %s76
    %p80 = scmp.eq.s32.totalorder %s19, 0
    %p81 = por %p79, %p80
    %p82 = scmp.ne.s32.totalorder %s74, %s76
    %p83 = scmp.eq.s32.totalorder %s24, 1
    %p84 = por %p82, %p83
    %p85 = scmp.ne.s32.totalorder %s76, %s77
    %p86 = scmp.eq.s32.totalorder %s24, 0
    %p87 = por %p85, %p86
    %p88 = scmp.ne.s32.totalorder %s76, %s77
    %p89 = scmp.eq.s32.totalorder %s25, 1
    %p90 = por %p88, %p89
    %p92 = scmp.ne.s32.totalorder %s77, %s91
    %p93 = scmp.eq.s32.totalorder %s25, 0
    %p94 = por %p92, %p93
    %s96 = sadd.s32 %s95, 1
    %p99 = scmp.eq.s32.totalorder %s19, 1
    %p100 = scmp.ne.s32.totalorder %s95, %s97
    %p101 = scmp.eq.s32.totalorder %s19, 0
    %p102 = por %p100, %p101
    %p103 = scmp.ne.s32.totalorder %s95, %s97
    %p104 = scmp.eq.s32.totalorder %s24, 1
    %p105 = por %p103, %p104
    %p106 = scmp.ne.s32.totalorder %s97, %s98
    %p107 = scmp.eq.s32.totalorder %s24, 0
    %p108 = por %p106, %p107
    %p109 = scmp.ne.s32.totalorder %s97, %s98
    %p110 = scmp.eq.s32.totalorder %s25, 1
    %p111 = por %p109, %p110
    %p113 = scmp.ne.s32.totalorder %s98, %s112
    %p114 = scmp.eq.s32.totalorder %s25, 0
    %p115 = por %p113, %p114
    %s117 = sadd.s32 %s116, 1
    %p120 = scmp.eq.s32.totalorder %s19, 1
    %p121 = scmp.ne.s32.totalorder %s116, %s118
    %p122 = scmp.eq.s32.totalorder %s19, 0
    %p123 = por %p121, %p122
    %p124 = scmp.ne.s32.totalorder %s116, %s118
    %p125 = scmp.eq.s32.totalorder %s24, 1
    %p126 = por %p124, %p125
    %p127 = scmp.ne.s32.totalorder %s118, %s119
    %p128 = scmp.eq.s32.totalorder %s24, 0
    %p129 = por %p127, %p128
    %p130 = scmp.ne.s32.totalorder %s118, %s119
    %p131 = scmp.eq.s32.totalorder %s25, 1
    %p132 = por %p130, %p131
    %p134 = scmp.ne.s32.totalorder %s119, %s133
    %p135 = scmp.eq.s32.totalorder %s25, 0
    %p136 = por %p134, %p135
    %s138 = sadd.s32 %s137, 1
    %p141 = scmp.eq.s32.totalorder %s19, 1
    %p142 = scmp.ne.s32.totalorder %s137, %s139
    %p143 = scmp.eq.s32.totalorder %s19, 0
    %p144 = por %p142, %p143
    %p145 = scmp.ne.s32.totalorder %s137, %s139
    %p146 = scmp.eq.s32.totalorder %s24, 1
    %p147 = por %p145, %p146
    %p148 = scmp.ne.s32.totalorder %s139, %s140
    %p149 = scmp.eq.s32.totalorder %s24, 0
    %p150 = por %p148, %p149
    %p151 = scmp.ne.s32.totalorder %s139, %s140
    %p152 = scmp.eq.s32.totalorder %s25, 1
    %p153 = por %p151, %p152
    %p155 = scmp.ne.s32.totalorder %s140, %s154
    %p156 = scmp.eq.s32.totalorder %s25, 0
    %p157 = por %p155, %p156
    %s159 = sadd.s32 %s158, 1
    %p162 = scmp.eq.s32.totalorder %s19, 1
    %p163 = scmp.ne.s32.totalorder %s158, %s160
    %p164 = scmp.eq.s32.totalorder %s19, 0
    %p165 = por %p163, %p164
    %p166 = scmp.ne.s32.totalorder %s158, %s160
    %p167 = scmp.eq.s32.totalorder %s24, 1
    %p168 = por %p166, %p167
    %p169 = scmp.ne.s32.totalorder %s160, %s161
    %p170 = scmp.eq.s32.totalorder %s24, 0
    %p171 = por %p169, %p170
    %p172 = scmp.ne.s32.totalorder %s160, %s161
    %p173 = scmp.eq.s32.totalorder %s25, 1
    %p174 = por %p172, %p173
    %p176 = scmp.ne.s32.totalorder %s161, %s175
    %p177 = scmp.eq.s32.totalorder %s25, 0
    %p178 = por %p176, %p177
    %s180 = sadd.s32 %s179, 1
    %p183 = scmp.eq.s32.totalorder %s19, 1
    %p184 = scmp.ne.s32.totalorder %s179, %s181
    %p185 = scmp.eq.s32.totalorder %s19, 0
    %p186 = por %p184, %p185
    %p187 = scmp.ne.s32.totalorder %s179, %s181
    %p188 = scmp.eq.s32.totalorder %s24, 1
    %p189 = por %p187, %p188
    %p190 = scmp.ne.s32.totalorder %s181, %s182
    %p191 = scmp.eq.s32.totalorder %s24, 0
    %p192 = por %p190, %p191
    %p193 = scmp.ne.s32.totalorder %s181, %s182
    %p194 = scmp.eq.s32.totalorder %s25, 1
    %p195 = por %p193, %p194
    %p197 = scmp.ne.s32.totalorder %s182, %s196
    %p198 = scmp.eq.s32.totalorder %s25, 0
    %p199 = por %p197, %p198
    %s201 = sadd.s32 %s200, 1
    %p204 = scmp.eq.s32.totalorder %s19, 1
    %p205 = scmp.ne.s32.totalorder %s200, %s202
    %p206 = scmp.eq.s32.totalorder %s19, 0
    %p207 = por %p205, %p206
    %p208 = scmp.ne.s32.totalorder %s200, %s202
    %p209 = scmp.eq.s32.totalorder %s24, 1
    %p210 = por %p208, %p209
    %p211 = scmp.ne.s32.totalorder %s202, %s203
    %p212 = scmp.eq.s32.totalorder %s24, 0
    %p213 = por %p211, %p212
    %p214 = scmp.ne.s32.totalorder %s202, %s203
    %p215 = scmp.eq.s32.totalorder %s25, 1
    %p216 = por %p214, %p215
    %p218 = scmp.ne.s32.totalorder %s203, %s217
    %p219 = scmp.eq.s32.totalorder %s25, 0
    %p220 = por %p218, %p219
    %s222 = sadd.s32 %s221, 1
    %p225 = scmp.eq.s32.totalorder %s19, 1
    %p226 = scmp.ne.s32.totalorder %s221, %s223
    %p227 = scmp.eq.s32.totalorder %s19, 0
    %p228 = por %p226, %p227
    %p229 = scmp.ne.s32.totalorder %s221, %s223
    %p230 = scmp.eq.s32.totalorder %s24, 1
    %p231 = por %p229, %p230
    %p232 = scmp.ne.s32.totalorder %s223, %s224
    %p233 = scmp.eq.s32.totalorder %s24, 0
    %p234 = por %p232, %p233
    %p235 = scmp.ne.s32.totalorder %s223, %s224
    %p236 = scmp.eq.s32.totalorder %s25, 1
    %p237 = por %p235, %p236
    %p239 = scmp.ne.s32.totalorder %s224, %s238
    %p240 = scmp.eq.s32.totalorder %s25, 0
    %p241 = por %p239, %p240
    %s243 = sadd.s32 %s242, 1
    %p246 = scmp.eq.s32.totalorder %s19, 1
    %p247 = scmp.ne.s32.totalorder %s242, %s244
    %p248 = scmp.eq.s32.totalorder %s19, 0
    %p249 = por %p247, %p248
    %p250 = scmp.ne.s32.totalorder %s242, %s244
    %p251 = scmp.eq.s32.totalorder %s24, 1
    %p252 = por %p250, %p251
    %p253 = scmp.ne.s32.totalorder %s244, %s245
    %p254 = scmp.eq.s32.totalorder %s24, 0
    %p255 = por %p253, %p254
    %p256 = scmp.ne.s32.totalorder %s244, %s245
    %p257 = scmp.eq.s32.totalorder %s25, 1
    %p258 = por %p256, %p257
    %p260 = scmp.ne.s32.totalorder %s245, %s259
    %p261 = scmp.eq.s32.totalorder %s25, 0
    %p262 = por %p260, %p261
    %s263 = ssub.s32 %s19, %s26
    %p264 = scmp.eq.s32.totalorder %s263, 0
    %s266 = sadd.s32 %s265, 1
    %s267 = scalar_select %p264, %s265, %s266
    %p270 = pneg %p264
    %p271 = scmp.eq.s32.totalorder %s19, 1
    %p272 = por %p270, %p271
    %p273 = scmp.ne.s32.totalorder %s265, %s268
    %p274 = scmp.eq.s32.totalorder %s19, 0
    %p275 = por %p273, %p274
    %p276 = scmp.ne.s32.totalorder %s265, %s268
    %p277 = scmp.eq.s32.totalorder %s24, 1
    %p278 = por %p276, %p277
    %p279 = scmp.ne.s32.totalorder %s268, %s269
    %p280 = scmp.eq.s32.totalorder %s24, 0
    %p281 = por %p279, %p280
    %p282 = scmp.ne.s32.totalorder %s268, %s269
    %p283 = scmp.eq.s32.totalorder %s25, 1
    %p284 = por %p282, %p283
    %p286 = scmp.ne.s32.totalorder %s269, %s285
    %p287 = scmp.eq.s32.totalorder %s25, 0
    %p288 = por %p286, %p287
    %s289 = ssub.s32 %s19, %s26
    %p290 = scmp.eq.s32.totalorder %s289, 0
    %s292 = sadd.s32 %s291, 1
    %s293 = scalar_select %p290, %s291, %s292
    %p296 = pneg %p290
    %p297 = scmp.eq.s32.totalorder %s19, 1
    %p298 = por %p296, %p297
    %p299 = scmp.ne.s32.totalorder %s291, %s294
    %p300 = scmp.eq.s32.totalorder %s19, 0
    %p301 = por %p299, %p300
    %p302 = scmp.ne.s32.totalorder %s291, %s294
    %p303 = scmp.eq.s32.totalorder %s24, 1
    %p304 = por %p302, %p303
    %p305 = scmp.ne.s32.totalorder %s294, %s295
    %p306 = scmp.eq.s32.totalorder %s24, 0
    %p307 = por %p305, %p306
    %p308 = scmp.ne.s32.totalorder %s294, %s295
    %p309 = scmp.eq.s32.totalorder %s25, 1
    %p310 = por %p308, %p309
    %p312 = scmp.ne.s32.totalorder %s295, %s311
    %p313 = scmp.eq.s32.totalorder %s25, 0
    %p314 = por %p312, %p313
    %p315 = scmp.le.s32.totalorder 1, %s19
    %p316 = scmp.lt.s32.totalorder %s19, 3
    %p317 = pnand %p315, %p316
    %p318 = pneg %p317
    // Predicated region
    $region9: #{tpu_custom_call.1} parent=5 // pred_check
      _
    $region10: #{tpu_custom_call.1} parent=5 // pred_check_branch
      %320 = sbr.rel (%p317) target = $region12
    $region11: #{tpu_custom_call.1} parent=5 // pred_region
      %s321 = ssub.s32 %s19, 1
      // Predicated region
      $region13: #{tpu_custom_call.1} parent=11 // pred_check
        %p322 = pneg %p66
      $region14: #{tpu_custom_call.1} parent=11 // pred_check_branch
        %324 = sbr.rel (%p322) target = $region16
      $region15: #{tpu_custom_call.1} parent=11 // pred_region
        _
      $region16: #{tpu_custom_call.1} parent=11 // pred_fallthru
        _
      // Predicated region
      $region17: #{tpu_custom_call.1} parent=11 // pred_check
        %p325 = pneg %p87
      $region18: #{tpu_custom_call.1} parent=11 // pred_check_branch
        %327 = sbr.rel (%p325) target = $region20
      $region19: #{tpu_custom_call.1} parent=11 // pred_region
        _
      $region20: #{tpu_custom_call.1} parent=11 // pred_fallthru
        _
      // Predicated region
      $region21: #{tpu_custom_call.1} parent=11 // pred_check
        %p328 = pneg %p108
      $region22: #{tpu_custom_call.1} parent=11 // pred_check_branch
        %330 = sbr.rel (%p328) target = $region24
      $region23: #{tpu_custom_call.1} parent=11 // pred_region
        _
      $region24: #{tpu_custom_call.1} parent=11 // pred_fallthru
        _
      // Predicated region
      $region25: #{tpu_custom_call.1} parent=11 // pred_check
        %p331 = pneg %p129
      $region26: #{tpu_custom_call.1} parent=11 // pred_check_branch
        %333 = sbr.rel (%p331) target = $region28
      $region27: #{tpu_custom_call.1} parent=11 // pred_region
        _
      $region28: #{tpu_custom_call.1} parent=11 // pred_fallthru
        _
      // Predicated region
      $region29: #{tpu_custom_call.1} parent=11 // pred_check
        %p334 = pneg %p150
      $region30: #{tpu_custom_call.1} parent=11 // pred_check_branch
        %336 = sbr.rel (%p334) target = $region32
      $region31: #{tpu_custom_call.1} parent=11 // pred_region
        _
      $region32: #{tpu_custom_call.1} parent=11 // pred_fallthru
        _
      // Predicated region
      $region33: #{tpu_custom_call.1} parent=11 // pred_check
        %p337 = pneg %p171
      $region34: #{tpu_custom_call.1} parent=11 // pred_check_branch
        %339 = sbr.rel (%p337) target = $region36
      $region35: #{tpu_custom_call.1} parent=11 // pred_region
        _
      $region36: #{tpu_custom_call.1} parent=11 // pred_fallthru
        _
      // Predicated region
      $region37: #{tpu_custom_call.1} parent=11 // pred_check
        %p340 = pneg %p192
      $region38: #{tpu_custom_call.1} parent=11 // pred_check_branch
        %342 = sbr.rel (%p340) target = $region40
      $region39: #{tpu_custom_call.1} parent=11 // pred_region
        _
      $region40: #{tpu_custom_call.1} parent=11 // pred_fallthru
        _
      // Predicated region
      $region41: #{tpu_custom_call.1} parent=11 // pred_check
        %p343 = pneg %p213
      $region42: #{tpu_custom_call.1} parent=11 // pred_check_branch
        %345 = sbr.rel (%p343) target = $region44
      $region43: #{tpu_custom_call.1} parent=11 // pred_region
        _
      $region44: #{tpu_custom_call.1} parent=11 // pred_fallthru
        _
      // Predicated region
      $region45: #{tpu_custom_call.1} parent=11 // pred_check
        %p346 = pneg %p234
      $region46: #{tpu_custom_call.1} parent=11 // pred_check_branch
        %348 = sbr.rel (%p346) target = $region48
      $region47: #{tpu_custom_call.1} parent=11 // pred_region
        _
      $region48: #{tpu_custom_call.1} parent=11 // pred_fallthru
        _
      // Predicated region
      $region49: #{tpu_custom_call.1} parent=11 // pred_check
        %p349 = pneg %p255
      $region50: #{tpu_custom_call.1} parent=11 // pred_check_branch
        %351 = sbr.rel (%p349) target = $region52
      $region51: #{tpu_custom_call.1} parent=11 // pred_region
        _
      $region52: #{tpu_custom_call.1} parent=11 // pred_fallthru
        _
    $region12: #{tpu_custom_call.1} parent=5 // pred_fallthru
      _
    %p352 = scmp.lt.s32.totalorder %s19, 2
    // Predicated region
    $region53: #{tpu_custom_call.1} parent=5 // pred_check
      %p353 = pneg %p352
    $region54: #{tpu_custom_call.1} parent=5 // pred_check_branch
      %355 = sbr.rel (%p353) target = $region56
    $region55: #{tpu_custom_call.1} parent=5 // pred_region
      // Predicated region
      $region57: #{tpu_custom_call.1} parent=55 // pred_check
        %p356 = pneg %p39
      $region58: #{tpu_custom_call.1} parent=55 // pred_check_branch
        %358 = sbr.rel (%p356) target = $region60
      $region59: #{tpu_custom_call.1} parent=55 // pred_region
        %s359 = smul.u32 4, %s19
        %p360 = scmp.lt.s32.totalorder %s359, 7
        %s361 = scalar_select %p360, %s359, 7
        %s362 = smul.addr %s361, 8
        %s363 = scalar_lea.vmem %s0, %s362
        %s364 = smul.u32 4, %s19
      $region60: #{tpu_custom_call.1} parent=55 // pred_fallthru
        _
    $region56: #{tpu_custom_call.1} parent=5 // pred_fallthru
      _
    %p365 = scmp.le.s32.totalorder 1, %s19
    %p366 = scmp.lt.s32.totalorder %s19, 3
    %p367 = pnand %p365, %p366
    %p368 = pneg %p367
    // Predicated region
    $region61: #{tpu_custom_call.1} parent=5 // pred_check
      _
    $region62: #{tpu_custom_call.1} parent=5 // pred_check_branch
      %370 = sbr.rel (%p367) target = $region64
    $region63: #{tpu_custom_call.1} parent=5 // pred_region
      %s371 = ssub.s32 %s19, 1
      %s372 = smul.u32 4, %s24
      %p373 = scmp.lt.s32.totalorder %s372, 7
      %s374 = scalar_select %p373, %s372, 7
      %s375 = smul.addr %s374, 8
      %s376 = scalar_lea.vmem %s0, %s375
      %p377 = pneg %p45
      %p378 = pneg %p42
      %p379 = pneg %p66
      %p380 = pneg %p63
      %p381 = pneg %p87
      %p382 = pneg %p84
      %p383 = pneg %p108
      %p384 = pneg %p105
      %p385 = pneg %p129
      %p386 = pneg %p126
      %p387 = pneg %p150
      %p388 = pneg %p147
      %p389 = pneg %p171
      %p390 = pneg %p168
      %p391 = pneg %p192
      %p392 = pneg %p189
      %p393 = pneg %p213
      %p394 = pneg %p210
      %p395 = pneg %p234
      %p396 = pneg %p231
      %p397 = pneg %p255
      %p398 = pneg %p252
      %p399 = pneg %p281
      %p400 = pneg %p278
      %s401 = smul.u32 4, %s24
      %p402 = scmp.lt.s32.totalorder %s401, 7
      %s403 = scalar_select %p402, %s401, 7
      %s404 = smul.addr %s403, 8
      %s405 = scalar_lea.vmem %s11, %s404
      %p406 = pneg %p307
      %p407 = pneg %p304
      %s408 = smul.u32 4, %s24
      %p409 = scmp.lt.s32.totalorder %s408, 7
      %s410 = scalar_select %p409, %s408, 7
      %s411 = smul.addr %s410, 8
      %s412 = scalar_lea.vmem %s12, %s411
      %s413 = smul.u32 4, %s24
      %p414 = scmp.lt.s32.totalorder %s413, 7
      %s415 = scalar_select %p414, %s413, 7
      %s416 = smul.addr %s415, 8
      %s417 = scalar_lea.vmem %s0, %s416
      %s418 = smul.u32 4, %s24
      %s419 = smul.u32 4, %s24
      %p420 = scmp.lt.s32.totalorder %s419, 7
      %s421 = scalar_select %p420, %s419, 7
      %s422 = smul.addr %s421, 8
      %s423 = scalar_lea.vmem %s11, %s422
      %s424 = smul.u32 4, %s24
      %s425 = smul.u32 4, %s24
      %p426 = scmp.lt.s32.totalorder %s425, 7
      %s427 = scalar_select %p426, %s425, 7
      %s428 = smul.addr %s427, 8
      %s429 = scalar_lea.vmem %s12, %s428
      %s430 = smul.u32 4, %s24
      %p431 = scmp.eq.s32.totalorder %s24, 0
      // Predicated region
      $region65: #{tpu_custom_call.1} parent=63 // pred_check
        %p432 = pneg %p431
      $region66: #{tpu_custom_call.1} parent=63 // pred_check_branch
        %434 = sbr.rel (%p432) target = $region68
      $region67: #{tpu_custom_call.1} parent=63 // pred_region
        %v435 = vld [vmem:[%s1] sm:$0xff]
        %vm436 = vcmask 261120
        %437 = vst.msk [vmem:[#allocation2] sm:$0xff] %vm436, %v435
        %v438 = vld [vmem:[%s2] sm:$0xff]
        %v440 = vlaneseq
        %v441 = vshrl.u32 %v440, 7
        %v442 = vsub.s32 0, %v441
        %v443 = vrot.slane %v438, %v442
        %v444 = vlaneseq
        %v445 = vshrl.u32 %v444, 7
        %v446 = vsub.s32 1, %v445
        %v447 = vrot.slane %v438, %v446
        %v448 = vlaneseq
        %v449 = vshrl.u32 %v448, 7
        %v450 = vsub.s32 2, %v449
        %v451 = vrot.slane %v438, %v450
        %v452 = vlaneseq
        %v453 = vshrl.u32 %v452, 7
        %v454 = vsub.s32 3, %v453
        %v455 = vrot.slane %v438, %v454
        %v456 = vlaneseq
        %v457 = vshrl.u32 %v456, 7
        %v458 = vsub.s32 4, %v457
        %v459 = vrot.slane %v438, %v458
        %v460 = vlaneseq
        %v461 = vshrl.u32 %v460, 7
        %v462 = vsub.s32 5, %v461
        %v463 = vrot.slane %v438, %v462
        %v464 = vlaneseq
        %v465 = vshrl.u32 %v464, 7
        %v466 = vsub.s32 6, %v465
        %v467 = vrot.slane %v438, %v466
        %v468 = vlaneseq
        %v469 = vshrl.u32 %v468, 7
        %v470 = vsub.s32 7, %v469
        %v471 = vrot.slane %v438, %v470
        %480 = vst [vmem:[#allocation3] sm:$0xff] %v443
        %481 = vst [vmem:[#allocation3 + $0x8] sm:$0xff] %v447
        %482 = vst [vmem:[#allocation3 + $0x10] sm:$0xff] %v451
        %483 = vst [vmem:[#allocation3 + $0x18] sm:$0xff] %v455
        %484 = vst [vmem:[#allocation3 + $0x20] sm:$0xff] %v459
        %485 = vst [vmem:[#allocation3 + $0x28] sm:$0xff] %v463
        %486 = vst [vmem:[#allocation3 + $0x30] sm:$0xff] %v467
        %487 = vst [vmem:[#allocation3 + $0x38] sm:$0xff] %v471
      $region68: #{tpu_custom_call.1} parent=63 // pred_fallthru
        _
      %v488 = vld [vmem:[%s3] sm:$0xff]
      %v489 = vld [vmem:[%s3 + $0x8] sm:$0xff]
      %v490 = vld [vmem:[%s4] sm:$0x1]
      %v491 = vld [vmem:[%s5] sm:$0xff]
      %v492 = vld [vmem:[%s5 + $0x8] sm:$0xff]
      %v493 = vld [vmem:[%s5 + $0x10] sm:$0xff]
      %v494 = vld [vmem:[%s5 + $0x18] sm:$0xff]
      %v495 = vld [vmem:[%s5 + $0x20] sm:$0xff]
      %v496 = vld [vmem:[%s5 + $0x28] sm:$0xff]
      %v497 = vld [vmem:[%s5 + $0x30] sm:$0xff]
      %v498 = vld [vmem:[%s5 + $0x38] sm:$0xff]
      %v499 = vld [vmem:[%s5 + $0x40] sm:$0xff]
      %v500 = vld [vmem:[%s5 + $0x48] sm:$0xff]
      %v501 = vld [vmem:[%s5 + $0x50] sm:$0xff]
      %v502 = vld [vmem:[%s5 + $0x58] sm:$0xff]
      %v503 = vld [vmem:[%s5 + $0x60] sm:$0xff]
      %v504 = vld [vmem:[%s5 + $0x68] sm:$0xff]
      %v505 = vld [vmem:[%s5 + $0x70] sm:$0xff]
      %v506 = vld [vmem:[%s5 + $0x78] sm:$0xff]
      %v507 = vld [vmem:[%s5 + $0x80] sm:$0xff]
      %v508 = vld [vmem:[%s5 + $0x88] sm:$0xff]
      %v509 = vld [vmem:[%s5 + $0x90] sm:$0xff]
      %v510 = vld [vmem:[%s5 + $0x98] sm:$0xff]
      %v511 = vld [vmem:[%s5 + $0xa0] sm:$0xff]
      %v512 = vld [vmem:[%s5 + $0xa8] sm:$0xff]
      %v513 = vld [vmem:[%s5 + $0xb0] sm:$0xff]
      %v514 = vld [vmem:[%s5 + $0xb8] sm:$0xff]
      %v515 = vld [vmem:[%s5 + $0xc0] sm:$0xff]
      %v516 = vld [vmem:[%s5 + $0xc8] sm:$0xff]
      %v517 = vld [vmem:[%s5 + $0xd0] sm:$0xff]
      %v518 = vld [vmem:[%s5 + $0xd8] sm:$0xff]
      %v519 = vld [vmem:[%s5 + $0xe0] sm:$0xff]
      %v520 = vld [vmem:[%s5 + $0xe8] sm:$0xff]
      %v521 = vld [vmem:[%s5 + $0xf0] sm:$0xff]
      %v522 = vld [vmem:[%s5 + $0xf8] sm:$0xff]
      %v523 = vld [vmem:[%s5 + $0x100] sm:$0xff]
      %v524 = vld [vmem:[%s5 + $0x108] sm:$0xff]
      %v525 = vld [vmem:[%s5 + $0x110] sm:$0xff]
      %v526 = vld [vmem:[%s5 + $0x118] sm:$0xff]
      %v527 = vld [vmem:[%s5 + $0x120] sm:$0xff]
      %v528 = vld [vmem:[%s5 + $0x128] sm:$0xff]
      %v529 = vld [vmem:[%s5 + $0x130] sm:$0xff]
      %v530 = vld [vmem:[%s5 + $0x138] sm:$0xff]
      %v531 = vld [vmem:[%s5 + $0x140] sm:$0xff]
      %v532 = vld [vmem:[%s5 + $0x148] sm:$0xff]
      %v533 = vld [vmem:[%s5 + $0x150] sm:$0xff]
      %v534 = vld [vmem:[%s5 + $0x158] sm:$0xff]
      %v535 = vld [vmem:[%s5 + $0x160] sm:$0xff]
      %v536 = vld [vmem:[%s5 + $0x168] sm:$0xff]
      %v537 = vld [vmem:[%s5 + $0x170] sm:$0xff]
      %v538 = vld [vmem:[%s5 + $0x178] sm:$0xff]
      %v539 = vld [vmem:[%s5 + $0x180] sm:$0xff]
      %v540 = vld [vmem:[%s5 + $0x188] sm:$0xff]
      %v541 = vld [vmem:[%s5 + $0x190] sm:$0xff]
      %v542 = vld [vmem:[%s5 + $0x198] sm:$0xff]
      %v543 = vld [vmem:[%s5 + $0x1a0] sm:$0xff]
      %v544 = vld [vmem:[%s5 + $0x1a8] sm:$0xff]
      %v545 = vld [vmem:[%s5 + $0x1b0] sm:$0xff]
      %v546 = vld [vmem:[%s5 + $0x1b8] sm:$0xff]
      %v547 = vld [vmem:[%s5 + $0x1c0] sm:$0xff]
      %v548 = vld [vmem:[%s5 + $0x1c8] sm:$0xff]
      %v549 = vld [vmem:[%s5 + $0x1d0] sm:$0xff]
      %v550 = vld [vmem:[%s5 + $0x1d8] sm:$0xff]
      %v551 = vld [vmem:[%s5 + $0x1e0] sm:$0xff]
      %v552 = vld [vmem:[%s5 + $0x1e8] sm:$0xff]
      %v553 = vld [vmem:[%s5 + $0x1f0] sm:$0xff]
      %v554 = vld [vmem:[%s5 + $0x1f8] sm:$0xff]
      %v555 = vld [vmem:[%s6] sm:$0xff]
      %v556 = vld [vmem:[%s6 + $0x8] sm:$0xff]
      %v557 = vld [vmem:[%s6 + $0x10] sm:$0xff]
      %v558 = vld [vmem:[%s6 + $0x18] sm:$0xff]
      %v559 = vld [vmem:[%s6 + $0x20] sm:$0xff]
      %v560 = vld [vmem:[%s6 + $0x28] sm:$0xff]
      %v561 = vld [vmem:[%s6 + $0x30] sm:$0xff]
      %v562 = vld [vmem:[%s6 + $0x38] sm:$0xff]
      %v563 = vld [vmem:[%s6 + $0x40] sm:$0xff]
      %v564 = vld [vmem:[%s6 + $0x48] sm:$0xff]
      %v565 = vld [vmem:[%s6 + $0x50] sm:$0xff]
      %v566 = vld [vmem:[%s6 + $0x58] sm:$0xff]
      %v567 = vld [vmem:[%s6 + $0x60] sm:$0xff]
      %v568 = vld [vmem:[%s6 + $0x68] sm:$0xff]
      %v569 = vld [vmem:[%s6 + $0x70] sm:$0xff]
      %v570 = vld [vmem:[%s6 + $0x78] sm:$0xff]
      %v571 = vld [vmem:[%s6 + $0x80] sm:$0xff]
      %v572 = vld [vmem:[%s6 + $0x88] sm:$0xff]
      %v573 = vld [vmem:[%s6 + $0x90] sm:$0xff]
      %v574 = vld [vmem:[%s6 + $0x98] sm:$0xff]
      %v575 = vld [vmem:[%s6 + $0xa0] sm:$0xff]
      %v576 = vld [vmem:[%s6 + $0xa8] sm:$0xff]
      %v577 = vld [vmem:[%s6 + $0xb0] sm:$0xff]
      %v578 = vld [vmem:[%s6 + $0xb8] sm:$0xff]
      %v579 = vld [vmem:[%s6 + $0xc0] sm:$0xff]
      %v580 = vld [vmem:[%s6 + $0xc8] sm:$0xff]
      %v581 = vld [vmem:[%s6 + $0xd0] sm:$0xff]
      %v582 = vld [vmem:[%s6 + $0xd8] sm:$0xff]
      %v583 = vld [vmem:[%s6 + $0xe0] sm:$0xff]
      %v584 = vld [vmem:[%s6 + $0xe8] sm:$0xff]
      %v585 = vld [vmem:[%s6 + $0xf0] sm:$0xff]
      %v586 = vld [vmem:[%s6 + $0xf8] sm:$0xff]
      %v587 = vld [vmem:[%s6 + $0x100] sm:$0xff]
      %v588 = vld [vmem:[%s6 + $0x108] sm:$0xff]
      %v589 = vld [vmem:[%s6 + $0x110] sm:$0xff]
      %v590 = vld [vmem:[%s6 + $0x118] sm:$0xff]
      %v591 = vld [vmem:[%s7] sm:$0x1]
      %v592 = vld [vmem:[%s8] sm:$0xff]
      %v593 = vld [vmem:[%s8 + $0x8] sm:$0xff]
      %v594 = vld [vmem:[%s8 + $0x10] sm:$0xff]
      %v595 = vld [vmem:[%s8 + $0x18] sm:$0xff]
      %v596 = vld [vmem:[%s8 + $0x20] sm:$0xff]
      %v597 = vld [vmem:[%s8 + $0x28] sm:$0xff]
      %v598 = vld [vmem:[%s8 + $0x30] sm:$0xff]
      %v599 = vld [vmem:[%s8 + $0x38] sm:$0xff]
      %v600 = vld [vmem:[%s8 + $0x40] sm:$0xff]
      %v601 = vld [vmem:[%s8 + $0x48] sm:$0xff]
      %v602 = vld [vmem:[%s8 + $0x50] sm:$0xff]
      %v603 = vld [vmem:[%s8 + $0x58] sm:$0xff]
      %v604 = vld [vmem:[%s8 + $0x60] sm:$0xff]
      %v605 = vld [vmem:[%s8 + $0x68] sm:$0xff]
      %v606 = vld [vmem:[%s8 + $0x70] sm:$0xff]
      %v607 = vld [vmem:[%s8 + $0x78] sm:$0xff]
      %v608 = vld [vmem:[%s8 + $0x80] sm:$0xff]
      %v609 = vld [vmem:[%s8 + $0x88] sm:$0xff]
      %v610 = vld [vmem:[%s8 + $0x90] sm:$0xff]
      %v611 = vld [vmem:[%s8 + $0x98] sm:$0xff]
      %v612 = vld [vmem:[%s8 + $0xa0] sm:$0xff]
      %v613 = vld [vmem:[%s8 + $0xa8] sm:$0xff]
      %v614 = vld [vmem:[%s8 + $0xb0] sm:$0xff]
      %v615 = vld [vmem:[%s8 + $0xb8] sm:$0xff]
      %v616 = vld [vmem:[%s8 + $0xc0] sm:$0xff]
      %v617 = vld [vmem:[%s8 + $0xc8] sm:$0xff]
      %v618 = vld [vmem:[%s8 + $0xd0] sm:$0xff]
      %v619 = vld [vmem:[%s8 + $0xd8] sm:$0xff]
      %v620 = vld [vmem:[%s8 + $0xe0] sm:$0xff]
      %v621 = vld [vmem:[%s8 + $0xe8] sm:$0xff]
      %v622 = vld [vmem:[%s8 + $0xf0] sm:$0xff]
      %v623 = vld [vmem:[%s8 + $0xf8] sm:$0xff]
      %v624 = vld [vmem:[%s8 + $0x100] sm:$0xff]
      %v625 = vld [vmem:[%s8 + $0x108] sm:$0xff]
      %v626 = vld [vmem:[%s8 + $0x110] sm:$0xff]
      %v627 = vld [vmem:[%s8 + $0x118] sm:$0xff]
      %v628 = vld [vmem:[%s8 + $0x120] sm:$0xff]
      %v629 = vld [vmem:[%s8 + $0x128] sm:$0xff]
      %v630 = vld [vmem:[%s8 + $0x130] sm:$0xff]
      %v631 = vld [vmem:[%s8 + $0x138] sm:$0xff]
      %v632 = vld [vmem:[%s8 + $0x140] sm:$0xff]
      %v633 = vld [vmem:[%s8 + $0x148] sm:$0xff]
      %v634 = vld [vmem:[%s8 + $0x150] sm:$0xff]
      %v635 = vld [vmem:[%s8 + $0x158] sm:$0xff]
      %v636 = vld [vmem:[%s8 + $0x160] sm:$0xff]
      %v637 = vld [vmem:[%s8 + $0x168] sm:$0xff]
      %v638 = vld [vmem:[%s8 + $0x170] sm:$0xff]
      %v639 = vld [vmem:[%s8 + $0x178] sm:$0xff]
      %v640 = vld [vmem:[%s8 + $0x180] sm:$0xff]
      %v641 = vld [vmem:[%s8 + $0x188] sm:$0xff]
      %v642 = vld [vmem:[%s8 + $0x190] sm:$0xff]
      %v643 = vld [vmem:[%s8 + $0x198] sm:$0xff]
      %v644 = vld [vmem:[%s8 + $0x1a0] sm:$0xff]
      %v645 = vld [vmem:[%s8 + $0x1a8] sm:$0xff]
      %v646 = vld [vmem:[%s8 + $0x1b0] sm:$0xff]
      %v647 = vld [vmem:[%s8 + $0x1b8] sm:$0xff]
      %v648 = vld [vmem:[%s8 + $0x1c0] sm:$0xff]
      %v649 = vld [vmem:[%s8 + $0x1c8] sm:$0xff]
      %v650 = vld [vmem:[%s8 + $0x1d0] sm:$0xff]
      %v651 = vld [vmem:[%s8 + $0x1d8] sm:$0xff]
      %v652 = vld [vmem:[%s8 + $0x1e0] sm:$0xff]
      %v653 = vld [vmem:[%s8 + $0x1e8] sm:$0xff]
      %v654 = vld [vmem:[%s8 + $0x1f0] sm:$0xff]
      %v655 = vld [vmem:[%s8 + $0x1f8] sm:$0xff]
      %v656 = vld [vmem:[%s8 + $0x200] sm:$0xff]
      %v657 = vld [vmem:[%s8 + $0x208] sm:$0xff]
      %v658 = vld [vmem:[%s8 + $0x210] sm:$0xff]
      %v659 = vld [vmem:[%s8 + $0x218] sm:$0xff]
      %v660 = vld [vmem:[%s8 + $0x220] sm:$0xff]
      %v661 = vld [vmem:[%s8 + $0x228] sm:$0xff]
      %v662 = vld [vmem:[%s8 + $0x230] sm:$0xff]
      %v663 = vld [vmem:[%s8 + $0x238] sm:$0xff]
      %v664 = vld [vmem:[%s8 + $0x240] sm:$0xff]
      %v665 = vld [vmem:[%s8 + $0x248] sm:$0xff]
      %v666 = vld [vmem:[%s8 + $0x250] sm:$0xff]
      %v667 = vld [vmem:[%s8 + $0x258] sm:$0xff]
      %v668 = vld [vmem:[%s8 + $0x260] sm:$0xff]
      %v669 = vld [vmem:[%s8 + $0x268] sm:$0xff]
      %v670 = vld [vmem:[%s8 + $0x270] sm:$0xff]
      %v671 = vld [vmem:[%s8 + $0x278] sm:$0xff]
      %v672 = vld [vmem:[%s8 + $0x280] sm:$0xff]
      %v673 = vld [vmem:[%s8 + $0x288] sm:$0xff]
      %v674 = vld [vmem:[%s8 + $0x290] sm:$0xff]
      %v675 = vld [vmem:[%s8 + $0x298] sm:$0xff]
      %v676 = vld [vmem:[%s8 + $0x2a0] sm:$0xff]
      %v677 = vld [vmem:[%s8 + $0x2a8] sm:$0xff]
      %v678 = vld [vmem:[%s8 + $0x2b0] sm:$0xff]
      %v679 = vld [vmem:[%s8 + $0x2b8] sm:$0xff]
      %v680 = vld [vmem:[%s8 + $0x2c0] sm:$0xff]
      %v681 = vld [vmem:[%s8 + $0x2c8] sm:$0xff]
      %v682 = vld [vmem:[%s8 + $0x2d0] sm:$0xff]
      %v683 = vld [vmem:[%s8 + $0x2d8] sm:$0xff]
      %v684 = vld [vmem:[%s8 + $0x2e0] sm:$0xff]
      %v685 = vld [vmem:[%s8 + $0x2e8] sm:$0xff]
      %v686 = vld [vmem:[%s8 + $0x2f0] sm:$0xff]
      %v687 = vld [vmem:[%s8 + $0x2f8] sm:$0xff]
      %v688 = vld [vmem:[%s8 + $0x300] sm:$0xff]
      %v689 = vld [vmem:[%s8 + $0x308] sm:$0xff]
      %v690 = vld [vmem:[%s8 + $0x310] sm:$0xff]
      %v691 = vld [vmem:[%s8 + $0x318] sm:$0xff]
      %v692 = vld [vmem:[%s8 + $0x320] sm:$0xff]
      %v693 = vld [vmem:[%s8 + $0x328] sm:$0xff]
      %v694 = vld [vmem:[%s8 + $0x330] sm:$0xff]
      %v695 = vld [vmem:[%s8 + $0x338] sm:$0xff]
      %v696 = vld [vmem:[%s8 + $0x340] sm:$0xff]
      %v697 = vld [vmem:[%s8 + $0x348] sm:$0xff]
      %v698 = vld [vmem:[%s8 + $0x350] sm:$0xff]
      %v699 = vld [vmem:[%s8 + $0x358] sm:$0xff]
      %v700 = vld [vmem:[%s8 + $0x360] sm:$0xff]
      %v701 = vld [vmem:[%s8 + $0x368] sm:$0xff]
      %v702 = vld [vmem:[%s8 + $0x370] sm:$0xff]
      %v703 = vld [vmem:[%s8 + $0x378] sm:$0xff]
      %v704 = vld [vmem:[%s8 + $0x380] sm:$0xff]
      %v705 = vld [vmem:[%s8 + $0x388] sm:$0xff]
      %v706 = vld [vmem:[%s8 + $0x390] sm:$0xff]
      %v707 = vld [vmem:[%s8 + $0x398] sm:$0xff]
      %v708 = vld [vmem:[%s8 + $0x3a0] sm:$0xff]
      %v709 = vld [vmem:[%s8 + $0x3a8] sm:$0xff]
      %v710 = vld [vmem:[%s8 + $0x3b0] sm:$0xff]
      %v711 = vld [vmem:[%s8 + $0x3b8] sm:$0xff]
      %v712 = vld [vmem:[%s8 + $0x3c0] sm:$0xff]
      %v713 = vld [vmem:[%s8 + $0x3c8] sm:$0xff]
      %v714 = vld [vmem:[%s8 + $0x3d0] sm:$0xff]
      %v715 = vld [vmem:[%s8 + $0x3d8] sm:$0xff]
      %v716 = vld [vmem:[%s8 + $0x3e0] sm:$0xff]
      %v717 = vld [vmem:[%s8 + $0x3e8] sm:$0xff]
      %v718 = vld [vmem:[%s8 + $0x3f0] sm:$0xff]
      %v719 = vld [vmem:[%s8 + $0x3f8] sm:$0xff]
      %v720 = vld [vmem:[%s9] sm:$0xff]
      %v721 = vld [vmem:[%s9 + $0x8] sm:$0xff]
      %v722 = vld [vmem:[%s9 + $0x10] sm:$0xff]
      %v723 = vld [vmem:[%s9 + $0x18] sm:$0xff]
      %v724 = vld [vmem:[%s10] sm:$0x1]
      %v725 = vld [vmem:[%s417] sm:$0xff]
      %v726 = vld [vmem:[%s417 + $0x8] sm:$0xff]
      %v727 = vld [vmem:[%s417 + $0x10] sm:$0xff]
      %v728 = vld [vmem:[%s417 + $0x18] sm:$0xff]
      %v730 = vlaneseq
      %v731 = vshrl.u32 %v730, 7
      %v732 = vsub.s32 0, %v731
      %v733 = vrot.slane %v490, %v732
      %vm735 = vcmask 130048
      %v737 = vsel %vm735, %v725, 0
      %v740 = vsel %vm735, %v726, 0
      %v743 = vsel %vm735, %v727, 0
      %v746 = vsel %vm735, %v728, 0
      %748 = vmatprep.subr.mxu0 0.0
      %749 = vmatpush1.msra.mxu0 %v488
      %750 = vmatprep.subr.mxu0 0.0
      %751 = vmatpush1.msra.mxu0 %v489
      %752 = vmatprep.subr.mxu0 0.0
      %753 = vmatpush1.msra.mxu0 0.0
      %754 = vmatprep.subr.mxu0 0.0
      %755 = vmatpush1.msra.mxu0 0.0
      %756 = vmatprep.subr.mxu0 0.0
      %757 = vmatpush1.msra.mxu0 0.0
      %758 = vmatprep.subr.mxu0 0.0
      %759 = vmatpush1.msra.mxu0 0.0
      %760 = vmatprep.subr.mxu0 0.0
      %761 = vmatpush1.msra.mxu0 0.0
      %762 = vmatprep.subr.mxu0 0.0
      %763 = vmatpush1.msra.mxu0 0.0
      %764 = vmatprep.subr.mxu0 0.0
      %765 = vmatpush1.msra.mxu0 0.0
      %766 = vmatprep.subr.mxu0 0.0
      %767 = vmatpush1.msra.mxu0 0.0
      %768 = vmatprep.subr.mxu0 0.0
      %769 = vmatpush1.msra.mxu0 0.0
      %770 = vmatprep.subr.mxu0 0.0
      %771 = vmatpush1.msra.mxu0 0.0
      %772 = vmatprep.subr.mxu0 0.0
      %773 = vmatpush1.msra.mxu0 0.0
      %774 = vmatprep.subr.mxu0 0.0
      %775 = vmatpush1.msra.mxu0 0.0
      %776 = vmatprep.subr.mxu0 0.0
      %777 = vmatpush1.msra.mxu0 0.0
      %778 = vmatprep.subr.mxu0 0.0
      %779 = vmatpush1.msra.mxu0 0.0
      %780 = vmatprep.subr.mxu0 0.0
      %781 = vmatpush1.msra.mxu0 0.0
      %782 = vmatprep.subr.mxu0 0.0
      %783 = vmatpush1.msra.mxu0 0.0
      %784 = vmatprep.subr.mxu0 0.0
      %785 = vmatpush1.msra.mxu0 0.0
      %786 = vmatprep.subr.mxu0 0.0
      %787 = vmatpush1.msra.mxu0 0.0
      %788 = vmatprep.subr.mxu0 0.0
      %789 = vmatpush1.msra.mxu0 0.0
      %790 = vmatprep.subr.mxu0 0.0
      %791 = vmatpush1.msra.mxu0 0.0
      %792 = vmatprep.subr.mxu0 0.0
      %793 = vmatpush1.msra.mxu0 0.0
      %794 = vmatprep.subr.mxu0 0.0
      %795 = vmatpush1.msra.mxu0 0.0
      %796 = vmatprep.subr.mxu0 0.0
      %797 = vmatpush1.msra.mxu0 0.0
      %798 = vmatprep.subr.mxu0 0.0
      %799 = vmatpush1.msra.mxu0 0.0
      %800 = vmatprep.subr.mxu0 0.0
      %801 = vmatpush1.msra.mxu0 0.0
      %802 = vmatprep.subr.mxu0 0.0
      %803 = vmatpush1.msra.mxu0 0.0
      %804 = vmatprep.subr.mxu0 0.0
      %805 = vmatpush1.msra.mxu0 0.0
      %806 = vmatprep.subr.mxu0 0.0
      %807 = vmatpush1.msra.mxu0 0.0
      %808 = vmatprep.subr.mxu0 0.0
      %809 = vmatpush1.msra.mxu0 0.0
      %810 = vmatprep.subr.mxu0 0.0
      %811 = vmatpush1.msra.mxu0 0.0
      %812 = vmatprep.mubr.f32.mxu0 0.0
      %813 = vmatmul.mubr.f32.gmra.mrb[0].mxu0 %v737
      %v814 = vpop.f32.mrb[0].mxu0
      %v815 = vadd.f32 %v733, %v814
      %v816 = vpop.f32.mrb[0].mxu0
      %817 = vmatprep.mubr.f32.mxu0 0.0
      %818 = vmatmul.mubr.f32.gmra.mrb[0].mxu0 %v740
      %v819 = vpop.f32.mrb[0].mxu0
      %v820 = vadd.f32 %v733, %v819
      %v821 = vpop.f32.mrb[0].mxu0
      %822 = vmatprep.mubr.f32.mxu0 0.0
      %823 = vmatmul.mubr.f32.gmra.mrb[0].mxu0 %v743
      %v824 = vpop.f32.mrb[0].mxu0
      %v825 = vadd.f32 %v733, %v824
      %v826 = vpop.f32.mrb[0].mxu0
      %827 = vmatprep.mubr.f32.mxu0 0.0
      %828 = vmatmul.mubr.f32.gmra.mrb[0].mxu0 %v746
      %v829 = vpop.f32.mrb[0].mxu0
      %v830 = vadd.f32 %v733, %v829
      %v831 = vpop.f32.mrb[0].mxu0
      %832 = vdwg.mxu0
      %vm833 = vcmask 261120
      %v835 = vsel %vm833, %v815, 0
      %v838 = vsel %vm833, %v820, 0
      %v841 = vsel %vm833, %v825, 0
      %v844 = vsel %vm833, %v830, 0
      %846 = vmatprep.subr.mxu0 %v492
      %847 = vmatpush1.msra.mxu0 %v491
      %848 = vmatprep.subr.mxu0 %v508
      %849 = vmatpush1.msra.mxu0 %v507
      %850 = vmatprep.subr.mxu0 %v524
      %851 = vmatpush1.msra.mxu0 %v523
      %852 = vmatprep.subr.mxu0 %v540
      %853 = vmatpush1.msra.mxu0 %v539
      %854 = vmatprep.subr.mxu0 0.0
      %855 = vmatpush1.msra.mxu0 0.0
      %856 = vmatprep.subr.mxu0 0.0
      %857 = vmatpush1.msra.mxu0 0.0
      %858 = vmatprep.subr.mxu0 0.0
      %859 = vmatpush1.msra.mxu0 0.0
      %860 = vmatprep.subr.mxu0 0.0
      %861 = vmatpush1.msra.mxu0 0.0
      %862 = vmatprep.subr.mxu0 0.0
      %863 = vmatpush1.msra.mxu0 0.0
      %864 = vmatprep.subr.mxu0 0.0
      %865 = vmatpush1.msra.mxu0 0.0
      %866 = vmatprep.subr.mxu0 0.0
      %867 = vmatpush1.msra.mxu0 0.0
      %868 = vmatprep.subr.mxu0 0.0
      %869 = vmatpush1.msra.mxu0 0.0
      %870 = vmatprep.subr.mxu0 0.0
      %871 = vmatpush1.msra.mxu0 0.0
      %872 = vmatprep.subr.mxu0 0.0
      %873 = vmatpush1.msra.mxu0 0.0
      %874 = vmatprep.subr.mxu0 0.0
      %875 = vmatpush1.msra.mxu0 0.0
      %876 = vmatprep.subr.mxu0 0.0
      %877 = vmatpush1.msra.mxu0 0.0
      %878 = vmatprep.subr.mxu0 0.0
      %879 = vmatpush1.msra.mxu0 0.0
      %880 = vmatprep.subr.mxu0 0.0
      %881 = vmatpush1.msra.mxu0 0.0
      %882 = vmatprep.subr.mxu0 0.0
      %883 = vmatpush1.msra.mxu0 0.0
      %884 = vmatprep.subr.mxu0 0.0
      %885 = vmatpush1.msra.mxu0 0.0
      %886 = vmatprep.subr.mxu0 0.0
      %887 = vmatpush1.msra.mxu0 0.0
      %888 = vmatprep.subr.mxu0 0.0
      %889 = vmatpush1.msra.mxu0 0.0
      %890 = vmatprep.subr.mxu0 0.0
      %891 = vmatpush1.msra.mxu0 0.0
      %892 = vmatprep.subr.mxu0 0.0
      %893 = vmatpush1.msra.mxu0 0.0
      %894 = vmatprep.subr.mxu0 0.0
      %895 = vmatpush1.msra.mxu0 0.0
      %896 = vmatprep.subr.mxu0 0.0
      %897 = vmatpush1.msra.mxu0 0.0
      %898 = vmatprep.subr.mxu0 0.0
      %899 = vmatpush1.msra.mxu0 0.0
      %900 = vmatprep.subr.mxu0 0.0
      %901 = vmatpush1.msra.mxu0 0.0
      %902 = vmatprep.subr.mxu0 0.0
      %903 = vmatpush1.msra.mxu0 0.0
      %904 = vmatprep.subr.mxu0 0.0
      %905 = vmatpush1.msra.mxu0 0.0
      %906 = vmatprep.subr.mxu0 0.0
      %907 = vmatpush1.msra.mxu0 0.0
      %908 = vmatprep.subr.mxu0 0.0
      %909 = vmatpush1.msra.mxu0 0.0
      %910 = vmatprep.mubr.f32.mxu0 0.0
      %911 = vmatmul.mubr.f32.gmra.mrb[0].mxu0 %v835
      %v912 = vpop.f32.mrb[0].mxu0
      %v913 = vadd.f32 0.0, %v912
      %v914 = vpop.f32.mrb[0].mxu0
      %v915 = vadd.f32 0.0, %v914
      %916 = vmatprep.mubr.f32.mxu0 0.0
      %917 = vmatmul.mubr.f32.gmra.mrb[0].mxu0 %v838
      %v918 = vpop.f32.mrb[0].mxu0
      %v919 = vadd.f32 0.0, %v918
      %v920 = vpop.f32.mrb[0].mxu0
      %v921 = vadd.f32 0.0, %v920
      %922 = vmatprep.mubr.f32.mxu0 0.0
      %923 = vmatmul.mubr.f32.gmra.mrb[0].mxu0 %v841
      %v924 = vpop.f32.mrb[0].mxu0
      %v925 = vadd.f32 0.0, %v924
      %v926 = vpop.f32.mrb[0].mxu0
      %v927 = vadd.f32 0.0, %v926
      %928 = vmatprep.mubr.f32.mxu0 0.0
      %929 = vmatmul.mubr.f32.gmra.mrb[0].mxu0 %v844
      %v930 = vpop.f32.mrb[0].mxu0
      %v931 = vadd.f32 0.0, %v930
      %v932 = vpop.f32.mrb[0].mxu0
      %v933 = vadd.f32 0.0, %v932
      %934 = vdwg.mxu0
      %935 = vmatprep.subr.mxu0 %v494
      %936 = vmatpush1.msra.mxu0 %v493
      %937 = vmatprep.subr.mxu0 %v510
      %938 = vmatpush1.msra.mxu0 %v509
      %939 = vmatprep.subr.mxu0 %v526
      %940 = vmatpush1.msra.mxu0 %v525
      %941 = vmatprep.subr.mxu0 %v542
      %942 = vmatpush1.msra.mxu0 %v541
      %943 = vmatprep.subr.mxu0 0.0
      %944 = vmatpush1.msra.mxu0 0.0
      %945 = vmatprep.subr.mxu0 0.0
      %946 = vmatpush1.msra.mxu0 0.0
      %947 = vmatprep.subr.mxu0 0.0
      %948 = vmatpush1.msra.mxu0 0.0
      %949 = vmatprep.subr.mxu0 0.0
      %950 = vmatpush1.msra.mxu0 0.0
      %951 = vmatprep.subr.mxu0 0.0
      %952 = vmatpush1.msra.mxu0 0.0
      %953 = vmatprep.subr.mxu0 0.0
      %954 = vmatpush1.msra.mxu0 0.0
      %955 = vmatprep.subr.mxu0 0.0
      %956 = vmatpush1.msra.mxu0 0.0
      %957 = vmatprep.subr.mxu0 0.0
      %958 = vmatpush1.msra.mxu0 0.0
      %959 = vmatprep.subr.mxu0 0.0
      %960 = vmatpush1.msra.mxu0 0.0
      %961 = vmatprep.subr.mxu0 0.0
      %962 = vmatpush1.msra.mxu0 0.0
      %963 = vmatprep.subr.mxu0 0.0
      %964 = vmatpush1.msra.mxu0 0.0
      %965 = vmatprep.subr.mxu0 0.0
      %966 = vmatpush1.msra.mxu0 0.0
      %967 = vmatprep.subr.mxu0 0.0
      %968 = vmatpush1.msra.mxu0 0.0
      %969 = vmatprep.subr.mxu0 0.0
      %970 = vmatpush1.msra.mxu0 0.0
      %971 = vmatprep.subr.mxu0 0.0
      %972 = vmatpush1.msra.mxu0 0.0
      %973 = vmatprep.subr.mxu0 0.0
      %974 = vmatpush1.msra.mxu0 0.0
      %975 = vmatprep.subr.mxu0 0.0
      %976 = vmatpush1.msra.mxu0 0.0
      %977 = vmatprep.subr.mxu0 0.0
      %978 = vmatpush1.msra.mxu0 0.0
      %979 = vmatprep.subr.mxu0 0.0
      %980 = vmatpush1.msra.mxu0 0.0
      %981 = vmatprep.subr.mxu0 0.0
      %982 = vmatpush1.msra.mxu0 0.0
      %983 = vmatprep.subr.mxu0 0.0
      %984 = vmatpush1.msra.mxu0 0.0
      %985 = vmatprep.subr.mxu0 0.0
      %986 = vmatpush1.msra.mxu0 0.0
      %987 = vmatprep.subr.mxu0 0.0
      %988 = vmatpush1.msra.mxu0 0.0
      %989 = vmatprep.subr.mxu0 0.0
      %990 = vmatpush1.msra.mxu0 0.0
      %991 = vmatprep.subr.mxu0 0.0
      %992 = vmatpush1.msra.mxu0 0.0
      %993 = vmatprep.subr.mxu0 0.0
      %994 = vmatpush1.msra.mxu0 0.0
      %995 = vmatprep.subr.mxu0 0.0
      %996 = vmatpush1.msra.mxu0 0.0
      %997 = vmatprep.subr.mxu0 0.0
      %998 = vmatpush1.msra.mxu0 0.0
      %999 = vmatprep.mubr.f32.mxu0 0.0
      %1000 = vmatmul.mubr.f32.gmra.mrb[0].mxu0 %v835
      %v1001 = vpop.f32.mrb[0].mxu0
      %v1002 = vadd.f32 0.0, %v1001
      %v1003 = vpop.f32.mrb[0].mxu0
      %v1004 = vadd.f32 0.0, %v1003
      %1005 = vmatprep.mubr.f32.mxu0 0.0
      %1006 = vmatmul.mubr.f32.gmra.mrb[0].mxu0 %v838
      %v1007 = vpop.f32.mrb[0].mxu0
      %v1008 = vadd.f32 0.0, %v1007
      %v1009 = vpop.f32.mrb[0].mxu0
      %v1010 = vadd.f32 0.0, %v1009
      %1011 = vmatprep.mubr.f32.mxu0 0.0
      %1012 = vmatmul.mubr.f32.gmra.mrb[0].mxu0 %v841
      %v1013 = vpop.f32.mrb[0].mxu0
      %v1014 = vadd.f32 0.0, %v1013
      %v1015 = vpop.f32.mrb[0].mxu0
      %v1016 = vadd.f32 0.0, %v1015
      %1017 = vmatprep.mubr.f32.mxu0 0.0
      %1018 = vmatmul.mubr.f32.gmra.mrb[0].mxu0 %v844
      %v1019 = vpop.f32.mrb[0].mxu0
      %v1020 = vadd.f32 0.0, %v1019
      %v1021 = vpop.f32.mrb[0].mxu0
      %v1022 = vadd.f32 0.0, %v1021
      %1023 = vdwg.mxu0
      %1024 = vmatprep.subr.mxu0 %v496
      %1025 = vmatpush1.msra.mxu0 %v495
      %1026 = vmatprep.subr.mxu0 %v512
      %1027 = vmatpush1.msra.mxu0 %v511
      %1028 = vmatprep.subr.mxu0 %v528
      %1029 = vmatpush1.msra.mxu0 %v527
      %1030 = vmatprep.subr.mxu0 %v544
      %1031 = vmatpush1.msra.mxu0 %v543
      %1032 = vmatprep.subr.mxu0 0.0
      %1033 = vmatpush1.msra.mxu0 0.0
      %1034 = vmatprep.subr.mxu0 0.0
      %1035 = vmatpush1.msra.mxu0 0.0
      %1036 = vmatprep.subr.mxu0 0.0
      %1037 = vmatpush1.msra.mxu0 0.0
      %1038 = vmatprep.subr.mxu0 0.0
      %1039 = vmatpush1.msra.mxu0 0.0
      %1040 = vmatprep.subr.mxu0 0.0
      %1041 = vmatpush1.msra.mxu0 0.0
      %1042 = vmatprep.subr.mxu0 0.0
      %1043 = vmatpush1.msra.mxu0 0.0
      %1044 = vmatprep.subr.mxu0 0.0
      %1045 = vmatpush1.msra.mxu0 0.0
      %1046 = vmatprep.subr.mxu0 0.0
      %1047 = vmatpush1.msra.mxu0 0.0
      %1048 = vmatprep.subr.mxu0 0.0
      %1049 = vmatpush1.msra.mxu0 0.0
      %1050 = vmatprep.subr.mxu0 0.0
      %1051 = vmatpush1.msra.mxu0 0.0
      %1052 = vmatprep.subr.mxu0 0.0
      %1053 = vmatpush1.msra.mxu0 0.0
      %1054 = vmatprep.subr.mxu0 0.0
      %1055 = vmatpush1.msra.mxu0 0.0
      %1056 = vmatprep.subr.mxu0 0.0
      %1057 = vmatpush1.msra.mxu0 0.0
      %1058 = vmatprep.subr.mxu0 0.0
      %1059 = vmatpush1.msra.mxu0 0.0
      %1060 = vmatprep.subr.mxu0 0.0
      %1061 = vmatpush1.msra.mxu0 0.0
      %1062 = vmatprep.subr.mxu0 0.0
      %1063 = vmatpush1.msra.mxu0 0.0
      %1064 = vmatprep.subr.mxu0 0.0
      %1065 = vmatpush1.msra.mxu0 0.0
      %1066 = vmatprep.subr.mxu0 0.0
      %1067 = vmatpush1.msra.mxu0 0.0
      %1068 = vmatprep.subr.mxu0 0.0
      %1069 = vmatpush1.msra.mxu0 0.0
      %1070 = vmatprep.subr.mxu0 0.0
      %1071 = vmatpush1.msra.mxu0 0.0
      %1072 = vmatprep.subr.mxu0 0.0
      %1073 = vmatpush1.msra.mxu0 0.0
      %1074 = vmatprep.subr.mxu0 0.0
      %1075 = vmatpush1.msra.mxu0 0.0
      %1076 = vmatprep.subr.mxu0 0.0
      %1077 = vmatpush1.msra.mxu0 0.0
      %1078 = vmatprep.subr.mxu0 0.0
      %1079 = vmatpush1.msra.mxu0 0.0
      %1080 = vmatprep.subr.mxu0 0.0
      %1081 = vmatpush1.msra.mxu0 0.0
      %1082 = vmatprep.subr.mxu0 0.0
      %1083 = vmatpush1.msra.mxu0 0.0
      %1084 = vmatprep.subr.mxu0 0.0
      %1085 = vmatpush1.msra.mxu0 0.0
      %1086 = vmatprep.subr.mxu0 0.0
      %1087 = vmatpush1.msra.mxu0 0.0
      %1088 = vmatprep.mubr.f32.mxu0 0.0
      %1089 = vmatmul.mubr.f32.gmra.mrb[0].mxu0 %v835
      %v1090 = vpop.f32.mrb[0].mxu0
      %v1091 = vadd.f32 0.0, %v1090
      %v1092 = vpop.f32.mrb[0].mxu0
      %v1093 = vadd.f32 0.0, %v1092
      %1094 = vmatprep.mubr.f32.mxu0 0.0
      %1095 = vmatmul.mubr.f32.gmra.mrb[0].mxu0 %v838
      %v1096 = vpop.f32.mrb[0].mxu0
      %v1097 = vadd.f32 0.0, %v1096
      %v1098 = vpop.f32.mrb[0].mxu0
      %v1099 = vadd.f32 0.0, %v1098
      %1100 = vmatprep.mubr.f32.mxu0 0.0
      %1101 = vmatmul.mubr.f32.gmra.mrb[0].mxu0 %v841
      %v1102 = vpop.f32.mrb[0].mxu0
      %v1103 = vadd.f32 0.0, %v1102
      %v1104 = vpop.f32.mrb[0].mxu0
      %v1105 = vadd.f32 0.0, %v1104
      %1106 = vmatprep.mubr.f32.mxu0 0.0
      %1107 = vmatmul.mubr.f32.gmra.mrb[0].mxu0 %v844
      %v1108 = vpop.f32.mrb[0].mxu0
      %v1109 = vadd.f32 0.0, %v1108
      %v1110 = vpop.f32.mrb[0].mxu0
      %v1111 = vadd.f32 0.0, %v1110
      %1112 = vdwg.mxu0
      %1113 = vmatprep.subr.mxu0 %v498
      %1114 = vmatpush1.msra.mxu0 %v497
      %1115 = vmatprep.subr.mxu0 %v514
      %1116 = vmatpush1.msra.mxu0 %v513
      %1117 = vmatprep.subr.mxu0 %v530
      %1118 = vmatpush1.msra.mxu0 %v529
      %1119 = vmatprep.subr.mxu0 %v546
      %1120 = vmatpush1.msra.mxu0 %v545
      %1121 = vmatprep.subr.mxu0 0.0
      %1122 = vmatpush1.msra.mxu0 0.0
      %1123 = vmatprep.subr.mxu0 0.0
      %1124 = vmatpush1.msra.mxu0 0.0
      %1125 = vmatprep.subr.mxu0 0.0
      %1126 = vmatpush1.msra.mxu0 0.0
      %1127 = vmatprep.subr.mxu0 0.0
      %1128 = vmatpush1.msra.mxu0 0.0
      %1129 = vmatprep.subr.mxu0 0.0
      %1130 = vmatpush1.msra.mxu0 0.0
      %1131 = vmatprep.subr.mxu0 0.0
      %1132 = vmatpush1.msra.mxu0 0.0
      %1133 = vmatprep.subr.mxu0 0.0
      %1134 = vmatpush1.msra.mxu0 0.0
      %1135 = vmatprep.subr.mxu0 0.0
      %1136 = vmatpush1.msra.mxu0 0.0
      %1137 = vmatprep.subr.mxu0 0.0
      %1138 = vmatpush1.msra.mxu0 0.0
      %1139 = vmatprep.subr.mxu0 0.0
      %1140 = vmatpush1.msra.mxu0 0.0
      %1141 = vmatprep.subr.mxu0 0.0
      %1142 = vmatpush1.msra.mxu0 0.0
      %1143 = vmatprep.subr.mxu0 0.0
      %1144 = vmatpush1.msra.mxu0 0.0
      %1145 = vmatprep.subr.mxu0 0.0
      %1146 = vmatpush1.msra.mxu0 0.0
      %1147 = vmatprep.subr.mxu0 0.0
      %1148 = vmatpush1.msra.mxu0 0.0
      %1149 = vmatprep.subr.mxu0 0.0
      %1150 = vmatpush1.msra.mxu0 0.0
      %1151 = vmatprep.subr.mxu0 0.0
      %1152 = vmatpush1.msra.mxu0 0.0
      %1153 = vmatprep.subr.mxu0 0.0
      %1154 = vmatpush1.msra.mxu0 0.0
      %1155 = vmatprep.subr.mxu0 0.0
      %1156 = vmatpush1.msra.mxu0 0.0
      %1157 = vmatprep.subr.mxu0 0.0
      %1158 = vmatpush1.msra.mxu0 0.0
      %1159 = vmatprep.subr.mxu0 0.0
      %1160 = vmatpush1.msra.mxu0 0.0
      %1161 = vmatprep.subr.mxu0 0.0
      %1162 = vmatpush1.msra.mxu0 0.0
      %1163 = vmatprep.subr.mxu0 0.0
      %1164 = vmatpush1.msra.mxu0 0.0
      %1165 = vmatprep.subr.mxu0 0.0
      %1166 = vmatpush1.msra.mxu0 0.0
      %1167 = vmatprep.subr.mxu0 0.0
      %1168 = vmatpush1.msra.mxu0 0.0
      %1169 = vmatprep.subr.mxu0 0.0
      %1170 = vmatpush1.msra.mxu0 0.0
      %1171 = vmatprep.subr.mxu0 0.0
      %1172 = vmatpush1.msra.mxu0 0.0
      %1173 = vmatprep.subr.mxu0 0.0
      %1174 = vmatpush1.msra.mxu0 0.0
      %1175 = vmatprep.subr.mxu0 0.0
      %1176 = vmatpush1.msra.mxu0 0.0
      %1177 = vmatprep.mubr.f32.mxu0 0.0
      %1178 = vmatmul.mubr.f32.gmra.mrb[0].mxu0 %v835
      %v1179 = vpop.f32.mrb[0].mxu0
      %v1180 = vadd.f32 0.0, %v1179
      %v1181 = vpop.f32.mrb[0].mxu0
      %v1182 = vadd.f32 0.0, %v1181
      %1183 = vmatprep.mubr.f32.mxu0 0.0
      %1184 = vmatmul.mubr.f32.gmra.mrb[0].mxu0 %v838
      %v1185 = vpop.f32.mrb[0].mxu0
      %v1186 = vadd.f32 0.0, %v1185
      %v1187 = vpop.f32.mrb[0].mxu0
      %v1188 = vadd.f32 0.0, %v1187
      %1189 = vmatprep.mubr.f32.mxu0 0.0
      %1190 = vmatmul.mubr.f32.gmra.mrb[0].mxu0 %v841
      %v1191 = vpop.f32.mrb[0].mxu0
      %v1192 = vadd.f32 0.0, %v1191
      %v1193 = vpop.f32.mrb[0].mxu0
      %v1194 = vadd.f32 0.0, %v1193
      %1195 = vmatprep.mubr.f32.mxu0 0.0
      %1196 = vmatmul.mubr.f32.gmra.mrb[0].mxu0 %v844
      %v1197 = vpop.f32.mrb[0].mxu0
      %v1198 = vadd.f32 0.0, %v1197
      %v1199 = vpop.f32.mrb[0].mxu0
      %v1200 = vadd.f32 0.0, %v1199
      %1201 = vdwg.mxu0
      %1202 = vmatprep.subr.mxu0 %v500
      %1203 = vmatpush1.msra.mxu0 %v499
      %1204 = vmatprep.subr.mxu0 %v516
      %1205 = vmatpush1.msra.mxu0 %v515
      %1206 = vmatprep.subr.mxu0 %v532
      %1207 = vmatpush1.msra.mxu0 %v531
      %1208 = vmatprep.subr.mxu0 %v548
      %1209 = vmatpush1.msra.mxu0 %v547
      %1210 = vmatprep.subr.mxu0 0.0
      %1211 = vmatpush1.msra.mxu0 0.0
      %1212 = vmatprep.subr.mxu0 0.0
      %1213 = vmatpush1.msra.mxu0 0.0
      %1214 = vmatprep.subr.mxu0 0.0
      %1215 = vmatpush1.msra.mxu0 0.0
      %1216 = vmatprep.subr.mxu0 0.0
      %1217 = vmatpush1.msra.mxu0 0.0
      %1218 = vmatprep.subr.mxu0 0.0
      %1219 = vmatpush1.msra.mxu0 0.0
      %1220 = vmatprep.subr.mxu0 0.0
      %1221 = vmatpush1.msra.mxu0 0.0
      %1222 = vmatprep.subr.mxu0 0.0
      %1223 = vmatpush1.msra.mxu0 0.0
      %1224 = vmatprep.subr.mxu0 0.0
      %1225 = vmatpush1.msra.mxu0 0.0
      %1226 = vmatprep.subr.mxu0 0.0
      %1227 = vmatpush1.msra.mxu0 0.0
      %1228 = vmatprep.subr.mxu0 0.0
      %1229 = vmatpush1.msra.mxu0 0.0
      %1230 = vmatprep.subr.mxu0 0.0
      %1231 = vmatpush1.msra.mxu0 0.0
      %1232 = vmatprep.subr.mxu0 0.0
      %1233 = vmatpush1.msra.mxu0 0.0
      %1234 = vmatprep.subr.mxu0 0.0
      %1235 = vmatpush1.msra.mxu0 0.0
      %1236 = vmatprep.subr.mxu0 0.0
      %1237 = vmatpush1.msra.mxu0 0.0
      %1238 = vmatprep.subr.mxu0 0.0
      %1239 = vmatpush1.msra.mxu0 0.0
      %1240 = vmatprep.subr.mxu0 0.0
      %1241 = vmatpush1.msra.mxu0 0.0
      %1242 = vmatprep.subr.mxu0 0.0
      %1243 = vmatpush1.msra.mxu0 0.0
      %1244 = vmatprep.subr.mxu0 0.0
      %1245 = vmatpush1.msra.mxu0 0.0
      %1246 = vmatprep.subr.mxu0 0.0
      %1247 = vmatpush1.msra.mxu0 0.0
      %1248 = vmatprep.subr.mxu0 0.0
      %1249 = vmatpush1.msra.mxu0 0.0
      %1250 = vmatprep.subr.mxu0 0.0
      %1251 = vmatpush1.msra.mxu0 0.0
      %1252 = vmatprep.subr.mxu0 0.0
      %1253 = vmatpush1.msra.mxu0 0.0
      %1254 = vmatprep.subr.mxu0 0.0
      %1255 = vmatpush1.msra.mxu0 0.0
      %1256 = vmatprep.subr.mxu0 0.0
      %1257 = vmatpush1.msra.mxu0 0.0
      %1258 = vmatprep.subr.mxu0 0.0
      %1259 = vmatpush1.msra.mxu0 0.0
      %1260 = vmatprep.subr.mxu0 0.0
      %1261 = vmatpush1.msra.mxu0 0.0
      %1262 = vmatprep.subr.mxu0 0.0
      %1263 = vmatpush1.msra.mxu0 0.0
      %1264 = vmatprep.subr.mxu0 0.0
      %1265 = vmatpush1.msra.mxu0 0.0
      %1266 = vmatprep.mubr.f32.mxu0 0.0
      %1267 = vmatmul.mubr.f32.gmra.mrb[0].mxu0 %v835
      %v1268 = vpop.f32.mrb[0].mxu0
      %v1269 = vadd.f32 0.0, %v1268
      %v1270 = vpop.f32.mrb[0].mxu0
      %v1271 = vadd.f32 0.0, %v1270
      %1272 = vmatprep.mubr.f32.mxu0 0.0
      %1273 = vmatmul.mubr.f32.gmra.mrb[0].mxu0 %v838
      %v1274 = vpop.f32.mrb[0].mxu0
      %v1275 = vadd.f32 0.0, %v1274
      %v1276 = vpop.f32.mrb[0].mxu0
      %v1277 = vadd.f32 0.0, %v1276
      %1278 = vmatprep.mubr.f32.mxu0 0.0
      %1279 = vmatmul.mubr.f32.gmra.mrb[0].mxu0 %v841
      %v1280 = vpop.f32.mrb[0].mxu0
      %v1281 = vadd.f32 0.0, %v1280
      %v1282 = vpop.f32.mrb[0].mxu0
      %v1283 = vadd.f32 0.0, %v1282
      %1284 = vmatprep.mubr.f32.mxu0 0.0
      %1285 = vmatmul.mubr.f32.gmra.mrb[0].mxu0 %v844
      %v1286 = vpop.f32.mrb[0].mxu0
      %v1287 = vadd.f32 0.0, %v1286
      %v1288 = vpop.f32.mrb[0].mxu0
      %v1289 = vadd.f32 0.0, %v1288
      %1290 = vdwg.mxu0
      %1291 = vmatprep.subr.mxu0 %v502
      %1292 = vmatpush1.msra.mxu0 %v501
      %1293 = vmatprep.subr.mxu0 %v518
      %1294 = vmatpush1.msra.mxu0 %v517
      %1295 = vmatprep.subr.mxu0 %v534
      %1296 = vmatpush1.msra.mxu0 %v533
      %1297 = vmatprep.subr.mxu0 %v550
      %1298 = vmatpush1.msra.mxu0 %v549
      %1299 = vmatprep.subr.mxu0 0.0
      %1300 = vmatpush1.msra.mxu0 0.0
      %1301 = vmatprep.subr.mxu0 0.0
      %1302 = vmatpush1.msra.mxu0 0.0
      %1303 = vmatprep.subr.mxu0 0.0
      %1304 = vmatpush1.msra.mxu0 0.0
      %1305 = vmatprep.subr.mxu0 0.0
      %1306 = vmatpush1.msra.mxu0 0.0
      %1307 = vmatprep.subr.mxu0 0.0
      %1308 = vmatpush1.msra.mxu0 0.0
      %1309 = vmatprep.subr.mxu0 0.0
      %1310 = vmatpush1.msra.mxu0 0.0
      %1311 = vmatprep.subr.mxu0 0.0
      %1312 = vmatpush1.msra.mxu0 0.0
      %1313 = vmatprep.subr.mxu0 0.0
      %1314 = vmatpush1.msra.mxu0 0.0
      %1315 = vmatprep.subr.mxu0 0.0
      %1316 = vmatpush1.msra.mxu0 0.0
      %1317 = vmatprep.subr.mxu0 0.0
      %1318 = vmatpush1.msra.mxu0 0.0
      %1319 = vmatprep.subr.mxu0 0.0
      %1320 = vmatpush1.msra.mxu0 0.0
      %1321 = vmatprep.subr.mxu0 0.0
      %1322 = vmatpush1.msra.mxu0 0.0
      %1323 = vmatprep.subr.mxu0 0.0
      %1324 = vmatpush1.msra.mxu0 0.0
      %1325 = vmatprep.subr.mxu0 0.0
      %1326 = vmatpush1.msra.mxu0 0.0
      %1327 = vmatprep.subr.mxu0 0.0
      %1328 = vmatpush1.msra.mxu0 0.0
      %1329 = vmatprep.subr.mxu0 0.0
      %1330 = vmatpush1.msra.mxu0 0.0
      %1331 = vmatprep.subr.mxu0 0.0
      %1332 = vmatpush1.msra.mxu0 0.0
      %1333 = vmatprep.subr.mxu0 0.0
      %1334 = vmatpush1.msra.mxu0 0.0
      %1335 = vmatprep.subr.mxu0 0.0
      %1336 = vmatpush1.msra.mxu0 0.0
      %1337 = vmatprep.subr.mxu0 0.0
      %1338 = vmatpush1.msra.mxu0 0.0
      %1339 = vmatprep.subr.mxu0 0.0
      %1340 = vmatpush1.msra.mxu0 0.0
      %1341 = vmatprep.subr.mxu0 0.0
      %1342 = vmatpush1.msra.mxu0 0.0
      %1343 = vmatprep.subr.mxu0 0.0
      %1344 = vmatpush1.msra.mxu0 0.0
      %1345 = vmatprep.subr.mxu0 0.0
      %1346 = vmatpush1.msra.mxu0 0.0
      %1347 = vmatprep.subr.mxu0 0.0
      %1348 = vmatpush1.msra.mxu0 0.0
      %1349 = vmatprep.subr.mxu0 0.0
      %1350 = vmatpush1.msra.mxu0 0.0
      %1351 = vmatprep.subr.mxu0 0.0
      %1352 = vmatpush1.msra.mxu0 0.0
      %1353 = vmatprep.subr.mxu0 0.0
      %1354 = vmatpush1.msra.mxu0 0.0
      %1355 = vmatprep.mubr.f32.mxu0 0.0
      %1356 = vmatmul.mubr.f32.gmra.mrb[0].mxu0 %v835
      %v1357 = vpop.f32.mrb[0].mxu0
      %v1358 = vadd.f32 0.0, %v1357
      %v1359 = vpop.f32.mrb[0].mxu0
      %v1360 = vadd.f32 0.0, %v1359
      %1361 = vmatprep.mubr.f32.mxu0 0.0
      %1362 = vmatmul.mubr.f32.gmra.mrb[0].mxu0 %v838
      %v1363 = vpop.f32.mrb[0].mxu0
      %v1364 = vadd.f32 0.0, %v1363
      %v1365 = vpop.f32.mrb[0].mxu0
      %v1366 = vadd.f32 0.0, %v1365
      %1367 = vmatprep.mubr.f32.mxu0 0.0
      %1368 = vmatmul.mubr.f32.gmra.mrb[0].mxu0 %v841
      %v1369 = vpop.f32.mrb[0].mxu0
      %v1370 = vadd.f32 0.0, %v1369
      %v1371 = vpop.f32.mrb[0].mxu0
      %v1372 = vadd.f32 0.0, %v1371
      %1373 = vmatprep.mubr.f32.mxu0 0.0
      %1374 = vmatmul.mubr.f32.gmra.mrb[0].mxu0 %v844
      %v1375 = vpop.f32.mrb[0].mxu0
      %v1376 = vadd.f32 0.0, %v1375
      %v1377 = vpop.f32.mrb[0].mxu0
      %v1378 = vadd.f32 0.0, %v1377
      %1379 = vdwg.mxu0
      %1380 = vmatprep.subr.mxu0 %v504
      %1381 = vmatpush1.msra.mxu0 %v503
      %1382 = vmatprep.subr.mxu0 %v520
      %1383 = vmatpush1.msra.mxu0 %v519
      %1384 = vmatprep.subr.mxu0 %v536
      %1385 = vmatpush1.msra.mxu0 %v535
      %1386 = vmatprep.subr.mxu0 %v552
      %1387 = vmatpush1.msra.mxu0 %v551
      %1388 = vmatprep.subr.mxu0 0.0
      %1389 = vmatpush1.msra.mxu0 0.0
      %1390 = vmatprep.subr.mxu0 0.0
      %1391 = vmatpush1.msra.mxu0 0.0
      %1392 = vmatprep.subr.mxu0 0.0
      %1393 = vmatpush1.msra.mxu0 0.0
      %1394 = vmatprep.subr.mxu0 0.0
      %1395 = vmatpush1.msra.mxu0 0.0
      %1396 = vmatprep.subr.mxu0 0.0
      %1397 = vmatpush1.msra.mxu0 0.0
      %1398 = vmatprep.subr.mxu0 0.0
      %1399 = vmatpush1.msra.mxu0 0.0
      %1400 = vmatprep.subr.mxu0 0.0
      %1401 = vmatpush1.msra.mxu0 0.0
      %1402 = vmatprep.subr.mxu0 0.0
      %1403 = vmatpush1.msra.mxu0 0.0
      %1404 = vmatprep.subr.mxu0 0.0
      %1405 = vmatpush1.msra.mxu0 0.0
      %1406 = vmatprep.subr.mxu0 0.0
      %1407 = vmatpush1.msra.mxu0 0.0
      %1408 = vmatprep.subr.mxu0 0.0
      %1409 = vmatpush1.msra.mxu0 0.0
      %1410 = vmatprep.subr.mxu0 0.0
      %1411 = vmatpush1.msra.mxu0 0.0
      %1412 = vmatprep.subr.mxu0 0.0
      %1413 = vmatpush1.msra.mxu0 0.0
      %1414 = vmatprep.subr.mxu0 0.0
      %1415 = vmatpush1.msra.mxu0 0.0
      %1416 = vmatprep.subr.mxu0 0.0
      %1417 = vmatpush1.msra.mxu0 0.0
      %1418 = vmatprep.subr.mxu0 0.0
      %1419 = vmatpush1.msra.mxu0 0.0
      %1420 = vmatprep.subr.mxu0 0.0
      %1421 = vmatpush1.msra.mxu0 0.0
      %1422 = vmatprep.subr.mxu0 0.0
      %1423 = vmatpush1.msra.mxu0 0.0
      %1424 = vmatprep.subr.mxu0 0.0
      %1425 = vmatpush1.msra.mxu0 0.0
      %1426 = vmatprep.subr.mxu0 0.0
      %1427 = vmatpush1.msra.mxu0 0.0
      %1428 = vmatprep.subr.mxu0 0.0
      %1429 = vmatpush1.msra.mxu0 0.0
      %1430 = vmatprep.subr.mxu0 0.0
      %1431 = vmatpush1.msra.mxu0 0.0
      %1432 = vmatprep.subr.mxu0 0.0
      %1433 = vmatpush1.msra.mxu0 0.0
      %1434 = vmatprep.subr.mxu0 0.0
      %1435 = vmatpush1.msra.mxu0 0.0
      %1436 = vmatprep.subr.mxu0 0.0
      %1437 = vmatpush1.msra.mxu0 0.0
      %1438 = vmatprep.subr.mxu0 0.0
      %1439 = vmatpush1.msra.mxu0 0.0
      %1440 = vmatprep.subr.mxu0 0.0
      %1441 = vmatpush1.msra.mxu0 0.0
      %1442 = vmatprep.subr.mxu0 0.0
      %1443 = vmatpush1.msra.mxu0 0.0
      %1444 = vmatprep.mubr.f32.mxu0 0.0
      %1445 = vmatmul.mubr.f32.gmra.mrb[0].mxu0 %v835
      %v1446 = vpop.f32.mrb[0].mxu0
      %v1447 = vadd.f32 0.0, %v1446
      %v1448 = vpop.f32.mrb[0].mxu0
      %v1449 = vadd.f32 0.0, %v1448
      %1450 = vmatprep.mubr.f32.mxu0 0.0
      %1451 = vmatmul.mubr.f32.gmra.mrb[0].mxu0 %v838
      %v1452 = vpop.f32.mrb[0].mxu0
      %v1453 = vadd.f32 0.0, %v1452
      %v1454 = vpop.f32.mrb[0].mxu0
      %v1455 = vadd.f32 0.0, %v1454
      %1456 = vmatprep.mubr.f32.mxu0 0.0
      %1457 = vmatmul.mubr.f32.gmra.mrb[0].mxu0 %v841
      %v1458 = vpop.f32.mrb[0].mxu0
      %v1459 = vadd.f32 0.0, %v1458
      %v1460 = vpop.f32.mrb[0].mxu0
      %v1461 = vadd.f32 0.0, %v1460
      %1462 = vmatprep.mubr.f32.mxu0 0.0
      %1463 = vmatmul.mubr.f32.gmra.mrb[0].mxu0 %v844
      %v1464 = vpop.f32.mrb[0].mxu0
      %v1465 = vadd.f32 0.0, %v1464
      %v1466 = vpop.f32.mrb[0].mxu0
      %v1467 = vadd.f32 0.0, %v1466
      %1468 = vdwg.mxu0
      %1469 = vmatprep.subr.mxu0 %v506
      %1470 = vmatpush1.msra.mxu0 %v505
      %1471 = vmatprep.subr.mxu0 %v522
      %1472 = vmatpush1.msra.mxu0 %v521
      %1473 = vmatprep.subr.mxu0 %v538
      %1474 = vmatpush1.msra.mxu0 %v537
      %1475 = vmatprep.subr.mxu0 %v554
      %1476 = vmatpush1.msra.mxu0 %v553
      %1477 = vmatprep.subr.mxu0 0.0
      %1478 = vmatpush1.msra.mxu0 0.0
      %1479 = vmatprep.subr.mxu0 0.0
      %1480 = vmatpush1.msra.mxu0 0.0
      %1481 = vmatprep.subr.mxu0 0.0
      %1482 = vmatpush1.msra.mxu0 0.0
      %1483 = vmatprep.subr.mxu0 0.0
      %1484 = vmatpush1.msra.mxu0 0.0
      %1485 = vmatprep.subr.mxu0 0.0
      %1486 = vmatpush1.msra.mxu0 0.0
      %1487 = vmatprep.subr.mxu0 0.0
      %1488 = vmatpush1.msra.mxu0 0.0
      %1489 = vmatprep.subr.mxu0 0.0
      %1490 = vmatpush1.msra.mxu0 0.0
      %1491 = vmatprep.subr.mxu0 0.0
      %1492 = vmatpush1.msra.mxu0 0.0
      %1493 = vmatprep.subr.mxu0 0.0
      %1494 = vmatpush1.msra.mxu0 0.0
      %1495 = vmatprep.subr.mxu0 0.0
      %1496 = vmatpush1.msra.mxu0 0.0
      %1497 = vmatprep.subr.mxu0 0.0
      %1498 = vmatpush1.msra.mxu0 0.0
      %1499 = vmatprep.subr.mxu0 0.0
      %1500 = vmatpush1.msra.mxu0 0.0
      %1501 = vmatprep.subr.mxu0 0.0
      %1502 = vmatpush1.msra.mxu0 0.0
      %1503 = vmatprep.subr.mxu0 0.0
      %1504 = vmatpush1.msra.mxu0 0.0
      %1505 = vmatprep.subr.mxu0 0.0
      %1506 = vmatpush1.msra.mxu0 0.0
      %1507 = vmatprep.subr.mxu0 0.0
      %1508 = vmatpush1.msra.mxu0 0.0
      %1509 = vmatprep.subr.mxu0 0.0
      %1510 = vmatpush1.msra.mxu0 0.0
      %1511 = vmatprep.subr.mxu0 0.0
      %1512 = vmatpush1.msra.mxu0 0.0
      %1513 = vmatprep.subr.mxu0 0.0
      %1514 = vmatpush1.msra.mxu0 0.0
      %1515 = vmatprep.subr.mxu0 0.0
      %1516 = vmatpush1.msra.mxu0 0.0
      %1517 = vmatprep.subr.mxu0 0.0
      %1518 = vmatpush1.msra.mxu0 0.0
      %1519 = vmatprep.subr.mxu0 0.0
      %1520 = vmatpush1.msra.mxu0 0.0
      %1521 = vmatprep.subr.mxu0 0.0
      %1522 = vmatpush1.msra.mxu0 0.0
      %1523 = vmatprep.subr.mxu0 0.0
      %1524 = vmatpush1.msra.mxu0 0.0
      %1525 = vmatprep.subr.mxu0 0.0
      %1526 = vmatpush1.msra.mxu0 0.0
      %1527 = vmatprep.subr.mxu0 0.0
      %1528 = vmatpush1.msra.mxu0 0.0
      %1529 = vmatprep.subr.mxu0 0.0
      %1530 = vmatpush1.msra.mxu0 0.0
      %1531 = vmatprep.subr.mxu0 0.0
      %1532 = vmatpush1.msra.mxu0 0.0
      %1533 = vmatprep.mubr.f32.mxu0 0.0
      %1534 = vmatmul.mubr.f32.gmra.mrb[0].mxu0 %v835
      %v1535 = vpop.f32.mrb[0].mxu0
      %v1536 = vadd.f32 0.0, %v1535
      %v1537 = vpop.f32.mrb[0].mxu0
      %v1538 = vadd.f32 0.0, %v1537
      %1539 = vmatprep.mubr.f32.mxu0 0.0
      %1540 = vmatmul.mubr.f32.gmra.mrb[0].mxu0 %v838
      %v1541 = vpop.f32.mrb[0].mxu0
      %v1542 = vadd.f32 0.0, %v1541
      %v1543 = vpop.f32.mrb[0].mxu0
      %v1544 = vadd.f32 0.0, %v1543
      %1545 = vmatprep.mubr.f32.mxu0 0.0
      %1546 = vmatmul.mubr.f32.gmra.mrb[0].mxu0 %v841
      %v1547 = vpop.f32.mrb[0].mxu0
      %v1548 = vadd.f32 0.0, %v1547
      %v1549 = vpop.f32.mrb[0].mxu0
      %v1550 = vadd.f32 0.0, %v1549
      %1551 = vmatprep.mubr.f32.mxu0 0.0
      %1552 = vmatmul.mubr.f32.gmra.mrb[0].mxu0 %v844
      %v1553 = vpop.f32.mrb[0].mxu0
      %v1554 = vadd.f32 0.0, %v1553
      %v1555 = vpop.f32.mrb[0].mxu0
      %v1556 = vadd.f32 0.0, %v1555
      %1557 = vdwg.mxu0
      %v1558 = vld [vmem:[#allocation2] sm:$0xff]
      %v1559 = vld [vmem:[#allocation3] sm:$0xff]
      %v1560 = vld [vmem:[#allocation3 + $0x8] sm:$0xff]
      %v1561 = vld [vmem:[#allocation3 + $0x10] sm:$0xff]
      %v1562 = vld [vmem:[#allocation3 + $0x18] sm:$0xff]
      %v1563 = vld [vmem:[#allocation3 + $0x20] sm:$0xff]
      %v1564 = vld [vmem:[#allocation3 + $0x28] sm:$0xff]
      %v1565 = vld [vmem:[#allocation3 + $0x30] sm:$0xff]
      %v1566 = vld [vmem:[#allocation3 + $0x38] sm:$0xff]
      %v1568 = vsel %vm833, %v1558, 0
      %1570 = vmatprep.subr.mxu0 %v556
      %1571 = vmatpush1.msra.mxu0 %v555
      %1572 = vmatprep.subr.mxu0 %v565
      %1573 = vmatpush1.msra.mxu0 %v564
      %1574 = vmatprep.subr.mxu0 %v574
      %1575 = vmatpush1.msra.mxu0 %v573
      %1576 = vmatprep.subr.mxu0 %v583
      %1577 = vmatpush1.msra.mxu0 %v582
      %1578 = vmatprep.subr.mxu0 0.0
      %1579 = vmatpush1.msra.mxu0 0.0
      %1580 = vmatprep.subr.mxu0 0.0
      %1581 = vmatpush1.msra.mxu0 0.0
      %1582 = vmatprep.subr.mxu0 0.0
      %1583 = vmatpush1.msra.mxu0 0.0
      %1584 = vmatprep.subr.mxu0 0.0
      %1585 = vmatpush1.msra.mxu0 0.0
      %1586 = vmatprep.subr.mxu0 0.0
      %1587 = vmatpush1.msra.mxu0 0.0
      %1588 = vmatprep.subr.mxu0 0.0
      %1589 = vmatpush1.msra.mxu0 0.0
      %1590 = vmatprep.subr.mxu0 0.0
      %1591 = vmatpush1.msra.mxu0 0.0
      %1592 = vmatprep.subr.mxu0 0.0
      %1593 = vmatpush1.msra.mxu0 0.0
      %1594 = vmatprep.subr.mxu0 0.0
      %1595 = vmatpush1.msra.mxu0 0.0
      %1596 = vmatprep.subr.mxu0 0.0
      %1597 = vmatpush1.msra.mxu0 0.0
      %1598 = vmatprep.subr.mxu0 0.0
      %1599 = vmatpush1.msra.mxu0 0.0
      %1600 = vmatprep.subr.mxu0 0.0
      %1601 = vmatpush1.msra.mxu0 0.0
      %1602 = vmatprep.subr.mxu0 0.0
      %1603 = vmatpush1.msra.mxu0 0.0
      %1604 = vmatprep.subr.mxu0 0.0
      %1605 = vmatpush1.msra.mxu0 0.0
      %1606 = vmatprep.subr.mxu0 0.0
      %1607 = vmatpush1.msra.mxu0 0.0
      %1608 = vmatprep.subr.mxu0 0.0
      %1609 = vmatpush1.msra.mxu0 0.0
      %1610 = vmatprep.subr.mxu0 0.0
      %1611 = vmatpush1.msra.mxu0 0.0
      %1612 = vmatprep.subr.mxu0 0.0
      %1613 = vmatpush1.msra.mxu0 0.0
      %1614 = vmatprep.subr.mxu0 0.0
      %1615 = vmatpush1.msra.mxu0 0.0
      %1616 = vmatprep.subr.mxu0 0.0
      %1617 = vmatpush1.msra.mxu0 0.0
      %1618 = vmatprep.subr.mxu0 0.0
      %1619 = vmatpush1.msra.mxu0 0.0
      %1620 = vmatprep.subr.mxu0 0.0
      %1621 = vmatpush1.msra.mxu0 0.0
      %1622 = vmatprep.subr.mxu0 0.0
      %1623 = vmatpush1.msra.mxu0 0.0
      %1624 = vmatprep.subr.mxu0 0.0
      %1625 = vmatpush1.msra.mxu0 0.0
      %1626 = vmatprep.subr.mxu0 0.0
      %1627 = vmatpush1.msra.mxu0 0.0
      %1628 = vmatprep.subr.mxu0 0.0
      %1629 = vmatpush1.msra.mxu0 0.0
      %1630 = vmatprep.subr.mxu0 0.0
      %1631 = vmatpush1.msra.mxu0 0.0
      %1632 = vmatprep.subr.mxu0 0.0
      %1633 = vmatpush1.msra.mxu0 0.0
      %1634 = vmatprep.mubr.f32.mxu0 0.0
      %1635 = vmatmul.mubr.f32.gmra.mrb[0].mxu0 %v1568
      %v1636 = vpop.f32.mrb[0].mxu0
      %v1637 = vadd.f32 0.0, %v1636
      %v1638 = vpop.f32.mrb[0].mxu0
      %v1639 = vadd.f32 0.0, %v1638
      %1640 = vdwg.mxu0
      %1641 = vmatprep.subr.mxu0 %v558
      %1642 = vmatpush1.msra.mxu0 %v557
      %1643 = vmatprep.subr.mxu0 %v567
      %1644 = vmatpush1.msra.mxu0 %v566
      %1645 = vmatprep.subr.mxu0 %v576
      %1646 = vmatpush1.msra.mxu0 %v575
      %1647 = vmatprep.subr.mxu0 %v585
      %1648 = vmatpush1.msra.mxu0 %v584
      %1649 = vmatprep.subr.mxu0 0.0
      %1650 = vmatpush1.msra.mxu0 0.0
      %1651 = vmatprep.subr.mxu0 0.0
      %1652 = vmatpush1.msra.mxu0 0.0
      %1653 = vmatprep.subr.mxu0 0.0
      %1654 = vmatpush1.msra.mxu0 0.0
      %1655 = vmatprep.subr.mxu0 0.0
      %1656 = vmatpush1.msra.mxu0 0.0
      %1657 = vmatprep.subr.mxu0 0.0
      %1658 = vmatpush1.msra.mxu0 0.0
      %1659 = vmatprep.subr.mxu0 0.0
      %1660 = vmatpush1.msra.mxu0 0.0
      %1661 = vmatprep.subr.mxu0 0.0
      %1662 = vmatpush1.msra.mxu0 0.0
      %1663 = vmatprep.subr.mxu0 0.0
      %1664 = vmatpush1.msra.mxu0 0.0
      %1665 = vmatprep.subr.mxu0 0.0
      %1666 = vmatpush1.msra.mxu0 0.0
      %1667 = vmatprep.subr.mxu0 0.0
      %1668 = vmatpush1.msra.mxu0 0.0
      %1669 = vmatprep.subr.mxu0 0.0
      %1670 = vmatpush1.msra.mxu0 0.0
      %1671 = vmatprep.subr.mxu0 0.0
      %1672 = vmatpush1.msra.mxu0 0.0
      %1673 = vmatprep.subr.mxu0 0.0
      %1674 = vmatpush1.msra.mxu0 0.0
      %1675 = vmatprep.subr.mxu0 0.0
      %1676 = vmatpush1.msra.mxu0 0.0
      %1677 = vmatprep.subr.mxu0 0.0
      %1678 = vmatpush1.msra.mxu0 0.0
      %1679 = vmatprep.subr.mxu0 0.0
      %1680 = vmatpush1.msra.mxu0 0.0
      %1681 = vmatprep.subr.mxu0 0.0
      %1682 = vmatpush1.msra.mxu0 0.0
      %1683 = vmatprep.subr.mxu0 0.0
      %1684 = vmatpush1.msra.mxu0 0.0
      %1685 = vmatprep.subr.mxu0 0.0
      %1686 = vmatpush1.msra.mxu0 0.0
      %1687 = vmatprep.subr.mxu0 0.0
      %1688 = vmatpush1.msra.mxu0 0.0
      %1689 = vmatprep.subr.mxu0 0.0
      %1690 = vmatpush1.msra.mxu0 0.0
      %1691 = vmatprep.subr.mxu0 0.0
      %1692 = vmatpush1.msra.mxu0 0.0
      %1693 = vmatprep.subr.mxu0 0.0
      %1694 = vmatpush1.msra.mxu0 0.0
      %1695 = vmatprep.subr.mxu0 0.0
      %1696 = vmatpush1.msra.mxu0 0.0
      %1697 = vmatprep.subr.mxu0 0.0
      %1698 = vmatpush1.msra.mxu0 0.0
      %1699 = vmatprep.subr.mxu0 0.0
      %1700 = vmatpush1.msra.mxu0 0.0
      %1701 = vmatprep.subr.mxu0 0.0
      %1702 = vmatpush1.msra.mxu0 0.0
      %1703 = vmatprep.subr.mxu0 0.0
      %1704 = vmatpush1.msra.mxu0 0.0
      %1705 = vmatprep.mubr.f32.mxu0 0.0
      %1706 = vmatmul.mubr.f32.gmra.mrb[0].mxu0 %v1568
      %v1707 = vpop.f32.mrb[0].mxu0
      %v1708 = vadd.f32 0.0, %v1707
      %v1709 = vpop.f32.mrb[0].mxu0
      %v1710 = vadd.f32 0.0, %v1709
      %1711 = vdwg.mxu0
      %1712 = vmatprep.subr.mxu0 %v560
      %1713 = vmatpush1.msra.mxu0 %v559
      %1714 = vmatprep.subr.mxu0 %v569
      %1715 = vmatpush1.msra.mxu0 %v568
      %1716 = vmatprep.subr.mxu0 %v578
      %1717 = vmatpush1.msra.mxu0 %v577
      %1718 = vmatprep.subr.mxu0 %v587
      %1719 = vmatpush1.msra.mxu0 %v586
      %1720 = vmatprep.subr.mxu0 0.0
      %1721 = vmatpush1.msra.mxu0 0.0
      %1722 = vmatprep.subr.mxu0 0.0
      %1723 = vmatpush1.msra.mxu0 0.0
      %1724 = vmatprep.subr.mxu0 0.0
      %1725 = vmatpush1.msra.mxu0 0.0
      %1726 = vmatprep.subr.mxu0 0.0
      %1727 = vmatpush1.msra.mxu0 0.0
      %1728 = vmatprep.subr.mxu0 0.0
      %1729 = vmatpush1.msra.mxu0 0.0
      %1730 = vmatprep.subr.mxu0 0.0
      %1731 = vmatpush1.msra.mxu0 0.0
      %1732 = vmatprep.subr.mxu0 0.0
      %1733 = vmatpush1.msra.mxu0 0.0
      %1734 = vmatprep.subr.mxu0 0.0
      %1735 = vmatpush1.msra.mxu0 0.0
      %1736 = vmatprep.subr.mxu0 0.0
      %1737 = vmatpush1.msra.mxu0 0.0
      %1738 = vmatprep.subr.mxu0 0.0
      %1739 = vmatpush1.msra.mxu0 0.0
      %1740 = vmatprep.subr.mxu0 0.0
      %1741 = vmatpush1.msra.mxu0 0.0
      %1742 = vmatprep.subr.mxu0 0.0
      %1743 = vmatpush1.msra.mxu0 0.0
      %1744 = vmatprep.subr.mxu0 0.0
      %1745 = vmatpush1.msra.mxu0 0.0
      %1746 = vmatprep.subr.mxu0 0.0
      %1747 = vmatpush1.msra.mxu0 0.0
      %1748 = vmatprep.subr.mxu0 0.0
      %1749 = vmatpush1.msra.mxu0 0.0
      %1750 = vmatprep.subr.mxu0 0.0
      %1751 = vmatpush1.msra.mxu0 0.0
      %1752 = vmatprep.subr.mxu0 0.0
      %1753 = vmatpush1.msra.mxu0 0.0
      %1754 = vmatprep.subr.mxu0 0.0
      %1755 = vmatpush1.msra.mxu0 0.0
      %1756 = vmatprep.subr.mxu0 0.0
      %1757 = vmatpush1.msra.mxu0 0.0
      %1758 = vmatprep.subr.mxu0 0.0
      %1759 = vmatpush1.msra.mxu0 0.0
      %1760 = vmatprep.subr.mxu0 0.0
      %1761 = vmatpush1.msra.mxu0 0.0
      %1762 = vmatprep.subr.mxu0 0.0
      %1763 = vmatpush1.msra.mxu0 0.0
      %1764 = vmatprep.subr.mxu0 0.0
      %1765 = vmatpush1.msra.mxu0 0.0
      %1766 = vmatprep.subr.mxu0 0.0
      %1767 = vmatpush1.msra.mxu0 0.0
      %1768 = vmatprep.subr.mxu0 0.0
      %1769 = vmatpush1.msra.mxu0 0.0
      %1770 = vmatprep.subr.mxu0 0.0
      %1771 = vmatpush1.msra.mxu0 0.0
      %1772 = vmatprep.subr.mxu0 0.0
      %1773 = vmatpush1.msra.mxu0 0.0
      %1774 = vmatprep.subr.mxu0 0.0
      %1775 = vmatpush1.msra.mxu0 0.0
      %1776 = vmatprep.mubr.f32.mxu0 0.0
      %1777 = vmatmul.mubr.f32.gmra.mrb[0].mxu0 %v1568
      %v1778 = vpop.f32.mrb[0].mxu0
      %v1779 = vadd.f32 0.0, %v1778
      %v1780 = vpop.f32.mrb[0].mxu0
      %v1781 = vadd.f32 0.0, %v1780
      %1782 = vdwg.mxu0
      %1783 = vmatprep.subr.mxu0 %v562
      %1784 = vmatpush1.msra.mxu0 %v561
      %1785 = vmatprep.subr.mxu0 %v571
      %1786 = vmatpush1.msra.mxu0 %v570
      %1787 = vmatprep.subr.mxu0 %v580
      %1788 = vmatpush1.msra.mxu0 %v579
      %1789 = vmatprep.subr.mxu0 %v589
      %1790 = vmatpush1.msra.mxu0 %v588
      %1791 = vmatprep.subr.mxu0 0.0
      %1792 = vmatpush1.msra.mxu0 0.0
      %1793 = vmatprep.subr.mxu0 0.0
      %1794 = vmatpush1.msra.mxu0 0.0
      %1795 = vmatprep.subr.mxu0 0.0
      %1796 = vmatpush1.msra.mxu0 0.0
      %1797 = vmatprep.subr.mxu0 0.0
      %1798 = vmatpush1.msra.mxu0 0.0
      %1799 = vmatprep.subr.mxu0 0.0
      %1800 = vmatpush1.msra.mxu0 0.0
      %1801 = vmatprep.subr.mxu0 0.0
      %1802 = vmatpush1.msra.mxu0 0.0
      %1803 = vmatprep.subr.mxu0 0.0
      %1804 = vmatpush1.msra.mxu0 0.0
      %1805 = vmatprep.subr.mxu0 0.0
      %1806 = vmatpush1.msra.mxu0 0.0
      %1807 = vmatprep.subr.mxu0 0.0
      %1808 = vmatpush1.msra.mxu0 0.0
      %1809 = vmatprep.subr.mxu0 0.0
      %1810 = vmatpush1.msra.mxu0 0.0
      %1811 = vmatprep.subr.mxu0 0.0
      %1812 = vmatpush1.msra.mxu0 0.0
      %1813 = vmatprep.subr.mxu0 0.0
      %1814 = vmatpush1.msra.mxu0 0.0
      %1815 = vmatprep.subr.mxu0 0.0
      %1816 = vmatpush1.msra.mxu0 0.0
      %1817 = vmatprep.subr.mxu0 0.0
      %1818 = vmatpush1.msra.mxu0 0.0
      %1819 = vmatprep.subr.mxu0 0.0
      %1820 = vmatpush1.msra.mxu0 0.0
      %1821 = vmatprep.subr.mxu0 0.0
      %1822 = vmatpush1.msra.mxu0 0.0
      %1823 = vmatprep.subr.mxu0 0.0
      %1824 = vmatpush1.msra.mxu0 0.0
      %1825 = vmatprep.subr.mxu0 0.0
      %1826 = vmatpush1.msra.mxu0 0.0
      %1827 = vmatprep.subr.mxu0 0.0
      %1828 = vmatpush1.msra.mxu0 0.0
      %1829 = vmatprep.subr.mxu0 0.0
      %1830 = vmatpush1.msra.mxu0 0.0
      %1831 = vmatprep.subr.mxu0 0.0
      %1832 = vmatpush1.msra.mxu0 0.0
      %1833 = vmatprep.subr.mxu0 0.0
      %1834 = vmatpush1.msra.mxu0 0.0
      %1835 = vmatprep.subr.mxu0 0.0
      %1836 = vmatpush1.msra.mxu0 0.0
      %1837 = vmatprep.subr.mxu0 0.0
      %1838 = vmatpush1.msra.mxu0 0.0
      %1839 = vmatprep.subr.mxu0 0.0
      %1840 = vmatpush1.msra.mxu0 0.0
      %1841 = vmatprep.subr.mxu0 0.0
      %1842 = vmatpush1.msra.mxu0 0.0
      %1843 = vmatprep.subr.mxu0 0.0
      %1844 = vmatpush1.msra.mxu0 0.0
      %1845 = vmatprep.subr.mxu0 0.0
      %1846 = vmatpush1.msra.mxu0 0.0
      %1847 = vmatprep.mubr.f32.mxu0 0.0
      %1848 = vmatmul.mubr.f32.gmra.mrb[0].mxu0 %v1568
      %v1849 = vpop.f32.mrb[0].mxu0
      %v1850 = vadd.f32 0.0, %v1849
      %v1851 = vpop.f32.mrb[0].mxu0
      %v1852 = vadd.f32 0.0, %v1851
      %1853 = vdwg.mxu0
      %1854 = vmatprep.subr.mxu0 0.0
      %1855 = vmatpush1.msra.mxu0 %v563
      %1856 = vmatprep.subr.mxu0 0.0
      %1857 = vmatpush1.msra.mxu0 %v572
      %1858 = vmatprep.subr.mxu0 0.0
      %1859 = vmatpush1.msra.mxu0 %v581
      %1860 = vmatprep.subr.mxu0 0.0
      %1861 = vmatpush1.msra.mxu0 %v590
      %1862 = vmatprep.subr.mxu0 0.0
      %1863 = vmatpush1.msra.mxu0 0.0
      %1864 = vmatprep.subr.mxu0 0.0
      %1865 = vmatpush1.msra.mxu0 0.0
      %1866 = vmatprep.subr.mxu0 0.0
      %1867 = vmatpush1.msra.mxu0 0.0
      %1868 = vmatprep.subr.mxu0 0.0
      %1869 = vmatpush1.msra.mxu0 0.0
      %1870 = vmatprep.subr.mxu0 0.0
      %1871 = vmatpush1.msra.mxu0 0.0
      %1872 = vmatprep.subr.mxu0 0.0
      %1873 = vmatpush1.msra.mxu0 0.0
      %1874 = vmatprep.subr.mxu0 0.0
      %1875 = vmatpush1.msra.mxu0 0.0
      %1876 = vmatprep.subr.mxu0 0.0
      %1877 = vmatpush1.msra.mxu0 0.0
      %1878 = vmatprep.subr.mxu0 0.0
      %1879 = vmatpush1.msra.mxu0 0.0
      %1880 = vmatprep.subr.mxu0 0.0
      %1881 = vmatpush1.msra.mxu0 0.0
      %1882 = vmatprep.subr.mxu0 0.0
      %1883 = vmatpush1.msra.mxu0 0.0
      %1884 = vmatprep.subr.mxu0 0.0
      %1885 = vmatpush1.msra.mxu0 0.0
      %1886 = vmatprep.subr.mxu0 0.0
      %1887 = vmatpush1.msra.mxu0 0.0
      %1888 = vmatprep.subr.mxu0 0.0
      %1889 = vmatpush1.msra.mxu0 0.0
      %1890 = vmatprep.subr.mxu0 0.0
      %1891 = vmatpush1.msra.mxu0 0.0
      %1892 = vmatprep.subr.mxu0 0.0
      %1893 = vmatpush1.msra.mxu0 0.0
      %1894 = vmatprep.subr.mxu0 0.0
      %1895 = vmatpush1.msra.mxu0 0.0
      %1896 = vmatprep.subr.mxu0 0.0
      %1897 = vmatpush1.msra.mxu0 0.0
      %1898 = vmatprep.subr.mxu0 0.0
      %1899 = vmatpush1.msra.mxu0 0.0
      %1900 = vmatprep.subr.mxu0 0.0
      %1901 = vmatpush1.msra.mxu0 0.0
      %1902 = vmatprep.subr.mxu0 0.0
      %1903 = vmatpush1.msra.mxu0 0.0
      %1904 = vmatprep.subr.mxu0 0.0
      %1905 = vmatpush1.msra.mxu0 0.0
      %1906 = vmatprep.subr.mxu0 0.0
      %1907 = vmatpush1.msra.mxu0 0.0
      %1908 = vmatprep.subr.mxu0 0.0
      %1909 = vmatpush1.msra.mxu0 0.0
      %1910 = vmatprep.subr.mxu0 0.0
      %1911 = vmatpush1.msra.mxu0 0.0
      %1912 = vmatprep.subr.mxu0 0.0
      %1913 = vmatpush1.msra.mxu0 0.0
      %1914 = vmatprep.subr.mxu0 0.0
      %1915 = vmatpush1.msra.mxu0 0.0
      %1916 = vmatprep.subr.mxu0 0.0
      %1917 = vmatpush1.msra.mxu0 0.0
      %1918 = vmatprep.mubr.f32.mxu0 0.0
      %1919 = vmatmul.mubr.f32.gmra.mrb[0].mxu0 %v1568
      %v1920 = vpop.f32.mrb[0].mxu0
      %v1921 = vadd.f32 0.0, %v1920
      %v1922 = vpop.f32.mrb[0].mxu0
      %1923 = vdwg.mxu0
      %v1924 = vadd.f32 %v913, %v1637
      %v1925 = vadd.f32 %v915, %v1639
      %v1926 = vadd.f32 %v1002, %v1708
      %v1927 = vadd.f32 %v1004, %v1710
      %v1928 = vadd.f32 %v1091, %v1779
      %v1929 = vadd.f32 %v1093, %v1781
      %v1930 = vadd.f32 %v1180, %v1850
      %v1931 = vadd.f32 %v1182, %v1852
      %v1932 = vmul.f32 %v1559, 0.5
      %v1933 = vmul.f32 %v1560, 0.5
      %v1934 = vmul.f32 %v1561, 0.5
      %v1935 = vmul.f32 %v1562, 0.5
      %v1936 = vmul.f32 %v1563, 0.5
      %v1937 = vmul.f32 %v1564, 0.5
      %v1938 = vmul.f32 %v1565, 0.5
      %v1939 = vmul.f32 %v1566, 0.5
      %v1940 = vmul.f32 %v1924, 0.5
      %v1941 = vmul.f32 %v1925, 0.5
      %v1942 = vmul.f32 %v1926, 0.5
      %v1943 = vmul.f32 %v1927, 0.5
      %v1944 = vmul.f32 %v1928, 0.5
      %v1945 = vmul.f32 %v1929, 0.5
      %v1946 = vmul.f32 %v1930, 0.5
      %v1947 = vmul.f32 %v1931, 0.5
      %v1948 = vadd.f32 %v1932, %v1940
      %v1949 = vadd.f32 %v1933, %v1941
      %v1950 = vadd.f32 %v1934, %v1942
      %v1951 = vadd.f32 %v1935, %v1943
      %v1952 = vadd.f32 %v1936, %v1944
      %v1953 = vadd.f32 %v1937, %v1945
      %v1954 = vadd.f32 %v1938, %v1946
      %v1955 = vadd.f32 %v1939, %v1947
      %v1956 = vmul.f32 %v1948, %v1269
      %v1957 = vmul.f32 %v1949, %v1271
      %v1958 = vmul.f32 %v1950, %v1358
      %v1959 = vmul.f32 %v1951, %v1360
      %v1960 = vmul.f32 %v1952, %v1447
      %v1961 = vmul.f32 %v1953, %v1449
      %v1962 = vmul.f32 %v1954, %v1536
      %v1963 = vmul.f32 %v1955, %v1538
      %v1965 = vlaneseq
      %v1966 = vshrl.u32 %v1965, 7
      %v1967 = vsub.s32 0, %v1966
      %v1968 = vrot.slane %v591, %v1967
      %v1970 = vadd.f32 %v1921, %v1968
      %v1971 = vmul.f32 %v1558, 0.5
      %1972 = vmatprep.subr.mxu0 0.0
      %1973 = vmatpush1.msra.mxu0 %v592
      %1974 = vmatprep.subr.mxu0 0.0
      %1975 = vmatpush1.msra.mxu0 %v593
      %1976 = vmatprep.subr.mxu0 0.0
      %1977 = vmatpush1.msra.mxu0 %v594
      %1978 = vmatprep.subr.mxu0 0.0
      %1979 = vmatpush1.msra.mxu0 %v595
      %1980 = vmatprep.subr.mxu0 0.0
      %1981 = vmatpush1.msra.mxu0 %v596
      %1982 = vmatprep.subr.mxu0 0.0
      %1983 = vmatpush1.msra.mxu0 %v597
      %1984 = vmatprep.subr.mxu0 0.0
      %1985 = vmatpush1.msra.mxu0 %v598
      %1986 = vmatprep.subr.mxu0 0.0
      %1987 = vmatpush1.msra.mxu0 %v599
      %1988 = vmatprep.subr.mxu0 0.0
      %1989 = vmatpush1.msra.mxu0 %v600
      %1990 = vmatprep.subr.mxu0 0.0
      %1991 = vmatpush1.msra.mxu0 %v601
      %1992 = vmatprep.subr.mxu0 0.0
      %1993 = vmatpush1.msra.mxu0 %v602
      %1994 = vmatprep.subr.mxu0 0.0
      %1995 = vmatpush1.msra.mxu0 %v603
      %1996 = vmatprep.subr.mxu0 0.0
      %1997 = vmatpush1.msra.mxu0 %v604
      %1998 = vmatprep.subr.mxu0 0.0
      %1999 = vmatpush1.msra.mxu0 %v605
      %2000 = vmatprep.subr.mxu0 0.0
      %2001 = vmatpush1.msra.mxu0 %v606
      %2002 = vmatprep.subr.mxu0 0.0
      %2003 = vmatpush1.msra.mxu0 %v607
      %2004 = vmatprep.subr.mxu0 0.0
      %2005 = vmatpush1.msra.mxu0 %v608
      %2006 = vmatprep.subr.mxu0 0.0
      %2007 = vmatpush1.msra.mxu0 %v609
      %2008 = vmatprep.subr.mxu0 0.0
      %2009 = vmatpush1.msra.mxu0 %v610
      %2010 = vmatprep.subr.mxu0 0.0
      %2011 = vmatpush1.msra.mxu0 %v611
      %2012 = vmatprep.subr.mxu0 0.0
      %2013 = vmatpush1.msra.mxu0 %v612
      %2014 = vmatprep.subr.mxu0 0.0
      %2015 = vmatpush1.msra.mxu0 %v613
      %2016 = vmatprep.subr.mxu0 0.0
      %2017 = vmatpush1.msra.mxu0 %v614
      %2018 = vmatprep.subr.mxu0 0.0
      %2019 = vmatpush1.msra.mxu0 %v615
      %2020 = vmatprep.subr.mxu0 0.0
      %2021 = vmatpush1.msra.mxu0 %v616
      %2022 = vmatprep.subr.mxu0 0.0
      %2023 = vmatpush1.msra.mxu0 %v617
      %2024 = vmatprep.subr.mxu0 0.0
      %2025 = vmatpush1.msra.mxu0 %v618
      %2026 = vmatprep.subr.mxu0 0.0
      %2027 = vmatpush1.msra.mxu0 %v619
      %2028 = vmatprep.subr.mxu0 0.0
      %2029 = vmatpush1.msra.mxu0 %v620
      %2030 = vmatprep.subr.mxu0 0.0
      %2031 = vmatpush1.msra.mxu0 %v621
      %2032 = vmatprep.subr.mxu0 0.0
      %2033 = vmatpush1.msra.mxu0 %v622
      %2034 = vmatprep.subr.mxu0 0.0
      %2035 = vmatpush1.msra.mxu0 %v623
      %2036 = vmatprep.mubr.f32.mxu0 %v1957
      %2037 = vmatmul.mubr.f32.gmra.mrb[0].mxu0 %v1956
      %v2038 = vpop.f32.mrb[0].mxu0
      %v2039 = vadd.f32 %v1970, %v2038
      %v2040 = vpop.f32.mrb[0].mxu0
      %2041 = vdwg.mxu0
      %2042 = vmatprep.subr.mxu0 0.0
      %2043 = vmatpush1.msra.mxu0 %v624
      %2044 = vmatprep.subr.mxu0 0.0
      %2045 = vmatpush1.msra.mxu0 %v625
      %2046 = vmatprep.subr.mxu0 0.0
      %2047 = vmatpush1.msra.mxu0 %v626
      %2048 = vmatprep.subr.mxu0 0.0
      %2049 = vmatpush1.msra.mxu0 %v627
      %2050 = vmatprep.subr.mxu0 0.0
      %2051 = vmatpush1.msra.mxu0 %v628
      %2052 = vmatprep.subr.mxu0 0.0
      %2053 = vmatpush1.msra.mxu0 %v629
      %2054 = vmatprep.subr.mxu0 0.0
      %2055 = vmatpush1.msra.mxu0 %v630
      %2056 = vmatprep.subr.mxu0 0.0
      %2057 = vmatpush1.msra.mxu0 %v631
      %2058 = vmatprep.subr.mxu0 0.0
      %2059 = vmatpush1.msra.mxu0 %v632
      %2060 = vmatprep.subr.mxu0 0.0
      %2061 = vmatpush1.msra.mxu0 %v633
      %2062 = vmatprep.subr.mxu0 0.0
      %2063 = vmatpush1.msra.mxu0 %v634
      %2064 = vmatprep.subr.mxu0 0.0
      %2065 = vmatpush1.msra.mxu0 %v635
      %2066 = vmatprep.subr.mxu0 0.0
      %2067 = vmatpush1.msra.mxu0 %v636
      %2068 = vmatprep.subr.mxu0 0.0
      %2069 = vmatpush1.msra.mxu0 %v637
      %2070 = vmatprep.subr.mxu0 0.0
      %2071 = vmatpush1.msra.mxu0 %v638
      %2072 = vmatprep.subr.mxu0 0.0
      %2073 = vmatpush1.msra.mxu0 %v639
      %2074 = vmatprep.subr.mxu0 0.0
      %2075 = vmatpush1.msra.mxu0 %v640
      %2076 = vmatprep.subr.mxu0 0.0
      %2077 = vmatpush1.msra.mxu0 %v641
      %2078 = vmatprep.subr.mxu0 0.0
      %2079 = vmatpush1.msra.mxu0 %v642
      %2080 = vmatprep.subr.mxu0 0.0
      %2081 = vmatpush1.msra.mxu0 %v643
      %2082 = vmatprep.subr.mxu0 0.0
      %2083 = vmatpush1.msra.mxu0 %v644
      %2084 = vmatprep.subr.mxu0 0.0
      %2085 = vmatpush1.msra.mxu0 %v645
      %2086 = vmatprep.subr.mxu0 0.0
      %2087 = vmatpush1.msra.mxu0 %v646
      %2088 = vmatprep.subr.mxu0 0.0
      %2089 = vmatpush1.msra.mxu0 %v647
      %2090 = vmatprep.subr.mxu0 0.0
      %2091 = vmatpush1.msra.mxu0 %v648
      %2092 = vmatprep.subr.mxu0 0.0
      %2093 = vmatpush1.msra.mxu0 %v649
      %2094 = vmatprep.subr.mxu0 0.0
      %2095 = vmatpush1.msra.mxu0 %v650
      %2096 = vmatprep.subr.mxu0 0.0
      %2097 = vmatpush1.msra.mxu0 %v651
      %2098 = vmatprep.subr.mxu0 0.0
      %2099 = vmatpush1.msra.mxu0 %v652
      %2100 = vmatprep.subr.mxu0 0.0
      %2101 = vmatpush1.msra.mxu0 %v653
      %2102 = vmatprep.subr.mxu0 0.0
      %2103 = vmatpush1.msra.mxu0 %v654
      %2104 = vmatprep.subr.mxu0 0.0
      %2105 = vmatpush1.msra.mxu0 %v655
      %2106 = vmatprep.mubr.f32.mxu0 %v1959
      %2107 = vmatmul.mubr.f32.gmra.mrb[0].mxu0 %v1958
      %v2108 = vpop.f32.mrb[0].mxu0
      %v2109 = vadd.f32 %v2039, %v2108
      %v2110 = vpop.f32.mrb[0].mxu0
      %2111 = vdwg.mxu0
      %2112 = vmatprep.subr.mxu0 0.0
      %2113 = vmatpush1.msra.mxu0 %v656
      %2114 = vmatprep.subr.mxu0 0.0
      %2115 = vmatpush1.msra.mxu0 %v657
      %2116 = vmatprep.subr.mxu0 0.0
      %2117 = vmatpush1.msra.mxu0 %v658
      %2118 = vmatprep.subr.mxu0 0.0
      %2119 = vmatpush1.msra.mxu0 %v659
      %2120 = vmatprep.subr.mxu0 0.0
      %2121 = vmatpush1.msra.mxu0 %v660
      %2122 = vmatprep.subr.mxu0 0.0
      %2123 = vmatpush1.msra.mxu0 %v661
      %2124 = vmatprep.subr.mxu0 0.0
      %2125 = vmatpush1.msra.mxu0 %v662
      %2126 = vmatprep.subr.mxu0 0.0
      %2127 = vmatpush1.msra.mxu0 %v663
      %2128 = vmatprep.subr.mxu0 0.0
      %2129 = vmatpush1.msra.mxu0 %v664
      %2130 = vmatprep.subr.mxu0 0.0
      %2131 = vmatpush1.msra.mxu0 %v665
      %2132 = vmatprep.subr.mxu0 0.0
      %2133 = vmatpush1.msra.mxu0 %v666
      %2134 = vmatprep.subr.mxu0 0.0
      %2135 = vmatpush1.msra.mxu0 %v667
      %2136 = vmatprep.subr.mxu0 0.0
      %2137 = vmatpush1.msra.mxu0 %v668
      %2138 = vmatprep.subr.mxu0 0.0
      %2139 = vmatpush1.msra.mxu0 %v669
      %2140 = vmatprep.subr.mxu0 0.0
      %2141 = vmatpush1.msra.mxu0 %v670
      %2142 = vmatprep.subr.mxu0 0.0
      %2143 = vmatpush1.msra.mxu0 %v671
      %2144 = vmatprep.subr.mxu0 0.0
      %2145 = vmatpush1.msra.mxu0 %v672
      %2146 = vmatprep.subr.mxu0 0.0
      %2147 = vmatpush1.msra.mxu0 %v673
      %2148 = vmatprep.subr.mxu0 0.0
      %2149 = vmatpush1.msra.mxu0 %v674
      %2150 = vmatprep.subr.mxu0 0.0
      %2151 = vmatpush1.msra.mxu0 %v675
      %2152 = vmatprep.subr.mxu0 0.0
      %2153 = vmatpush1.msra.mxu0 %v676
      %2154 = vmatprep.subr.mxu0 0.0
      %2155 = vmatpush1.msra.mxu0 %v677
      %2156 = vmatprep.subr.mxu0 0.0
      %2157 = vmatpush1.msra.mxu0 %v678
      %2158 = vmatprep.subr.mxu0 0.0
      %2159 = vmatpush1.msra.mxu0 %v679
      %2160 = vmatprep.subr.mxu0 0.0
      %2161 = vmatpush1.msra.mxu0 %v680
      %2162 = vmatprep.subr.mxu0 0.0
      %2163 = vmatpush1.msra.mxu0 %v681
      %2164 = vmatprep.subr.mxu0 0.0
      %2165 = vmatpush1.msra.mxu0 %v682
      %2166 = vmatprep.subr.mxu0 0.0
      %2167 = vmatpush1.msra.mxu0 %v683
      %2168 = vmatprep.subr.mxu0 0.0
      %2169 = vmatpush1.msra.mxu0 %v684
      %2170 = vmatprep.subr.mxu0 0.0
      %2171 = vmatpush1.msra.mxu0 %v685
      %2172 = vmatprep.subr.mxu0 0.0
      %2173 = vmatpush1.msra.mxu0 %v686
      %2174 = vmatprep.subr.mxu0 0.0
      %2175 = vmatpush1.msra.mxu0 %v687
      %2176 = vmatprep.mubr.f32.mxu0 %v1961
      %2177 = vmatmul.mubr.f32.gmra.mrb[0].mxu0 %v1960
      %v2178 = vpop.f32.mrb[0].mxu0
      %v2179 = vadd.f32 %v2109, %v2178
      %v2180 = vpop.f32.mrb[0].mxu0
      %2181 = vdwg.mxu0
      %2182 = vmatprep.subr.mxu0 0.0
      %2183 = vmatpush1.msra.mxu0 %v688
      %2184 = vmatprep.subr.mxu0 0.0
      %2185 = vmatpush1.msra.mxu0 %v689
      %2186 = vmatprep.subr.mxu0 0.0
      %2187 = vmatpush1.msra.mxu0 %v690
      %2188 = vmatprep.subr.mxu0 0.0
      %2189 = vmatpush1.msra.mxu0 %v691
      %2190 = vmatprep.subr.mxu0 0.0
      %2191 = vmatpush1.msra.mxu0 %v692
      %2192 = vmatprep.subr.mxu0 0.0
      %2193 = vmatpush1.msra.mxu0 %v693
      %2194 = vmatprep.subr.mxu0 0.0
      %2195 = vmatpush1.msra.mxu0 %v694
      %2196 = vmatprep.subr.mxu0 0.0
      %2197 = vmatpush1.msra.mxu0 %v695
      %2198 = vmatprep.subr.mxu0 0.0
      %2199 = vmatpush1.msra.mxu0 %v696
      %2200 = vmatprep.subr.mxu0 0.0
      %2201 = vmatpush1.msra.mxu0 %v697
      %2202 = vmatprep.subr.mxu0 0.0
      %2203 = vmatpush1.msra.mxu0 %v698
      %2204 = vmatprep.subr.mxu0 0.0
      %2205 = vmatpush1.msra.mxu0 %v699
      %2206 = vmatprep.subr.mxu0 0.0
      %2207 = vmatpush1.msra.mxu0 %v700
      %2208 = vmatprep.subr.mxu0 0.0
      %2209 = vmatpush1.msra.mxu0 %v701
      %2210 = vmatprep.subr.mxu0 0.0
      %2211 = vmatpush1.msra.mxu0 %v702
      %2212 = vmatprep.subr.mxu0 0.0
      %2213 = vmatpush1.msra.mxu0 %v703
      %2214 = vmatprep.subr.mxu0 0.0
      %2215 = vmatpush1.msra.mxu0 %v704
      %2216 = vmatprep.subr.mxu0 0.0
      %2217 = vmatpush1.msra.mxu0 %v705
      %2218 = vmatprep.subr.mxu0 0.0
      %2219 = vmatpush1.msra.mxu0 %v706
      %2220 = vmatprep.subr.mxu0 0.0
      %2221 = vmatpush1.msra.mxu0 %v707
      %2222 = vmatprep.subr.mxu0 0.0
      %2223 = vmatpush1.msra.mxu0 %v708
      %2224 = vmatprep.subr.mxu0 0.0
      %2225 = vmatpush1.msra.mxu0 %v709
      %2226 = vmatprep.subr.mxu0 0.0
      %2227 = vmatpush1.msra.mxu0 %v710
      %2228 = vmatprep.subr.mxu0 0.0
      %2229 = vmatpush1.msra.mxu0 %v711
      %2230 = vmatprep.subr.mxu0 0.0
      %2231 = vmatpush1.msra.mxu0 %v712
      %2232 = vmatprep.subr.mxu0 0.0
      %2233 = vmatpush1.msra.mxu0 %v713
      %2234 = vmatprep.subr.mxu0 0.0
      %2235 = vmatpush1.msra.mxu0 %v714
      %2236 = vmatprep.subr.mxu0 0.0
      %2237 = vmatpush1.msra.mxu0 %v715
      %2238 = vmatprep.subr.mxu0 0.0
      %2239 = vmatpush1.msra.mxu0 %v716
      %2240 = vmatprep.subr.mxu0 0.0
      %2241 = vmatpush1.msra.mxu0 %v717
      %2242 = vmatprep.subr.mxu0 0.0
      %2243 = vmatpush1.msra.mxu0 %v718
      %2244 = vmatprep.subr.mxu0 0.0
      %2245 = vmatpush1.msra.mxu0 %v719
      %2246 = vmatprep.mubr.f32.mxu0 %v1963
      %2247 = vmatmul.mubr.f32.gmra.mrb[0].mxu0 %v1962
      %v2248 = vpop.f32.mrb[0].mxu0
      %v2249 = vadd.f32 %v2179, %v2248
      %v2250 = vpop.f32.mrb[0].mxu0
      %2251 = vdwg.mxu0
      %v2252 = vmax.f32 %v2249, 0.0
      %v2253 = vmul.f32 %v2252, 0.5
      %v2254 = vadd.f32 %v1971, %v2253
      %2255 = vst.msk [vmem:[%s429] sm:$0xff] %vm833, %v2254
      %v2257 = vsel %vm833, %v2254, 0
      %2259 = vmatprep.subr.mxu0 %v556
      %2260 = vmatpush1.msra.mxu0 %v555
      %2261 = vmatprep.subr.mxu0 %v565
      %2262 = vmatpush1.msra.mxu0 %v564
      %2263 = vmatprep.subr.mxu0 %v574
      %2264 = vmatpush1.msra.mxu0 %v573
      %2265 = vmatprep.subr.mxu0 %v583
      %2266 = vmatpush1.msra.mxu0 %v582
      %2267 = vmatprep.subr.mxu0 0.0
      %2268 = vmatpush1.msra.mxu0 0.0
      %2269 = vmatprep.subr.mxu0 0.0
      %2270 = vmatpush1.msra.mxu0 0.0
      %2271 = vmatprep.subr.mxu0 0.0
      %2272 = vmatpush1.msra.mxu0 0.0
      %2273 = vmatprep.subr.mxu0 0.0
      %2274 = vmatpush1.msra.mxu0 0.0
      %2275 = vmatprep.subr.mxu0 0.0
      %2276 = vmatpush1.msra.mxu0 0.0
      %2277 = vmatprep.subr.mxu0 0.0
      %2278 = vmatpush1.msra.mxu0 0.0
      %2279 = vmatprep.subr.mxu0 0.0
      %2280 = vmatpush1.msra.mxu0 0.0
      %2281 = vmatprep.subr.mxu0 0.0
      %2282 = vmatpush1.msra.mxu0 0.0
      %2283 = vmatprep.subr.mxu0 0.0
      %2284 = vmatpush1.msra.mxu0 0.0
      %2285 = vmatprep.subr.mxu0 0.0
      %2286 = vmatpush1.msra.mxu0 0.0
      %2287 = vmatprep.subr.mxu0 0.0
      %2288 = vmatpush1.msra.mxu0 0.0
      %2289 = vmatprep.subr.mxu0 0.0
      %2290 = vmatpush1.msra.mxu0 0.0
      %2291 = vmatprep.subr.mxu0 0.0
      %2292 = vmatpush1.msra.mxu0 0.0
      %2293 = vmatprep.subr.mxu0 0.0
      %2294 = vmatpush1.msra.mxu0 0.0
      %2295 = vmatprep.subr.mxu0 0.0
      %2296 = vmatpush1.msra.mxu0 0.0
      %2297 = vmatprep.subr.mxu0 0.0
      %2298 = vmatpush1.msra.mxu0 0.0
      %2299 = vmatprep.subr.mxu0 0.0
      %2300 = vmatpush1.msra.mxu0 0.0
      %2301 = vmatprep.subr.mxu0 0.0
      %2302 = vmatpush1.msra.mxu0 0.0
      %2303 = vmatprep.subr.mxu0 0.0
      %2304 = vmatpush1.msra.mxu0 0.0
      %2305 = vmatprep.subr.mxu0 0.0
      %2306 = vmatpush1.msra.mxu0 0.0
      %2307 = vmatprep.subr.mxu0 0.0
      %2308 = vmatpush1.msra.mxu0 0.0
      %2309 = vmatprep.subr.mxu0 0.0
      %2310 = vmatpush1.msra.mxu0 0.0
      %2311 = vmatprep.subr.mxu0 0.0
      %2312 = vmatpush1.msra.mxu0 0.0
      %2313 = vmatprep.subr.mxu0 0.0
      %2314 = vmatpush1.msra.mxu0 0.0
      %2315 = vmatprep.subr.mxu0 0.0
      %2316 = vmatpush1.msra.mxu0 0.0
      %2317 = vmatprep.subr.mxu0 0.0
      %2318 = vmatpush1.msra.mxu0 0.0
      %2319 = vmatprep.subr.mxu0 0.0
      %2320 = vmatpush1.msra.mxu0 0.0
      %2321 = vmatprep.subr.mxu0 0.0
      %2322 = vmatpush1.msra.mxu0 0.0
      %2323 = vmatprep.mubr.f32.mxu0 0.0
      %2324 = vmatmul.mubr.f32.gmra.mrb[0].mxu0 %v2257
      %v2325 = vpop.f32.mrb[0].mxu0
      %v2326 = vadd.f32 0.0, %v2325
      %v2327 = vpop.f32.mrb[0].mxu0
      %v2328 = vadd.f32 0.0, %v2327
      %2329 = vdwg.mxu0
      %2330 = vmatprep.subr.mxu0 %v558
      %2331 = vmatpush1.msra.mxu0 %v557
      %2332 = vmatprep.subr.mxu0 %v567
      %2333 = vmatpush1.msra.mxu0 %v566
      %2334 = vmatprep.subr.mxu0 %v576
      %2335 = vmatpush1.msra.mxu0 %v575
      %2336 = vmatprep.subr.mxu0 %v585
      %2337 = vmatpush1.msra.mxu0 %v584
      %2338 = vmatprep.subr.mxu0 0.0
      %2339 = vmatpush1.msra.mxu0 0.0
      %2340 = vmatprep.subr.mxu0 0.0
      %2341 = vmatpush1.msra.mxu0 0.0
      %2342 = vmatprep.subr.mxu0 0.0
      %2343 = vmatpush1.msra.mxu0 0.0
      %2344 = vmatprep.subr.mxu0 0.0
      %2345 = vmatpush1.msra.mxu0 0.0
      %2346 = vmatprep.subr.mxu0 0.0
      %2347 = vmatpush1.msra.mxu0 0.0
      %2348 = vmatprep.subr.mxu0 0.0
      %2349 = vmatpush1.msra.mxu0 0.0
      %2350 = vmatprep.subr.mxu0 0.0
      %2351 = vmatpush1.msra.mxu0 0.0
      %2352 = vmatprep.subr.mxu0 0.0
      %2353 = vmatpush1.msra.mxu0 0.0
      %2354 = vmatprep.subr.mxu0 0.0
      %2355 = vmatpush1.msra.mxu0 0.0
      %2356 = vmatprep.subr.mxu0 0.0
      %2357 = vmatpush1.msra.mxu0 0.0
      %2358 = vmatprep.subr.mxu0 0.0
      %2359 = vmatpush1.msra.mxu0 0.0
      %2360 = vmatprep.subr.mxu0 0.0
      %2361 = vmatpush1.msra.mxu0 0.0
      %2362 = vmatprep.subr.mxu0 0.0
      %2363 = vmatpush1.msra.mxu0 0.0
      %2364 = vmatprep.subr.mxu0 0.0
      %2365 = vmatpush1.msra.mxu0 0.0
      %2366 = vmatprep.subr.mxu0 0.0
      %2367 = vmatpush1.msra.mxu0 0.0
      %2368 = vmatprep.subr.mxu0 0.0
      %2369 = vmatpush1.msra.mxu0 0.0
      %2370 = vmatprep.subr.mxu0 0.0
      %2371 = vmatpush1.msra.mxu0 0.0
      %2372 = vmatprep.subr.mxu0 0.0
      %2373 = vmatpush1.msra.mxu0 0.0
      %2374 = vmatprep.subr.mxu0 0.0
      %2375 = vmatpush1.msra.mxu0 0.0
      %2376 = vmatprep.subr.mxu0 0.0
      %2377 = vmatpush1.msra.mxu0 0.0
      %2378 = vmatprep.subr.mxu0 0.0
      %2379 = vmatpush1.msra.mxu0 0.0
      %2380 = vmatprep.subr.mxu0 0.0
      %2381 = vmatpush1.msra.mxu0 0.0
      %2382 = vmatprep.subr.mxu0 0.0
      %2383 = vmatpush1.msra.mxu0 0.0
      %2384 = vmatprep.subr.mxu0 0.0
      %2385 = vmatpush1.msra.mxu0 0.0
      %2386 = vmatprep.subr.mxu0 0.0
      %2387 = vmatpush1.msra.mxu0 0.0
      %2388 = vmatprep.subr.mxu0 0.0
      %2389 = vmatpush1.msra.mxu0 0.0
      %2390 = vmatprep.subr.mxu0 0.0
      %2391 = vmatpush1.msra.mxu0 0.0
      %2392 = vmatprep.subr.mxu0 0.0
      %2393 = vmatpush1.msra.mxu0 0.0
      %2394 = vmatprep.mubr.f32.mxu0 0.0
      %2395 = vmatmul.mubr.f32.gmra.mrb[0].mxu0 %v2257
      %v2396 = vpop.f32.mrb[0].mxu0
      %v2397 = vadd.f32 0.0, %v2396
      %v2398 = vpop.f32.mrb[0].mxu0
      %v2399 = vadd.f32 0.0, %v2398
      %2400 = vdwg.mxu0
      %2401 = vmatprep.subr.mxu0 %v560
      %2402 = vmatpush1.msra.mxu0 %v559
      %2403 = vmatprep.subr.mxu0 %v569
      %2404 = vmatpush1.msra.mxu0 %v568
      %2405 = vmatprep.subr.mxu0 %v578
      %2406 = vmatpush1.msra.mxu0 %v577
      %2407 = vmatprep.subr.mxu0 %v587
      %2408 = vmatpush1.msra.mxu0 %v586
      %2409 = vmatprep.subr.mxu0 0.0
      %2410 = vmatpush1.msra.mxu0 0.0
      %2411 = vmatprep.subr.mxu0 0.0
      %2412 = vmatpush1.msra.mxu0 0.0
      %2413 = vmatprep.subr.mxu0 0.0
      %2414 = vmatpush1.msra.mxu0 0.0
      %2415 = vmatprep.subr.mxu0 0.0
      %2416 = vmatpush1.msra.mxu0 0.0
      %2417 = vmatprep.subr.mxu0 0.0
      %2418 = vmatpush1.msra.mxu0 0.0
      %2419 = vmatprep.subr.mxu0 0.0
      %2420 = vmatpush1.msra.mxu0 0.0
      %2421 = vmatprep.subr.mxu0 0.0
      %2422 = vmatpush1.msra.mxu0 0.0
      %2423 = vmatprep.subr.mxu0 0.0
      %2424 = vmatpush1.msra.mxu0 0.0
      %2425 = vmatprep.subr.mxu0 0.0
      %2426 = vmatpush1.msra.mxu0 0.0
      %2427 = vmatprep.subr.mxu0 0.0
      %2428 = vmatpush1.msra.mxu0 0.0
      %2429 = vmatprep.subr.mxu0 0.0
      %2430 = vmatpush1.msra.mxu0 0.0
      %2431 = vmatprep.subr.mxu0 0.0
      %2432 = vmatpush1.msra.mxu0 0.0
      %2433 = vmatprep.subr.mxu0 0.0
      %2434 = vmatpush1.msra.mxu0 0.0
      %2435 = vmatprep.subr.mxu0 0.0
      %2436 = vmatpush1.msra.mxu0 0.0
      %2437 = vmatprep.subr.mxu0 0.0
      %2438 = vmatpush1.msra.mxu0 0.0
      %2439 = vmatprep.subr.mxu0 0.0
      %2440 = vmatpush1.msra.mxu0 0.0
      %2441 = vmatprep.subr.mxu0 0.0
      %2442 = vmatpush1.msra.mxu0 0.0
      %2443 = vmatprep.subr.mxu0 0.0
      %2444 = vmatpush1.msra.mxu0 0.0
      %2445 = vmatprep.subr.mxu0 0.0
      %2446 = vmatpush1.msra.mxu0 0.0
      %2447 = vmatprep.subr.mxu0 0.0
      %2448 = vmatpush1.msra.mxu0 0.0
      %2449 = vmatprep.subr.mxu0 0.0
      %2450 = vmatpush1.msra.mxu0 0.0
      %2451 = vmatprep.subr.mxu0 0.0
      %2452 = vmatpush1.msra.mxu0 0.0
      %2453 = vmatprep.subr.mxu0 0.0
      %2454 = vmatpush1.msra.mxu0 0.0
      %2455 = vmatprep.subr.mxu0 0.0
      %2456 = vmatpush1.msra.mxu0 0.0
      %2457 = vmatprep.subr.mxu0 0.0
      %2458 = vmatpush1.msra.mxu0 0.0
      %2459 = vmatprep.subr.mxu0 0.0
      %2460 = vmatpush1.msra.mxu0 0.0
      %2461 = vmatprep.subr.mxu0 0.0
      %2462 = vmatpush1.msra.mxu0 0.0
      %2463 = vmatprep.subr.mxu0 0.0
      %2464 = vmatpush1.msra.mxu0 0.0
      %2465 = vmatprep.mubr.f32.mxu0 0.0
      %2466 = vmatmul.mubr.f32.gmra.mrb[0].mxu0 %v2257
      %v2467 = vpop.f32.mrb[0].mxu0
      %v2468 = vadd.f32 0.0, %v2467
      %v2469 = vpop.f32.mrb[0].mxu0
      %v2470 = vadd.f32 0.0, %v2469
      %2471 = vdwg.mxu0
      %2472 = vmatprep.subr.mxu0 %v562
      %2473 = vmatpush1.msra.mxu0 %v561
      %2474 = vmatprep.subr.mxu0 %v571
      %2475 = vmatpush1.msra.mxu0 %v570
      %2476 = vmatprep.subr.mxu0 %v580
      %2477 = vmatpush1.msra.mxu0 %v579
      %2478 = vmatprep.subr.mxu0 %v589
      %2479 = vmatpush1.msra.mxu0 %v588
      %2480 = vmatprep.subr.mxu0 0.0
      %2481 = vmatpush1.msra.mxu0 0.0
      %2482 = vmatprep.subr.mxu0 0.0
      %2483 = vmatpush1.msra.mxu0 0.0
      %2484 = vmatprep.subr.mxu0 0.0
      %2485 = vmatpush1.msra.mxu0 0.0
      %2486 = vmatprep.subr.mxu0 0.0
      %2487 = vmatpush1.msra.mxu0 0.0
      %2488 = vmatprep.subr.mxu0 0.0
      %2489 = vmatpush1.msra.mxu0 0.0
      %2490 = vmatprep.subr.mxu0 0.0
      %2491 = vmatpush1.msra.mxu0 0.0
      %2492 = vmatprep.subr.mxu0 0.0
      %2493 = vmatpush1.msra.mxu0 0.0
      %2494 = vmatprep.subr.mxu0 0.0
      %2495 = vmatpush1.msra.mxu0 0.0
      %2496 = vmatprep.subr.mxu0 0.0
      %2497 = vmatpush1.msra.mxu0 0.0
      %2498 = vmatprep.subr.mxu0 0.0
      %2499 = vmatpush1.msra.mxu0 0.0
      %2500 = vmatprep.subr.mxu0 0.0
      %2501 = vmatpush1.msra.mxu0 0.0
      %2502 = vmatprep.subr.mxu0 0.0
      %2503 = vmatpush1.msra.mxu0 0.0
      %2504 = vmatprep.subr.mxu0 0.0
      %2505 = vmatpush1.msra.mxu0 0.0
      %2506 = vmatprep.subr.mxu0 0.0
      %2507 = vmatpush1.msra.mxu0 0.0
      %2508 = vmatprep.subr.mxu0 0.0
      %2509 = vmatpush1.msra.mxu0 0.0
      %2510 = vmatprep.subr.mxu0 0.0
      %2511 = vmatpush1.msra.mxu0 0.0
      %2512 = vmatprep.subr.mxu0 0.0
      %2513 = vmatpush1.msra.mxu0 0.0
      %2514 = vmatprep.subr.mxu0 0.0
      %2515 = vmatpush1.msra.mxu0 0.0
      %2516 = vmatprep.subr.mxu0 0.0
      %2517 = vmatpush1.msra.mxu0 0.0
      %2518 = vmatprep.subr.mxu0 0.0
      %2519 = vmatpush1.msra.mxu0 0.0
      %2520 = vmatprep.subr.mxu0 0.0
      %2521 = vmatpush1.msra.mxu0 0.0
      %2522 = vmatprep.subr.mxu0 0.0
      %2523 = vmatpush1.msra.mxu0 0.0
      %2524 = vmatprep.subr.mxu0 0.0
      %2525 = vmatpush1.msra.mxu0 0.0
      %2526 = vmatprep.subr.mxu0 0.0
      %2527 = vmatpush1.msra.mxu0 0.0
      %2528 = vmatprep.subr.mxu0 0.0
      %2529 = vmatpush1.msra.mxu0 0.0
      %2530 = vmatprep.subr.mxu0 0.0
      %2531 = vmatpush1.msra.mxu0 0.0
      %2532 = vmatprep.subr.mxu0 0.0
      %2533 = vmatpush1.msra.mxu0 0.0
      %2534 = vmatprep.subr.mxu0 0.0
      %2535 = vmatpush1.msra.mxu0 0.0
      %2536 = vmatprep.mubr.f32.mxu0 0.0
      %2537 = vmatmul.mubr.f32.gmra.mrb[0].mxu0 %v2257
      %v2538 = vpop.f32.mrb[0].mxu0
      %v2539 = vadd.f32 0.0, %v2538
      %v2540 = vpop.f32.mrb[0].mxu0
      %v2541 = vadd.f32 0.0, %v2540
      %2542 = vdwg.mxu0
      %2543 = vmatprep.subr.mxu0 0.0
      %2544 = vmatpush1.msra.mxu0 %v563
      %2545 = vmatprep.subr.mxu0 0.0
      %2546 = vmatpush1.msra.mxu0 %v572
      %2547 = vmatprep.subr.mxu0 0.0
      %2548 = vmatpush1.msra.mxu0 %v581
      %2549 = vmatprep.subr.mxu0 0.0
      %2550 = vmatpush1.msra.mxu0 %v590
      %2551 = vmatprep.subr.mxu0 0.0
      %2552 = vmatpush1.msra.mxu0 0.0
      %2553 = vmatprep.subr.mxu0 0.0
      %2554 = vmatpush1.msra.mxu0 0.0
      %2555 = vmatprep.subr.mxu0 0.0
      %2556 = vmatpush1.msra.mxu0 0.0
      %2557 = vmatprep.subr.mxu0 0.0
      %2558 = vmatpush1.msra.mxu0 0.0
      %2559 = vmatprep.subr.mxu0 0.0
      %2560 = vmatpush1.msra.mxu0 0.0
      %2561 = vmatprep.subr.mxu0 0.0
      %2562 = vmatpush1.msra.mxu0 0.0
      %2563 = vmatprep.subr.mxu0 0.0
      %2564 = vmatpush1.msra.mxu0 0.0
      %2565 = vmatprep.subr.mxu0 0.0
      %2566 = vmatpush1.msra.mxu0 0.0
      %2567 = vmatprep.subr.mxu0 0.0
      %2568 = vmatpush1.msra.mxu0 0.0
      %2569 = vmatprep.subr.mxu0 0.0
      %2570 = vmatpush1.msra.mxu0 0.0
      %2571 = vmatprep.subr.mxu0 0.0
      %2572 = vmatpush1.msra.mxu0 0.0
      %2573 = vmatprep.subr.mxu0 0.0
      %2574 = vmatpush1.msra.mxu0 0.0
      %2575 = vmatprep.subr.mxu0 0.0
      %2576 = vmatpush1.msra.mxu0 0.0
      %2577 = vmatprep.subr.mxu0 0.0
      %2578 = vmatpush1.msra.mxu0 0.0
      %2579 = vmatprep.subr.mxu0 0.0
      %2580 = vmatpush1.msra.mxu0 0.0
      %2581 = vmatprep.subr.mxu0 0.0
      %2582 = vmatpush1.msra.mxu0 0.0
      %2583 = vmatprep.subr.mxu0 0.0
      %2584 = vmatpush1.msra.mxu0 0.0
      %2585 = vmatprep.subr.mxu0 0.0
      %2586 = vmatpush1.msra.mxu0 0.0
      %2587 = vmatprep.subr.mxu0 0.0
      %2588 = vmatpush1.msra.mxu0 0.0
      %2589 = vmatprep.subr.mxu0 0.0
      %2590 = vmatpush1.msra.mxu0 0.0
      %2591 = vmatprep.subr.mxu0 0.0
      %2592 = vmatpush1.msra.mxu0 0.0
      %2593 = vmatprep.subr.mxu0 0.0
      %2594 = vmatpush1.msra.mxu0 0.0
      %2595 = vmatprep.subr.mxu0 0.0
      %2596 = vmatpush1.msra.mxu0 0.0
      %2597 = vmatprep.subr.mxu0 0.0
      %2598 = vmatpush1.msra.mxu0 0.0
      %2599 = vmatprep.subr.mxu0 0.0
      %2600 = vmatpush1.msra.mxu0 0.0
      %2601 = vmatprep.subr.mxu0 0.0
      %2602 = vmatpush1.msra.mxu0 0.0
      %2603 = vmatprep.subr.mxu0 0.0
      %2604 = vmatpush1.msra.mxu0 0.0
      %2605 = vmatprep.subr.mxu0 0.0
      %2606 = vmatpush1.msra.mxu0 0.0
      %2607 = vmatprep.mubr.f32.mxu0 0.0
      %2608 = vmatmul.mubr.f32.gmra.mrb[0].mxu0 %v2257
      %v2609 = vpop.f32.mrb[0].mxu0
      %v2610 = vadd.f32 0.0, %v2609
      %v2611 = vpop.f32.mrb[0].mxu0
      %2612 = vdwg.mxu0
      %v2613 = vadd.f32 %v919, %v2326
      %v2614 = vadd.f32 %v921, %v2328
      %v2615 = vadd.f32 %v1008, %v2397
      %v2616 = vadd.f32 %v1010, %v2399
      %v2617 = vadd.f32 %v1097, %v2468
      %v2618 = vadd.f32 %v1099, %v2470
      %v2619 = vadd.f32 %v1186, %v2539
      %v2620 = vadd.f32 %v1188, %v2541
      %v2621 = vmul.f32 %v1948, 0.5
      %v2622 = vmul.f32 %v1949, 0.5
      %v2623 = vmul.f32 %v1950, 0.5
      %v2624 = vmul.f32 %v1951, 0.5
      %v2625 = vmul.f32 %v1952, 0.5
      %v2626 = vmul.f32 %v1953, 0.5
      %v2627 = vmul.f32 %v1954, 0.5
      %v2628 = vmul.f32 %v1955, 0.5
      %v2629 = vmul.f32 %v2613, 0.5
      %v2630 = vmul.f32 %v2614, 0.5
      %v2631 = vmul.f32 %v2615, 0.5
      %v2632 = vmul.f32 %v2616, 0.5
      %v2633 = vmul.f32 %v2617, 0.5
      %v2634 = vmul.f32 %v2618, 0.5
      %v2635 = vmul.f32 %v2619, 0.5
      %v2636 = vmul.f32 %v2620, 0.5
      %v2637 = vadd.f32 %v2621, %v2629
      %v2638 = vadd.f32 %v2622, %v2630
      %v2639 = vadd.f32 %v2623, %v2631
      %v2640 = vadd.f32 %v2624, %v2632
      %v2641 = vadd.f32 %v2625, %v2633
      %v2642 = vadd.f32 %v2626, %v2634
      %v2643 = vadd.f32 %v2627, %v2635
      %v2644 = vadd.f32 %v2628, %v2636
      %v2645 = vmul.f32 %v2637, %v1275
      %v2646 = vmul.f32 %v2638, %v1277
      %v2647 = vmul.f32 %v2639, %v1364
      %v2648 = vmul.f32 %v2640, %v1366
      %v2649 = vmul.f32 %v2641, %v1453
      %v2650 = vmul.f32 %v2642, %v1455
      %v2651 = vmul.f32 %v2643, %v1542
      %v2652 = vmul.f32 %v2644, %v1544
      %v2653 = vadd.f32 %v2610, %v1968
      %v2654 = vmul.f32 %v2254, 0.5
      %2655 = vmatprep.subr.mxu0 0.0
      %2656 = vmatpush1.msra.mxu0 %v592
      %2657 = vmatprep.subr.mxu0 0.0
      %2658 = vmatpush1.msra.mxu0 %v593
      %2659 = vmatprep.subr.mxu0 0.0
      %2660 = vmatpush1.msra.mxu0 %v594
      %2661 = vmatprep.subr.mxu0 0.0
      %2662 = vmatpush1.msra.mxu0 %v595
      %2663 = vmatprep.subr.mxu0 0.0
      %2664 = vmatpush1.msra.mxu0 %v596
      %2665 = vmatprep.subr.mxu0 0.0
      %2666 = vmatpush1.msra.mxu0 %v597
      %2667 = vmatprep.subr.mxu0 0.0
      %2668 = vmatpush1.msra.mxu0 %v598
      %2669 = vmatprep.subr.mxu0 0.0
      %2670 = vmatpush1.msra.mxu0 %v599
      %2671 = vmatprep.subr.mxu0 0.0
      %2672 = vmatpush1.msra.mxu0 %v600
      %2673 = vmatprep.subr.mxu0 0.0
      %2674 = vmatpush1.msra.mxu0 %v601
      %2675 = vmatprep.subr.mxu0 0.0
      %2676 = vmatpush1.msra.mxu0 %v602
      %2677 = vmatprep.subr.mxu0 0.0
      %2678 = vmatpush1.msra.mxu0 %v603
      %2679 = vmatprep.subr.mxu0 0.0
      %2680 = vmatpush1.msra.mxu0 %v604
      %2681 = vmatprep.subr.mxu0 0.0
      %2682 = vmatpush1.msra.mxu0 %v605
      %2683 = vmatprep.subr.mxu0 0.0
      %2684 = vmatpush1.msra.mxu0 %v606
      %2685 = vmatprep.subr.mxu0 0.0
      %2686 = vmatpush1.msra.mxu0 %v607
      %2687 = vmatprep.subr.mxu0 0.0
      %2688 = vmatpush1.msra.mxu0 %v608
      %2689 = vmatprep.subr.mxu0 0.0
      %2690 = vmatpush1.msra.mxu0 %v609
      %2691 = vmatprep.subr.mxu0 0.0
      %2692 = vmatpush1.msra.mxu0 %v610
      %2693 = vmatprep.subr.mxu0 0.0
      %2694 = vmatpush1.msra.mxu0 %v611
      %2695 = vmatprep.subr.mxu0 0.0
      %2696 = vmatpush1.msra.mxu0 %v612
      %2697 = vmatprep.subr.mxu0 0.0
      %2698 = vmatpush1.msra.mxu0 %v613
      %2699 = vmatprep.subr.mxu0 0.0
      %2700 = vmatpush1.msra.mxu0 %v614
      %2701 = vmatprep.subr.mxu0 0.0
      %2702 = vmatpush1.msra.mxu0 %v615
      %2703 = vmatprep.subr.mxu0 0.0
      %2704 = vmatpush1.msra.mxu0 %v616
      %2705 = vmatprep.subr.mxu0 0.0
      %2706 = vmatpush1.msra.mxu0 %v617
      %2707 = vmatprep.subr.mxu0 0.0
      %2708 = vmatpush1.msra.mxu0 %v618
      %2709 = vmatprep.subr.mxu0 0.0
      %2710 = vmatpush1.msra.mxu0 %v619
      %2711 = vmatprep.subr.mxu0 0.0
      %2712 = vmatpush1.msra.mxu0 %v620
      %2713 = vmatprep.subr.mxu0 0.0
      %2714 = vmatpush1.msra.mxu0 %v621
      %2715 = vmatprep.subr.mxu0 0.0
      %2716 = vmatpush1.msra.mxu0 %v622
      %2717 = vmatprep.subr.mxu0 0.0
      %2718 = vmatpush1.msra.mxu0 %v623
      %2719 = vmatprep.mubr.f32.mxu0 %v2646
      %2720 = vmatmul.mubr.f32.gmra.mrb[0].mxu0 %v2645
      %v2721 = vpop.f32.mrb[0].mxu0
      %v2722 = vadd.f32 %v2653, %v2721
      %v2723 = vpop.f32.mrb[0].mxu0
      %2724 = vdwg.mxu0
      %2725 = vmatprep.subr.mxu0 0.0
      %2726 = vmatpush1.msra.mxu0 %v624
      %2727 = vmatprep.subr.mxu0 0.0
      %2728 = vmatpush1.msra.mxu0 %v625
      %2729 = vmatprep.subr.mxu0 0.0
      %2730 = vmatpush1.msra.mxu0 %v626
      %2731 = vmatprep.subr.mxu0 0.0
      %2732 = vmatpush1.msra.mxu0 %v627
      %2733 = vmatprep.subr.mxu0 0.0
      %2734 = vmatpush1.msra.mxu0 %v628
      %2735 = vmatprep.subr.mxu0 0.0
      %2736 = vmatpush1.msra.mxu0 %v629
      %2737 = vmatprep.subr.mxu0 0.0
      %2738 = vmatpush1.msra.mxu0 %v630
      %2739 = vmatprep.subr.mxu0 0.0
      %2740 = vmatpush1.msra.mxu0 %v631
      %2741 = vmatprep.subr.mxu0 0.0
      %2742 = vmatpush1.msra.mxu0 %v632
      %2743 = vmatprep.subr.mxu0 0.0
      %2744 = vmatpush1.msra.mxu0 %v633
      %2745 = vmatprep.subr.mxu0 0.0
      %2746 = vmatpush1.msra.mxu0 %v634
      %2747 = vmatprep.subr.mxu0 0.0
      %2748 = vmatpush1.msra.mxu0 %v635
      %2749 = vmatprep.subr.mxu0 0.0
      %2750 = vmatpush1.msra.mxu0 %v636
      %2751 = vmatprep.subr.mxu0 0.0
      %2752 = vmatpush1.msra.mxu0 %v637
      %2753 = vmatprep.subr.mxu0 0.0
      %2754 = vmatpush1.msra.mxu0 %v638
      %2755 = vmatprep.subr.mxu0 0.0
      %2756 = vmatpush1.msra.mxu0 %v639
      %2757 = vmatprep.subr.mxu0 0.0
      %2758 = vmatpush1.msra.mxu0 %v640
      %2759 = vmatprep.subr.mxu0 0.0
      %2760 = vmatpush1.msra.mxu0 %v641
      %2761 = vmatprep.subr.mxu0 0.0
      %2762 = vmatpush1.msra.mxu0 %v642
      %2763 = vmatprep.subr.mxu0 0.0
      %2764 = vmatpush1.msra.mxu0 %v643
      %2765 = vmatprep.subr.mxu0 0.0
      %2766 = vmatpush1.msra.mxu0 %v644
      %2767 = vmatprep.subr.mxu0 0.0
      %2768 = vmatpush1.msra.mxu0 %v645
      %2769 = vmatprep.subr.mxu0 0.0
      %2770 = vmatpush1.msra.mxu0 %v646
      %2771 = vmatprep.subr.mxu0 0.0
      %2772 = vmatpush1.msra.mxu0 %v647
      %2773 = vmatprep.subr.mxu0 0.0
      %2774 = vmatpush1.msra.mxu0 %v648
      %2775 = vmatprep.subr.mxu0 0.0
      %2776 = vmatpush1.msra.mxu0 %v649
      %2777 = vmatprep.subr.mxu0 0.0
      %2778 = vmatpush1.msra.mxu0 %v650
      %2779 = vmatprep.subr.mxu0 0.0
      %2780 = vmatpush1.msra.mxu0 %v651
      %2781 = vmatprep.subr.mxu0 0.0
      %2782 = vmatpush1.msra.mxu0 %v652
      %2783 = vmatprep.subr.mxu0 0.0
      %2784 = vmatpush1.msra.mxu0 %v653
      %2785 = vmatprep.subr.mxu0 0.0
      %2786 = vmatpush1.msra.mxu0 %v654
      %2787 = vmatprep.subr.mxu0 0.0
      %2788 = vmatpush1.msra.mxu0 %v655
      %2789 = vmatprep.mubr.f32.mxu0 %v2648
      %2790 = vmatmul.mubr.f32.gmra.mrb[0].mxu0 %v2647
      %v2791 = vpop.f32.mrb[0].mxu0
      %v2792 = vadd.f32 %v2722, %v2791
      %v2793 = vpop.f32.mrb[0].mxu0
      %2794 = vdwg.mxu0
      %2795 = vmatprep.subr.mxu0 0.0
      %2796 = vmatpush1.msra.mxu0 %v656
      %2797 = vmatprep.subr.mxu0 0.0
      %2798 = vmatpush1.msra.mxu0 %v657
      %2799 = vmatprep.subr.mxu0 0.0
      %2800 = vmatpush1.msra.mxu0 %v658
      %2801 = vmatprep.subr.mxu0 0.0
      %2802 = vmatpush1.msra.mxu0 %v659
      %2803 = vmatprep.subr.mxu0 0.0
      %2804 = vmatpush1.msra.mxu0 %v660
      %2805 = vmatprep.subr.mxu0 0.0
      %2806 = vmatpush1.msra.mxu0 %v661
      %2807 = vmatprep.subr.mxu0 0.0
      %2808 = vmatpush1.msra.mxu0 %v662
      %2809 = vmatprep.subr.mxu0 0.0
      %2810 = vmatpush1.msra.mxu0 %v663
      %2811 = vmatprep.subr.mxu0 0.0
      %2812 = vmatpush1.msra.mxu0 %v664
      %2813 = vmatprep.subr.mxu0 0.0
      %2814 = vmatpush1.msra.mxu0 %v665
      %2815 = vmatprep.subr.mxu0 0.0
      %2816 = vmatpush1.msra.mxu0 %v666
      %2817 = vmatprep.subr.mxu0 0.0
      %2818 = vmatpush1.msra.mxu0 %v667
      %2819 = vmatprep.subr.mxu0 0.0
      %2820 = vmatpush1.msra.mxu0 %v668
      %2821 = vmatprep.subr.mxu0 0.0
      %2822 = vmatpush1.msra.mxu0 %v669
      %2823 = vmatprep.subr.mxu0 0.0
      %2824 = vmatpush1.msra.mxu0 %v670
      %2825 = vmatprep.subr.mxu0 0.0
      %2826 = vmatpush1.msra.mxu0 %v671
      %2827 = vmatprep.subr.mxu0 0.0
      %2828 = vmatpush1.msra.mxu0 %v672
      %2829 = vmatprep.subr.mxu0 0.0
      %2830 = vmatpush1.msra.mxu0 %v673
      %2831 = vmatprep.subr.mxu0 0.0
      %2832 = vmatpush1.msra.mxu0 %v674
      %2833 = vmatprep.subr.mxu0 0.0
      %2834 = vmatpush1.msra.mxu0 %v675
      %2835 = vmatprep.subr.mxu0 0.0
      %2836 = vmatpush1.msra.mxu0 %v676
      %2837 = vmatprep.subr.mxu0 0.0
      %2838 = vmatpush1.msra.mxu0 %v677
      %2839 = vmatprep.subr.mxu0 0.0
      %2840 = vmatpush1.msra.mxu0 %v678
      %2841 = vmatprep.subr.mxu0 0.0
      %2842 = vmatpush1.msra.mxu0 %v679
      %2843 = vmatprep.subr.mxu0 0.0
      %2844 = vmatpush1.msra.mxu0 %v680
      %2845 = vmatprep.subr.mxu0 0.0
      %2846 = vmatpush1.msra.mxu0 %v681
      %2847 = vmatprep.subr.mxu0 0.0
      %2848 = vmatpush1.msra.mxu0 %v682
      %2849 = vmatprep.subr.mxu0 0.0
      %2850 = vmatpush1.msra.mxu0 %v683
      %2851 = vmatprep.subr.mxu0 0.0
      %2852 = vmatpush1.msra.mxu0 %v684
      %2853 = vmatprep.subr.mxu0 0.0
      %2854 = vmatpush1.msra.mxu0 %v685
      %2855 = vmatprep.subr.mxu0 0.0
      %2856 = vmatpush1.msra.mxu0 %v686
      %2857 = vmatprep.subr.mxu0 0.0
      %2858 = vmatpush1.msra.mxu0 %v687
      %2859 = vmatprep.mubr.f32.mxu0 %v2650
      %2860 = vmatmul.mubr.f32.gmra.mrb[0].mxu0 %v2649
      %v2861 = vpop.f32.mrb[0].mxu0
      %v2862 = vadd.f32 %v2792, %v2861
      %v2863 = vpop.f32.mrb[0].mxu0
      %2864 = vdwg.mxu0
      %2865 = vmatprep.subr.mxu0 0.0
      %2866 = vmatpush1.msra.mxu0 %v688
      %2867 = vmatprep.subr.mxu0 0.0
      %2868 = vmatpush1.msra.mxu0 %v689
      %2869 = vmatprep.subr.mxu0 0.0
      %2870 = vmatpush1.msra.mxu0 %v690
      %2871 = vmatprep.subr.mxu0 0.0
      %2872 = vmatpush1.msra.mxu0 %v691
      %2873 = vmatprep.subr.mxu0 0.0
      %2874 = vmatpush1.msra.mxu0 %v692
      %2875 = vmatprep.subr.mxu0 0.0
      %2876 = vmatpush1.msra.mxu0 %v693
      %2877 = vmatprep.subr.mxu0 0.0
      %2878 = vmatpush1.msra.mxu0 %v694
      %2879 = vmatprep.subr.mxu0 0.0
      %2880 = vmatpush1.msra.mxu0 %v695
      %2881 = vmatprep.subr.mxu0 0.0
      %2882 = vmatpush1.msra.mxu0 %v696
      %2883 = vmatprep.subr.mxu0 0.0
      %2884 = vmatpush1.msra.mxu0 %v697
      %2885 = vmatprep.subr.mxu0 0.0
      %2886 = vmatpush1.msra.mxu0 %v698
      %2887 = vmatprep.subr.mxu0 0.0
      %2888 = vmatpush1.msra.mxu0 %v699
      %2889 = vmatprep.subr.mxu0 0.0
      %2890 = vmatpush1.msra.mxu0 %v700
      %2891 = vmatprep.subr.mxu0 0.0
      %2892 = vmatpush1.msra.mxu0 %v701
      %2893 = vmatprep.subr.mxu0 0.0
      %2894 = vmatpush1.msra.mxu0 %v702
      %2895 = vmatprep.subr.mxu0 0.0
      %2896 = vmatpush1.msra.mxu0 %v703
      %2897 = vmatprep.subr.mxu0 0.0
      %2898 = vmatpush1.msra.mxu0 %v704
      %2899 = vmatprep.subr.mxu0 0.0
      %2900 = vmatpush1.msra.mxu0 %v705
      %2901 = vmatprep.subr.mxu0 0.0
      %2902 = vmatpush1.msra.mxu0 %v706
      %2903 = vmatprep.subr.mxu0 0.0
      %2904 = vmatpush1.msra.mxu0 %v707
      %2905 = vmatprep.subr.mxu0 0.0
      %2906 = vmatpush1.msra.mxu0 %v708
      %2907 = vmatprep.subr.mxu0 0.0
      %2908 = vmatpush1.msra.mxu0 %v709
      %2909 = vmatprep.subr.mxu0 0.0
      %2910 = vmatpush1.msra.mxu0 %v710
      %2911 = vmatprep.subr.mxu0 0.0
      %2912 = vmatpush1.msra.mxu0 %v711
      %2913 = vmatprep.subr.mxu0 0.0
      %2914 = vmatpush1.msra.mxu0 %v712
      %2915 = vmatprep.subr.mxu0 0.0
      %2916 = vmatpush1.msra.mxu0 %v713
      %2917 = vmatprep.subr.mxu0 0.0
      %2918 = vmatpush1.msra.mxu0 %v714
      %2919 = vmatprep.subr.mxu0 0.0
      %2920 = vmatpush1.msra.mxu0 %v715
      %2921 = vmatprep.subr.mxu0 0.0
      %2922 = vmatpush1.msra.mxu0 %v716
      %2923 = vmatprep.subr.mxu0 0.0
      %2924 = vmatpush1.msra.mxu0 %v717
      %2925 = vmatprep.subr.mxu0 0.0
      %2926 = vmatpush1.msra.mxu0 %v718
      %2927 = vmatprep.subr.mxu0 0.0
      %2928 = vmatpush1.msra.mxu0 %v719
      %2929 = vmatprep.mubr.f32.mxu0 %v2652
      %2930 = vmatmul.mubr.f32.gmra.mrb[0].mxu0 %v2651
      %v2931 = vpop.f32.mrb[0].mxu0
      %v2932 = vadd.f32 %v2862, %v2931
      %v2933 = vpop.f32.mrb[0].mxu0
      %2934 = vdwg.mxu0
      %v2935 = vmax.f32 %v2932, 0.0
      %v2936 = vmul.f32 %v2935, 0.5
      %v2937 = vadd.f32 %v2654, %v2936
      %2938 = vst.msk [vmem:[%s429 + $0x8] sm:$0xff] %vm833, %v2937
      %v2940 = vsel %vm833, %v2937, 0
      %2942 = vmatprep.subr.mxu0 %v556
      %2943 = vmatpush1.msra.mxu0 %v555
      %2944 = vmatprep.subr.mxu0 %v565
      %2945 = vmatpush1.msra.mxu0 %v564
      %2946 = vmatprep.subr.mxu0 %v574
      %2947 = vmatpush1.msra.mxu0 %v573
      %2948 = vmatprep.subr.mxu0 %v583
      %2949 = vmatpush1.msra.mxu0 %v582
      %2950 = vmatprep.subr.mxu0 0.0
      %2951 = vmatpush1.msra.mxu0 0.0
      %2952 = vmatprep.subr.mxu0 0.0
      %2953 = vmatpush1.msra.mxu0 0.0
      %2954 = vmatprep.subr.mxu0 0.0
      %2955 = vmatpush1.msra.mxu0 0.0
      %2956 = vmatprep.subr.mxu0 0.0
      %2957 = vmatpush1.msra.mxu0 0.0
      %2958 = vmatprep.subr.mxu0 0.0
      %2959 = vmatpush1.msra.mxu0 0.0
      %2960 = vmatprep.subr.mxu0 0.0
      %2961 = vmatpush1.msra.mxu0 0.0
      %2962 = vmatprep.subr.mxu0 0.0
      %2963 = vmatpush1.msra.mxu0 0.0
      %2964 = vmatprep.subr.mxu0 0.0
      %2965 = vmatpush1.msra.mxu0 0.0
      %2966 = vmatprep.subr.mxu0 0.0
      %2967 = vmatpush1.msra.mxu0 0.0
      %2968 = vmatprep.subr.mxu0 0.0
      %2969 = vmatpush1.msra.mxu0 0.0
      %2970 = vmatprep.subr.mxu0 0.0
      %2971 = vmatpush1.msra.mxu0 0.0
      %2972 = vmatprep.subr.mxu0 0.0
      %2973 = vmatpush1.msra.mxu0 0.0
      %2974 = vmatprep.subr.mxu0 0.0
      %2975 = vmatpush1.msra.mxu0 0.0
      %2976 = vmatprep.subr.mxu0 0.0
      %2977 = vmatpush1.msra.mxu0 0.0
      %2978 = vmatprep.subr.mxu0 0.0
      %2979 = vmatpush1.msra.mxu0 0.0
      %2980 = vmatprep.subr.mxu0 0.0
      %2981 = vmatpush1.msra.mxu0 0.0
      %2982 = vmatprep.subr.mxu0 0.0
      %2983 = vmatpush1.msra.mxu0 0.0
      %2984 = vmatprep.subr.mxu0 0.0
      %2985 = vmatpush1.msra.mxu0 0.0
      %2986 = vmatprep.subr.mxu0 0.0
      %2987 = vmatpush1.msra.mxu0 0.0
      %2988 = vmatprep.subr.mxu0 0.0
      %2989 = vmatpush1.msra.mxu0 0.0
      %2990 = vmatprep.subr.mxu0 0.0
      %2991 = vmatpush1.msra.mxu0 0.0
      %2992 = vmatprep.subr.mxu0 0.0
      %2993 = vmatpush1.msra.mxu0 0.0
      %2994 = vmatprep.subr.mxu0 0.0
      %2995 = vmatpush1.msra.mxu0 0.0
      %2996 = vmatprep.subr.mxu0 0.0
      %2997 = vmatpush1.msra.mxu0 0.0
      %2998 = vmatprep.subr.mxu0 0.0
      %2999 = vmatpush1.msra.mxu0 0.0
      %3000 = vmatprep.subr.mxu0 0.0
      %3001 = vmatpush1.msra.mxu0 0.0
      %3002 = vmatprep.subr.mxu0 0.0
      %3003 = vmatpush1.msra.mxu0 0.0
      %3004 = vmatprep.subr.mxu0 0.0
      %3005 = vmatpush1.msra.mxu0 0.0
      %3006 = vmatprep.mubr.f32.mxu0 0.0
      %3007 = vmatmul.mubr.f32.gmra.mrb[0].mxu0 %v2940
      %v3008 = vpop.f32.mrb[0].mxu0
      %v3009 = vadd.f32 0.0, %v3008
      %v3010 = vpop.f32.mrb[0].mxu0
      %v3011 = vadd.f32 0.0, %v3010
      %3012 = vdwg.mxu0
      %3013 = vmatprep.subr.mxu0 %v558
      %3014 = vmatpush1.msra.mxu0 %v557
      %3015 = vmatprep.subr.mxu0 %v567
      %3016 = vmatpush1.msra.mxu0 %v566
      %3017 = vmatprep.subr.mxu0 %v576
      %3018 = vmatpush1.msra.mxu0 %v575
      %3019 = vmatprep.subr.mxu0 %v585
      %3020 = vmatpush1.msra.mxu0 %v584
      %3021 = vmatprep.subr.mxu0 0.0
      %3022 = vmatpush1.msra.mxu0 0.0
      %3023 = vmatprep.subr.mxu0 0.0
      %3024 = vmatpush1.msra.mxu0 0.0
      %3025 = vmatprep.subr.mxu0 0.0
      %3026 = vmatpush1.msra.mxu0 0.0
      %3027 = vmatprep.subr.mxu0 0.0
      %3028 = vmatpush1.msra.mxu0 0.0
      %3029 = vmatprep.subr.mxu0 0.0
      %3030 = vmatpush1.msra.mxu0 0.0
      %3031 = vmatprep.subr.mxu0 0.0
      %3032 = vmatpush1.msra.mxu0 0.0
      %3033 = vmatprep.subr.mxu0 0.0
      %3034 = vmatpush1.msra.mxu0 0.0
      %3035 = vmatprep.subr.mxu0 0.0
      %3036 = vmatpush1.msra.mxu0 0.0
      %3037 = vmatprep.subr.mxu0 0.0
      %3038 = vmatpush1.msra.mxu0 0.0
      %3039 = vmatprep.subr.mxu0 0.0
      %3040 = vmatpush1.msra.mxu0 0.0
      %3041 = vmatprep.subr.mxu0 0.0
      %3042 = vmatpush1.msra.mxu0 0.0
      %3043 = vmatprep.subr.mxu0 0.0
      %3044 = vmatpush1.msra.mxu0 0.0
      %3045 = vmatprep.subr.mxu0 0.0
      %3046 = vmatpush1.msra.mxu0 0.0
      %3047 = vmatprep.subr.mxu0 0.0
      %3048 = vmatpush1.msra.mxu0 0.0
      %3049 = vmatprep.subr.mxu0 0.0
      %3050 = vmatpush1.msra.mxu0 0.0
      %3051 = vmatprep.subr.mxu0 0.0
      %3052 = vmatpush1.msra.mxu0 0.0
      %3053 = vmatprep.subr.mxu0 0.0
      %3054 = vmatpush1.msra.mxu0 0.0
      %3055 = vmatprep.subr.mxu0 0.0
      %3056 = vmatpush1.msra.mxu0 0.0
      %3057 = vmatprep.subr.mxu0 0.0
      %3058 = vmatpush1.msra.mxu0 0.0
      %3059 = vmatprep.subr.mxu0 0.0
      %3060 = vmatpush1.msra.mxu0 0.0
      %3061 = vmatprep.subr.mxu0 0.0
      %3062 = vmatpush1.msra.mxu0 0.0
      %3063 = vmatprep.subr.mxu0 0.0
      %3064 = vmatpush1.msra.mxu0 0.0
      %3065 = vmatprep.subr.mxu0 0.0
      %3066 = vmatpush1.msra.mxu0 0.0
      %3067 = vmatprep.subr.mxu0 0.0
      %3068 = vmatpush1.msra.mxu0 0.0
      %3069 = vmatprep.subr.mxu0 0.0
      %3070 = vmatpush1.msra.mxu0 0.0
      %3071 = vmatprep.subr.mxu0 0.0
      %3072 = vmatpush1.msra.mxu0 0.0
      %3073 = vmatprep.subr.mxu0 0.0
      %3074 = vmatpush1.msra.mxu0 0.0
      %3075 = vmatprep.subr.mxu0 0.0
      %3076 = vmatpush1.msra.mxu0 0.0
      %3077 = vmatprep.mubr.f32.mxu0 0.0
      %3078 = vmatmul.mubr.f32.gmra.mrb[0].mxu0 %v2940
      %v3079 = vpop.f32.mrb[0].mxu0
      %v3080 = vadd.f32 0.0, %v3079
      %v3081 = vpop.f32.mrb[0].mxu0
      %v3082 = vadd.f32 0.0, %v3081
      %3083 = vdwg.mxu0
      %3084 = vmatprep.subr.mxu0 %v560
      %3085 = vmatpush1.msra.mxu0 %v559
      %3086 = vmatprep.subr.mxu0 %v569
      %3087 = vmatpush1.msra.mxu0 %v568
      %3088 = vmatprep.subr.mxu0 %v578
      %3089 = vmatpush1.msra.mxu0 %v577
      %3090 = vmatprep.subr.mxu0 %v587
      %3091 = vmatpush1.msra.mxu0 %v586
      %3092 = vmatprep.subr.mxu0 0.0
      %3093 = vmatpush1.msra.mxu0 0.0
      %3094 = vmatprep.subr.mxu0 0.0
      %3095 = vmatpush1.msra.mxu0 0.0
      %3096 = vmatprep.subr.mxu0 0.0
      %3097 = vmatpush1.msra.mxu0 0.0
      %3098 = vmatprep.subr.mxu0 0.0
      %3099 = vmatpush1.msra.mxu0 0.0
      %3100 = vmatprep.subr.mxu0 0.0
      %3101 = vmatpush1.msra.mxu0 0.0
      %3102 = vmatprep.subr.mxu0 0.0
      %3103 = vmatpush1.msra.mxu0 0.0
      %3104 = vmatprep.subr.mxu0 0.0
      %3105 = vmatpush1.msra.mxu0 0.0
      %3106 = vmatprep.subr.mxu0 0.0
      %3107 = vmatpush1.msra.mxu0 0.0
      %3108 = vmatprep.subr.mxu0 0.0
      %3109 = vmatpush1.msra.mxu0 0.0
      %3110 = vmatprep.subr.mxu0 0.0
      %3111 = vmatpush1.msra.mxu0 0.0
      %3112 = vmatprep.subr.mxu0 0.0
      %3113 = vmatpush1.msra.mxu0 0.0
      %3114 = vmatprep.subr.mxu0 0.0
      %3115 = vmatpush1.msra.mxu0 0.0
      %3116 = vmatprep.subr.mxu0 0.0
      %3117 = vmatpush1.msra.mxu0 0.0
      %3118 = vmatprep.subr.mxu0 0.0
      %3119 = vmatpush1.msra.mxu0 0.0
      %3120 = vmatprep.subr.mxu0 0.0
      %3121 = vmatpush1.msra.mxu0 0.0
      %3122 = vmatprep.subr.mxu0 0.0
      %3123 = vmatpush1.msra.mxu0 0.0
      %3124 = vmatprep.subr.mxu0 0.0
      %3125 = vmatpush1.msra.mxu0 0.0
      %3126 = vmatprep.subr.mxu0 0.0
      %3127 = vmatpush1.msra.mxu0 0.0
      %3128 = vmatprep.subr.mxu0 0.0
      %3129 = vmatpush1.msra.mxu0 0.0
      %3130 = vmatprep.subr.mxu0 0.0
      %3131 = vmatpush1.msra.mxu0 0.0
      %3132 = vmatprep.subr.mxu0 0.0
      %3133 = vmatpush1.msra.mxu0 0.0
      %3134 = vmatprep.subr.mxu0 0.0
      %3135 = vmatpush1.msra.mxu0 0.0
      %3136 = vmatprep.subr.mxu0 0.0
      %3137 = vmatpush1.msra.mxu0 0.0
      %3138 = vmatprep.subr.mxu0 0.0
      %3139 = vmatpush1.msra.mxu0 0.0
      %3140 = vmatprep.subr.mxu0 0.0
      %3141 = vmatpush1.msra.mxu0 0.0
      %3142 = vmatprep.subr.mxu0 0.0
      %3143 = vmatpush1.msra.mxu0 0.0
      %3144 = vmatprep.subr.mxu0 0.0
      %3145 = vmatpush1.msra.mxu0 0.0
      %3146 = vmatprep.subr.mxu0 0.0
      %3147 = vmatpush1.msra.mxu0 0.0
      %3148 = vmatprep.mubr.f32.mxu0 0.0
      %3149 = vmatmul.mubr.f32.gmra.mrb[0].mxu0 %v2940
      %v3150 = vpop.f32.mrb[0].mxu0
      %v3151 = vadd.f32 0.0, %v3150
      %v3152 = vpop.f32.mrb[0].mxu0
      %v3153 = vadd.f32 0.0, %v3152
      %3154 = vdwg.mxu0
      %3155 = vmatprep.subr.mxu0 %v562
      %3156 = vmatpush1.msra.mxu0 %v561
      %3157 = vmatprep.subr.mxu0 %v571
      %3158 = vmatpush1.msra.mxu0 %v570
      %3159 = vmatprep.subr.mxu0 %v580
      %3160 = vmatpush1.msra.mxu0 %v579
      %3161 = vmatprep.subr.mxu0 %v589
      %3162 = vmatpush1.msra.mxu0 %v588
      %3163 = vmatprep.subr.mxu0 0.0
      %3164 = vmatpush1.msra.mxu0 0.0
      %3165 = vmatprep.subr.mxu0 0.0
      %3166 = vmatpush1.msra.mxu0 0.0
      %3167 = vmatprep.subr.mxu0 0.0
      %3168 = vmatpush1.msra.mxu0 0.0
      %3169 = vmatprep.subr.mxu0 0.0
      %3170 = vmatpush1.msra.mxu0 0.0
      %3171 = vmatprep.subr.mxu0 0.0
      %3172 = vmatpush1.msra.mxu0 0.0
      %3173 = vmatprep.subr.mxu0 0.0
      %3174 = vmatpush1.msra.mxu0 0.0
      %3175 = vmatprep.subr.mxu0 0.0
      %3176 = vmatpush1.msra.mxu0 0.0
      %3177 = vmatprep.subr.mxu0 0.0
      %3178 = vmatpush1.msra.mxu0 0.0
      %3179 = vmatprep.subr.mxu0 0.0
      %3180 = vmatpush1.msra.mxu0 0.0
      %3181 = vmatprep.subr.mxu0 0.0
      %3182 = vmatpush1.msra.mxu0 0.0
      %3183 = vmatprep.subr.mxu0 0.0
      %3184 = vmatpush1.msra.mxu0 0.0
      %3185 = vmatprep.subr.mxu0 0.0
      %3186 = vmatpush1.msra.mxu0 0.0
      %3187 = vmatprep.subr.mxu0 0.0
      %3188 = vmatpush1.msra.mxu0 0.0
      %3189 = vmatprep.subr.mxu0 0.0
      %3190 = vmatpush1.msra.mxu0 0.0
      %3191 = vmatprep.subr.mxu0 0.0
      %3192 = vmatpush1.msra.mxu0 0.0
      %3193 = vmatprep.subr.mxu0 0.0
      %3194 = vmatpush1.msra.mxu0 0.0
      %3195 = vmatprep.subr.mxu0 0.0
      %3196 = vmatpush1.msra.mxu0 0.0
      %3197 = vmatprep.subr.mxu0 0.0
      %3198 = vmatpush1.msra.mxu0 0.0
      %3199 = vmatprep.subr.mxu0 0.0
      %3200 = vmatpush1.msra.mxu0 0.0
      %3201 = vmatprep.subr.mxu0 0.0
      %3202 = vmatpush1.msra.mxu0 0.0
      %3203 = vmatprep.subr.mxu0 0.0
      %3204 = vmatpush1.msra.mxu0 0.0
      %3205 = vmatprep.subr.mxu0 0.0
      %3206 = vmatpush1.msra.mxu0 0.0
      %3207 = vmatprep.subr.mxu0 0.0
      %3208 = vmatpush1.msra.mxu0 0.0
      %3209 = vmatprep.subr.mxu0 0.0
      %3210 = vmatpush1.msra.mxu0 0.0
      %3211 = vmatprep.subr.mxu0 0.0
      %3212 = vmatpush1.msra.mxu0 0.0
      %3213 = vmatprep.subr.mxu0 0.0
      %3214 = vmatpush1.msra.mxu0 0.0
      %3215 = vmatprep.subr.mxu0 0.0
      %3216 = vmatpush1.msra.mxu0 0.0
      %3217 = vmatprep.subr.mxu0 0.0
      %3218 = vmatpush1.msra.mxu0 0.0
      %3219 = vmatprep.mubr.f32.mxu0 0.0
      %3220 = vmatmul.mubr.f32.gmra.mrb[0].mxu0 %v2940
      %v3221 = vpop.f32.mrb[0].mxu0
      %v3222 = vadd.f32 0.0, %v3221
      %v3223 = vpop.f32.mrb[0].mxu0
      %v3224 = vadd.f32 0.0, %v3223
      %3225 = vdwg.mxu0
      %3226 = vmatprep.subr.mxu0 0.0
      %3227 = vmatpush1.msra.mxu0 %v563
      %3228 = vmatprep.subr.mxu0 0.0
      %3229 = vmatpush1.msra.mxu0 %v572
      %3230 = vmatprep.subr.mxu0 0.0
      %3231 = vmatpush1.msra.mxu0 %v581
      %3232 = vmatprep.subr.mxu0 0.0
      %3233 = vmatpush1.msra.mxu0 %v590
      %3234 = vmatprep.subr.mxu0 0.0
      %3235 = vmatpush1.msra.mxu0 0.0
      %3236 = vmatprep.subr.mxu0 0.0
      %3237 = vmatpush1.msra.mxu0 0.0
      %3238 = vmatprep.subr.mxu0 0.0
      %3239 = vmatpush1.msra.mxu0 0.0
      %3240 = vmatprep.subr.mxu0 0.0
      %3241 = vmatpush1.msra.mxu0 0.0
      %3242 = vmatprep.subr.mxu0 0.0
      %3243 = vmatpush1.msra.mxu0 0.0
      %3244 = vmatprep.subr.mxu0 0.0
      %3245 = vmatpush1.msra.mxu0 0.0
      %3246 = vmatprep.subr.mxu0 0.0
      %3247 = vmatpush1.msra.mxu0 0.0
      %3248 = vmatprep.subr.mxu0 0.0
      %3249 = vmatpush1.msra.mxu0 0.0
      %3250 = vmatprep.subr.mxu0 0.0
      %3251 = vmatpush1.msra.mxu0 0.0
      %3252 = vmatprep.subr.mxu0 0.0
      %3253 = vmatpush1.msra.mxu0 0.0
      %3254 = vmatprep.subr.mxu0 0.0
      %3255 = vmatpush1.msra.mxu0 0.0
      %3256 = vmatprep.subr.mxu0 0.0
      %3257 = vmatpush1.msra.mxu0 0.0
      %3258 = vmatprep.subr.mxu0 0.0
      %3259 = vmatpush1.msra.mxu0 0.0
      %3260 = vmatprep.subr.mxu0 0.0
      %3261 = vmatpush1.msra.mxu0 0.0
      %3262 = vmatprep.subr.mxu0 0.0
      %3263 = vmatpush1.msra.mxu0 0.0
      %3264 = vmatprep.subr.mxu0 0.0
      %3265 = vmatpush1.msra.mxu0 0.0
      %3266 = vmatprep.subr.mxu0 0.0
      %3267 = vmatpush1.msra.mxu0 0.0
      %3268 = vmatprep.subr.mxu0 0.0
      %3269 = vmatpush1.msra.mxu0 0.0
      %3270 = vmatprep.subr.mxu0 0.0
      %3271 = vmatpush1.msra.mxu0 0.0
      %3272 = vmatprep.subr.mxu0 0.0
      %3273 = vmatpush1.msra.mxu0 0.0
      %3274 = vmatprep.subr.mxu0 0.0
      %3275 = vmatpush1.msra.mxu0 0.0
      %3276 = vmatprep.subr.mxu0 0.0
      %3277 = vmatpush1.msra.mxu0 0.0
      %3278 = vmatprep.subr.mxu0 0.0
      %3279 = vmatpush1.msra.mxu0 0.0
      %3280 = vmatprep.subr.mxu0 0.0
      %3281 = vmatpush1.msra.mxu0 0.0
      %3282 = vmatprep.subr.mxu0 0.0
      %3283 = vmatpush1.msra.mxu0 0.0
      %3284 = vmatprep.subr.mxu0 0.0
      %3285 = vmatpush1.msra.mxu0 0.0
      %3286 = vmatprep.subr.mxu0 0.0
      %3287 = vmatpush1.msra.mxu0 0.0
      %3288 = vmatprep.subr.mxu0 0.0
      %3289 = vmatpush1.msra.mxu0 0.0
      %3290 = vmatprep.mubr.f32.mxu0 0.0
      %3291 = vmatmul.mubr.f32.gmra.mrb[0].mxu0 %v2940
      %v3292 = vpop.f32.mrb[0].mxu0
      %v3293 = vadd.f32 0.0, %v3292
      %v3294 = vpop.f32.mrb[0].mxu0
      %3295 = vdwg.mxu0
      %v3296 = vadd.f32 %v925, %v3009
      %v3297 = vadd.f32 %v927, %v3011
      %v3298 = vadd.f32 %v1014, %v3080
      %v3299 = vadd.f32 %v1016, %v3082
      %v3300 = vadd.f32 %v1103, %v3151
      %v3301 = vadd.f32 %v1105, %v3153
      %v3302 = vadd.f32 %v1192, %v3222
      %v3303 = vadd.f32 %v1194, %v3224
      %v3304 = vmul.f32 %v2637, 0.5
      %v3305 = vmul.f32 %v2638, 0.5
      %v3306 = vmul.f32 %v2639, 0.5
      %v3307 = vmul.f32 %v2640, 0.5
      %v3308 = vmul.f32 %v2641, 0.5
      %v3309 = vmul.f32 %v2642, 0.5
      %v3310 = vmul.f32 %v2643, 0.5
      %v3311 = vmul.f32 %v2644, 0.5
      %v3312 = vmul.f32 %v3296, 0.5
      %v3313 = vmul.f32 %v3297, 0.5
      %v3314 = vmul.f32 %v3298, 0.5
      %v3315 = vmul.f32 %v3299, 0.5
      %v3316 = vmul.f32 %v3300, 0.5
      %v3317 = vmul.f32 %v3301, 0.5
      %v3318 = vmul.f32 %v3302, 0.5
      %v3319 = vmul.f32 %v3303, 0.5
      %v3320 = vadd.f32 %v3304, %v3312
      %v3321 = vadd.f32 %v3305, %v3313
      %v3322 = vadd.f32 %v3306, %v3314
      %v3323 = vadd.f32 %v3307, %v3315
      %v3324 = vadd.f32 %v3308, %v3316
      %v3325 = vadd.f32 %v3309, %v3317
      %v3326 = vadd.f32 %v3310, %v3318
      %v3327 = vadd.f32 %v3311, %v3319
      %v3328 = vmul.f32 %v3320, %v1281
      %v3329 = vmul.f32 %v3321, %v1283
      %v3330 = vmul.f32 %v3322, %v1370
      %v3331 = vmul.f32 %v3323, %v1372
      %v3332 = vmul.f32 %v3324, %v1459
      %v3333 = vmul.f32 %v3325, %v1461
      %v3334 = vmul.f32 %v3326, %v1548
      %v3335 = vmul.f32 %v3327, %v1550
      %v3336 = vadd.f32 %v3293, %v1968
      %v3337 = vmul.f32 %v2937, 0.5
      %3338 = vmatprep.subr.mxu0 0.0
      %3339 = vmatpush1.msra.mxu0 %v592
      %3340 = vmatprep.subr.mxu0 0.0
      %3341 = vmatpush1.msra.mxu0 %v593
      %3342 = vmatprep.subr.mxu0 0.0
      %3343 = vmatpush1.msra.mxu0 %v594
      %3344 = vmatprep.subr.mxu0 0.0
      %3345 = vmatpush1.msra.mxu0 %v595
      %3346 = vmatprep.subr.mxu0 0.0
      %3347 = vmatpush1.msra.mxu0 %v596
      %3348 = vmatprep.subr.mxu0 0.0
      %3349 = vmatpush1.msra.mxu0 %v597
      %3350 = vmatprep.subr.mxu0 0.0
      %3351 = vmatpush1.msra.mxu0 %v598
      %3352 = vmatprep.subr.mxu0 0.0
      %3353 = vmatpush1.msra.mxu0 %v599
      %3354 = vmatprep.subr.mxu0 0.0
      %3355 = vmatpush1.msra.mxu0 %v600
      %3356 = vmatprep.subr.mxu0 0.0
      %3357 = vmatpush1.msra.mxu0 %v601
      %3358 = vmatprep.subr.mxu0 0.0
      %3359 = vmatpush1.msra.mxu0 %v602
      %3360 = vmatprep.subr.mxu0 0.0
      %3361 = vmatpush1.msra.mxu0 %v603
      %3362 = vmatprep.subr.mxu0 0.0
      %3363 = vmatpush1.msra.mxu0 %v604
      %3364 = vmatprep.subr.mxu0 0.0
      %3365 = vmatpush1.msra.mxu0 %v605
      %3366 = vmatprep.subr.mxu0 0.0
      %3367 = vmatpush1.msra.mxu0 %v606
      %3368 = vmatprep.subr.mxu0 0.0
      %3369 = vmatpush1.msra.mxu0 %v607
      %3370 = vmatprep.subr.mxu0 0.0
      %3371 = vmatpush1.msra.mxu0 %v608
      %3372 = vmatprep.subr.mxu0 0.0
      %3373 = vmatpush1.msra.mxu0 %v609
      %3374 = vmatprep.subr.mxu0 0.0
      %3375 = vmatpush1.msra.mxu0 %v610
      %3376 = vmatprep.subr.mxu0 0.0
      %3377 = vmatpush1.msra.mxu0 %v611
      %3378 = vmatprep.subr.mxu0 0.0
      %3379 = vmatpush1.msra.mxu0 %v612
      %3380 = vmatprep.subr.mxu0 0.0
      %3381 = vmatpush1.msra.mxu0 %v613
      %3382 = vmatprep.subr.mxu0 0.0
      %3383 = vmatpush1.msra.mxu0 %v614
      %3384 = vmatprep.subr.mxu0 0.0
      %3385 = vmatpush1.msra.mxu0 %v615
      %3386 = vmatprep.subr.mxu0 0.0
      %3387 = vmatpush1.msra.mxu0 %v616
      %3388 = vmatprep.subr.mxu0 0.0
      %3389 = vmatpush1.msra.mxu0 %v617
      %3390 = vmatprep.subr.mxu0 0.0
      %3391 = vmatpush1.msra.mxu0 %v618
      %3392 = vmatprep.subr.mxu0 0.0
      %3393 = vmatpush1.msra.mxu0 %v619
      %3394 = vmatprep.subr.mxu0 0.0
      %3395 = vmatpush1.msra.mxu0 %v620
      %3396 = vmatprep.subr.mxu0 0.0
      %3397 = vmatpush1.msra.mxu0 %v621
      %3398 = vmatprep.subr.mxu0 0.0
      %3399 = vmatpush1.msra.mxu0 %v622
      %3400 = vmatprep.subr.mxu0 0.0
      %3401 = vmatpush1.msra.mxu0 %v623
      %3402 = vmatprep.mubr.f32.mxu0 %v3329
      %3403 = vmatmul.mubr.f32.gmra.mrb[0].mxu0 %v3328
      %v3404 = vpop.f32.mrb[0].mxu0
      %v3405 = vadd.f32 %v3336, %v3404
      %v3406 = vpop.f32.mrb[0].mxu0
      %3407 = vdwg.mxu0
      %3408 = vmatprep.subr.mxu0 0.0
      %3409 = vmatpush1.msra.mxu0 %v624
      %3410 = vmatprep.subr.mxu0 0.0
      %3411 = vmatpush1.msra.mxu0 %v625
      %3412 = vmatprep.subr.mxu0 0.0
      %3413 = vmatpush1.msra.mxu0 %v626
      %3414 = vmatprep.subr.mxu0 0.0
      %3415 = vmatpush1.msra.mxu0 %v627
      %3416 = vmatprep.subr.mxu0 0.0
      %3417 = vmatpush1.msra.mxu0 %v628
      %3418 = vmatprep.subr.mxu0 0.0
      %3419 = vmatpush1.msra.mxu0 %v629
      %3420 = vmatprep.subr.mxu0 0.0
      %3421 = vmatpush1.msra.mxu0 %v630
      %3422 = vmatprep.subr.mxu0 0.0
      %3423 = vmatpush1.msra.mxu0 %v631
      %3424 = vmatprep.subr.mxu0 0.0
      %3425 = vmatpush1.msra.mxu0 %v632
      %3426 = vmatprep.subr.mxu0 0.0
      %3427 = vmatpush1.msra.mxu0 %v633
      %3428 = vmatprep.subr.mxu0 0.0
      %3429 = vmatpush1.msra.mxu0 %v634
      %3430 = vmatprep.subr.mxu0 0.0
      %3431 = vmatpush1.msra.mxu0 %v635
      %3432 = vmatprep.subr.mxu0 0.0
      %3433 = vmatpush1.msra.mxu0 %v636
      %3434 = vmatprep.subr.mxu0 0.0
      %3435 = vmatpush1.msra.mxu0 %v637
      %3436 = vmatprep.subr.mxu0 0.0
      %3437 = vmatpush1.msra.mxu0 %v638
      %3438 = vmatprep.subr.mxu0 0.0
      %3439 = vmatpush1.msra.mxu0 %v639
      %3440 = vmatprep.subr.mxu0 0.0
      %3441 = vmatpush1.msra.mxu0 %v640
      %3442 = vmatprep.subr.mxu0 0.0
      %3443 = vmatpush1.msra.mxu0 %v641
      %3444 = vmatprep.subr.mxu0 0.0
      %3445 = vmatpush1.msra.mxu0 %v642
      %3446 = vmatprep.subr.mxu0 0.0
      %3447 = vmatpush1.msra.mxu0 %v643
      %3448 = vmatprep.subr.mxu0 0.0
      %3449 = vmatpush1.msra.mxu0 %v644
      %3450 = vmatprep.subr.mxu0 0.0
      %3451 = vmatpush1.msra.mxu0 %v645
      %3452 = vmatprep.subr.mxu0 0.0
      %3453 = vmatpush1.msra.mxu0 %v646
      %3454 = vmatprep.subr.mxu0 0.0
      %3455 = vmatpush1.msra.mxu0 %v647
      %3456 = vmatprep.subr.mxu0 0.0
      %3457 = vmatpush1.msra.mxu0 %v648
      %3458 = vmatprep.subr.mxu0 0.0
      %3459 = vmatpush1.msra.mxu0 %v649
      %3460 = vmatprep.subr.mxu0 0.0
      %3461 = vmatpush1.msra.mxu0 %v650
      %3462 = vmatprep.subr.mxu0 0.0
      %3463 = vmatpush1.msra.mxu0 %v651
      %3464 = vmatprep.subr.mxu0 0.0
      %3465 = vmatpush1.msra.mxu0 %v652
      %3466 = vmatprep.subr.mxu0 0.0
      %3467 = vmatpush1.msra.mxu0 %v653
      %3468 = vmatprep.subr.mxu0 0.0
      %3469 = vmatpush1.msra.mxu0 %v654
      %3470 = vmatprep.subr.mxu0 0.0
      %3471 = vmatpush1.msra.mxu0 %v655
      %3472 = vmatprep.mubr.f32.mxu0 %v3331
      %3473 = vmatmul.mubr.f32.gmra.mrb[0].mxu0 %v3330
      %v3474 = vpop.f32.mrb[0].mxu0
      %v3475 = vadd.f32 %v3405, %v3474
      %v3476 = vpop.f32.mrb[0].mxu0
      %3477 = vdwg.mxu0
      %3478 = vmatprep.subr.mxu0 0.0
      %3479 = vmatpush1.msra.mxu0 %v656
      %3480 = vmatprep.subr.mxu0 0.0
      %3481 = vmatpush1.msra.mxu0 %v657
      %3482 = vmatprep.subr.mxu0 0.0
      %3483 = vmatpush1.msra.mxu0 %v658
      %3484 = vmatprep.subr.mxu0 0.0
      %3485 = vmatpush1.msra.mxu0 %v659
      %3486 = vmatprep.subr.mxu0 0.0
      %3487 = vmatpush1.msra.mxu0 %v660
      %3488 = vmatprep.subr.mxu0 0.0
      %3489 = vmatpush1.msra.mxu0 %v661
      %3490 = vmatprep.subr.mxu0 0.0
      %3491 = vmatpush1.msra.mxu0 %v662
      %3492 = vmatprep.subr.mxu0 0.0
      %3493 = vmatpush1.msra.mxu0 %v663
      %3494 = vmatprep.subr.mxu0 0.0
      %3495 = vmatpush1.msra.mxu0 %v664
      %3496 = vmatprep.subr.mxu0 0.0
      %3497 = vmatpush1.msra.mxu0 %v665
      %3498 = vmatprep.subr.mxu0 0.0
      %3499 = vmatpush1.msra.mxu0 %v666
      %3500 = vmatprep.subr.mxu0 0.0
      %3501 = vmatpush1.msra.mxu0 %v667
      %3502 = vmatprep.subr.mxu0 0.0
      %3503 = vmatpush1.msra.mxu0 %v668
      %3504 = vmatprep.subr.mxu0 0.0
      %3505 = vmatpush1.msra.mxu0 %v669
      %3506 = vmatprep.subr.mxu0 0.0
      %3507 = vmatpush1.msra.mxu0 %v670
      %3508 = vmatprep.subr.mxu0 0.0
      %3509 = vmatpush1.msra.mxu0 %v671
      %3510 = vmatprep.subr.mxu0 0.0
      %3511 = vmatpush1.msra.mxu0 %v672
      %3512 = vmatprep.subr.mxu0 0.0
      %3513 = vmatpush1.msra.mxu0 %v673
      %3514 = vmatprep.subr.mxu0 0.0
      %3515 = vmatpush1.msra.mxu0 %v674
      %3516 = vmatprep.subr.mxu0 0.0
      %3517 = vmatpush1.msra.mxu0 %v675
      %3518 = vmatprep.subr.mxu0 0.0
      %3519 = vmatpush1.msra.mxu0 %v676
      %3520 = vmatprep.subr.mxu0 0.0
      %3521 = vmatpush1.msra.mxu0 %v677
      %3522 = vmatprep.subr.mxu0 0.0
      %3523 = vmatpush1.msra.mxu0 %v678
      %3524 = vmatprep.subr.mxu0 0.0
      %3525 = vmatpush1.msra.mxu0 %v679
      %3526 = vmatprep.subr.mxu0 0.0
      %3527 = vmatpush1.msra.mxu0 %v680
      %3528 = vmatprep.subr.mxu0 0.0
      %3529 = vmatpush1.msra.mxu0 %v681
      %3530 = vmatprep.subr.mxu0 0.0
      %3531 = vmatpush1.msra.mxu0 %v682
      %3532 = vmatprep.subr.mxu0 0.0
      %3533 = vmatpush1.msra.mxu0 %v683
      %3534 = vmatprep.subr.mxu0 0.0
      %3535 = vmatpush1.msra.mxu0 %v684
      %3536 = vmatprep.subr.mxu0 0.0
      %3537 = vmatpush1.msra.mxu0 %v685
      %3538 = vmatprep.subr.mxu0 0.0
      %3539 = vmatpush1.msra.mxu0 %v686
      %3540 = vmatprep.subr.mxu0 0.0
      %3541 = vmatpush1.msra.mxu0 %v687
      %3542 = vmatprep.mubr.f32.mxu0 %v3333
      %3543 = vmatmul.mubr.f32.gmra.mrb[0].mxu0 %v3332
      %v3544 = vpop.f32.mrb[0].mxu0
      %v3545 = vadd.f32 %v3475, %v3544
      %v3546 = vpop.f32.mrb[0].mxu0
      %3547 = vdwg.mxu0
      %3548 = vmatprep.subr.mxu0 0.0
      %3549 = vmatpush1.msra.mxu0 %v688
      %3550 = vmatprep.subr.mxu0 0.0
      %3551 = vmatpush1.msra.mxu0 %v689
      %3552 = vmatprep.subr.mxu0 0.0
      %3553 = vmatpush1.msra.mxu0 %v690
      %3554 = vmatprep.subr.mxu0 0.0
      %3555 = vmatpush1.msra.mxu0 %v691
      %3556 = vmatprep.subr.mxu0 0.0
      %3557 = vmatpush1.msra.mxu0 %v692
      %3558 = vmatprep.subr.mxu0 0.0
      %3559 = vmatpush1.msra.mxu0 %v693
      %3560 = vmatprep.subr.mxu0 0.0
      %3561 = vmatpush1.msra.mxu0 %v694
      %3562 = vmatprep.subr.mxu0 0.0
      %3563 = vmatpush1.msra.mxu0 %v695
      %3564 = vmatprep.subr.mxu0 0.0
      %3565 = vmatpush1.msra.mxu0 %v696
      %3566 = vmatprep.subr.mxu0 0.0
      %3567 = vmatpush1.msra.mxu0 %v697
      %3568 = vmatprep.subr.mxu0 0.0
      %3569 = vmatpush1.msra.mxu0 %v698
      %3570 = vmatprep.subr.mxu0 0.0
      %3571 = vmatpush1.msra.mxu0 %v699
      %3572 = vmatprep.subr.mxu0 0.0
      %3573 = vmatpush1.msra.mxu0 %v700
      %3574 = vmatprep.subr.mxu0 0.0
      %3575 = vmatpush1.msra.mxu0 %v701
      %3576 = vmatprep.subr.mxu0 0.0
      %3577 = vmatpush1.msra.mxu0 %v702
      %3578 = vmatprep.subr.mxu0 0.0
      %3579 = vmatpush1.msra.mxu0 %v703
      %3580 = vmatprep.subr.mxu0 0.0
      %3581 = vmatpush1.msra.mxu0 %v704
      %3582 = vmatprep.subr.mxu0 0.0
      %3583 = vmatpush1.msra.mxu0 %v705
      %3584 = vmatprep.subr.mxu0 0.0
      %3585 = vmatpush1.msra.mxu0 %v706
      %3586 = vmatprep.subr.mxu0 0.0
      %3587 = vmatpush1.msra.mxu0 %v707
      %3588 = vmatprep.subr.mxu0 0.0
      %3589 = vmatpush1.msra.mxu0 %v708
      %3590 = vmatprep.subr.mxu0 0.0
      %3591 = vmatpush1.msra.mxu0 %v709
      %3592 = vmatprep.subr.mxu0 0.0
      %3593 = vmatpush1.msra.mxu0 %v710
      %3594 = vmatprep.subr.mxu0 0.0
      %3595 = vmatpush1.msra.mxu0 %v711
      %3596 = vmatprep.subr.mxu0 0.0
      %3597 = vmatpush1.msra.mxu0 %v712
      %3598 = vmatprep.subr.mxu0 0.0
      %3599 = vmatpush1.msra.mxu0 %v713
      %3600 = vmatprep.subr.mxu0 0.0
      %3601 = vmatpush1.msra.mxu0 %v714
      %3602 = vmatprep.subr.mxu0 0.0
      %3603 = vmatpush1.msra.mxu0 %v715
      %3604 = vmatprep.subr.mxu0 0.0
      %3605 = vmatpush1.msra.mxu0 %v716
      %3606 = vmatprep.subr.mxu0 0.0
      %3607 = vmatpush1.msra.mxu0 %v717
      %3608 = vmatprep.subr.mxu0 0.0
      %3609 = vmatpush1.msra.mxu0 %v718
      %3610 = vmatprep.subr.mxu0 0.0
      %3611 = vmatpush1.msra.mxu0 %v719
      %3612 = vmatprep.mubr.f32.mxu0 %v3335
      %3613 = vmatmul.mubr.f32.gmra.mrb[0].mxu0 %v3334
      %v3614 = vpop.f32.mrb[0].mxu0
      %v3615 = vadd.f32 %v3545, %v3614
      %v3616 = vpop.f32.mrb[0].mxu0
      %3617 = vdwg.mxu0
      %v3618 = vmax.f32 %v3615, 0.0
      %v3619 = vmul.f32 %v3618, 0.5
      %v3620 = vadd.f32 %v3337, %v3619
      %3621 = vst.msk [vmem:[%s429 + $0x10] sm:$0xff] %vm833, %v3620
      %v3623 = vsel %vm833, %v3620, 0
      %3625 = vmatprep.subr.mxu0 %v556
      %3626 = vmatpush1.msra.mxu0 %v555
      %3627 = vmatprep.subr.mxu0 %v565
      %3628 = vmatpush1.msra.mxu0 %v564
      %3629 = vmatprep.subr.mxu0 %v574
      %3630 = vmatpush1.msra.mxu0 %v573
      %3631 = vmatprep.subr.mxu0 %v583
      %3632 = vmatpush1.msra.mxu0 %v582
      %3633 = vmatprep.subr.mxu0 0.0
      %3634 = vmatpush1.msra.mxu0 0.0
      %3635 = vmatprep.subr.mxu0 0.0
      %3636 = vmatpush1.msra.mxu0 0.0
      %3637 = vmatprep.subr.mxu0 0.0
      %3638 = vmatpush1.msra.mxu0 0.0
      %3639 = vmatprep.subr.mxu0 0.0
      %3640 = vmatpush1.msra.mxu0 0.0
      %3641 = vmatprep.subr.mxu0 0.0
      %3642 = vmatpush1.msra.mxu0 0.0
      %3643 = vmatprep.subr.mxu0 0.0
      %3644 = vmatpush1.msra.mxu0 0.0
      %3645 = vmatprep.subr.mxu0 0.0
      %3646 = vmatpush1.msra.mxu0 0.0
      %3647 = vmatprep.subr.mxu0 0.0
      %3648 = vmatpush1.msra.mxu0 0.0
      %3649 = vmatprep.subr.mxu0 0.0
      %3650 = vmatpush1.msra.mxu0 0.0
      %3651 = vmatprep.subr.mxu0 0.0
      %3652 = vmatpush1.msra.mxu0 0.0
      %3653 = vmatprep.subr.mxu0 0.0
      %3654 = vmatpush1.msra.mxu0 0.0
      %3655 = vmatprep.subr.mxu0 0.0
      %3656 = vmatpush1.msra.mxu0 0.0
      %3657 = vmatprep.subr.mxu0 0.0
      %3658 = vmatpush1.msra.mxu0 0.0
      %3659 = vmatprep.subr.mxu0 0.0
      %3660 = vmatpush1.msra.mxu0 0.0
      %3661 = vmatprep.subr.mxu0 0.0
      %3662 = vmatpush1.msra.mxu0 0.0
      %3663 = vmatprep.subr.mxu0 0.0
      %3664 = vmatpush1.msra.mxu0 0.0
      %3665 = vmatprep.subr.mxu0 0.0
      %3666 = vmatpush1.msra.mxu0 0.0
      %3667 = vmatprep.subr.mxu0 0.0
      %3668 = vmatpush1.msra.mxu0 0.0
      %3669 = vmatprep.subr.mxu0 0.0
      %3670 = vmatpush1.msra.mxu0 0.0
      %3671 = vmatprep.subr.mxu0 0.0
      %3672 = vmatpush1.msra.mxu0 0.0
      %3673 = vmatprep.subr.mxu0 0.0
      %3674 = vmatpush1.msra.mxu0 0.0
      %3675 = vmatprep.subr.mxu0 0.0
      %3676 = vmatpush1.msra.mxu0 0.0
      %3677 = vmatprep.subr.mxu0 0.0
      %3678 = vmatpush1.msra.mxu0 0.0
      %3679 = vmatprep.subr.mxu0 0.0
      %3680 = vmatpush1.msra.mxu0 0.0
      %3681 = vmatprep.subr.mxu0 0.0
      %3682 = vmatpush1.msra.mxu0 0.0
      %3683 = vmatprep.subr.mxu0 0.0
      %3684 = vmatpush1.msra.mxu0 0.0
      %3685 = vmatprep.subr.mxu0 0.0
      %3686 = vmatpush1.msra.mxu0 0.0
      %3687 = vmatprep.subr.mxu0 0.0
      %3688 = vmatpush1.msra.mxu0 0.0
      %3689 = vmatprep.mubr.f32.mxu0 0.0
      %3690 = vmatmul.mubr.f32.gmra.mrb[0].mxu0 %v3623
      %v3691 = vpop.f32.mrb[0].mxu0
      %v3692 = vadd.f32 0.0, %v3691
      %v3693 = vpop.f32.mrb[0].mxu0
      %v3694 = vadd.f32 0.0, %v3693
      %3695 = vdwg.mxu0
      %3696 = vmatprep.subr.mxu0 %v558
      %3697 = vmatpush1.msra.mxu0 %v557
      %3698 = vmatprep.subr.mxu0 %v567
      %3699 = vmatpush1.msra.mxu0 %v566
      %3700 = vmatprep.subr.mxu0 %v576
      %3701 = vmatpush1.msra.mxu0 %v575
      %3702 = vmatprep.subr.mxu0 %v585
      %3703 = vmatpush1.msra.mxu0 %v584
      %3704 = vmatprep.subr.mxu0 0.0
      %3705 = vmatpush1.msra.mxu0 0.0
      %3706 = vmatprep.subr.mxu0 0.0
      %3707 = vmatpush1.msra.mxu0 0.0
      %3708 = vmatprep.subr.mxu0 0.0
      %3709 = vmatpush1.msra.mxu0 0.0
      %3710 = vmatprep.subr.mxu0 0.0
      %3711 = vmatpush1.msra.mxu0 0.0
      %3712 = vmatprep.subr.mxu0 0.0
      %3713 = vmatpush1.msra.mxu0 0.0
      %3714 = vmatprep.subr.mxu0 0.0
      %3715 = vmatpush1.msra.mxu0 0.0
      %3716 = vmatprep.subr.mxu0 0.0
      %3717 = vmatpush1.msra.mxu0 0.0
      %3718 = vmatprep.subr.mxu0 0.0
      %3719 = vmatpush1.msra.mxu0 0.0
      %3720 = vmatprep.subr.mxu0 0.0
      %3721 = vmatpush1.msra.mxu0 0.0
      %3722 = vmatprep.subr.mxu0 0.0
      %3723 = vmatpush1.msra.mxu0 0.0
      %3724 = vmatprep.subr.mxu0 0.0
      %3725 = vmatpush1.msra.mxu0 0.0
      %3726 = vmatprep.subr.mxu0 0.0
      %3727 = vmatpush1.msra.mxu0 0.0
      %3728 = vmatprep.subr.mxu0 0.0
      %3729 = vmatpush1.msra.mxu0 0.0
      %3730 = vmatprep.subr.mxu0 0.0
      %3731 = vmatpush1.msra.mxu0 0.0
      %3732 = vmatprep.subr.mxu0 0.0
      %3733 = vmatpush1.msra.mxu0 0.0
      %3734 = vmatprep.subr.mxu0 0.0
      %3735 = vmatpush1.msra.mxu0 0.0
      %3736 = vmatprep.subr.mxu0 0.0
      %3737 = vmatpush1.msra.mxu0 0.0
      %3738 = vmatprep.subr.mxu0 0.0
      %3739 = vmatpush1.msra.mxu0 0.0
      %3740 = vmatprep.subr.mxu0 0.0
      %3741 = vmatpush1.msra.mxu0 0.0
      %3742 = vmatprep.subr.mxu0 0.0
      %3743 = vmatpush1.msra.mxu0 0.0
      %3744 = vmatprep.subr.mxu0 0.0
      %3745 = vmatpush1.msra.mxu0 0.0
      %3746 = vmatprep.subr.mxu0 0.0
      %3747 = vmatpush1.msra.mxu0 0.0
      %3748 = vmatprep.subr.mxu0 0.0
      %3749 = vmatpush1.msra.mxu0 0.0
      %3750 = vmatprep.subr.mxu0 0.0
      %3751 = vmatpush1.msra.mxu0 0.0
      %3752 = vmatprep.subr.mxu0 0.0
      %3753 = vmatpush1.msra.mxu0 0.0
      %3754 = vmatprep.subr.mxu0 0.0
      %3755 = vmatpush1.msra.mxu0 0.0
      %3756 = vmatprep.subr.mxu0 0.0
      %3757 = vmatpush1.msra.mxu0 0.0
      %3758 = vmatprep.subr.mxu0 0.0
      %3759 = vmatpush1.msra.mxu0 0.0
      %3760 = vmatprep.mubr.f32.mxu0 0.0
      %3761 = vmatmul.mubr.f32.gmra.mrb[0].mxu0 %v3623
      %v3762 = vpop.f32.mrb[0].mxu0
      %v3763 = vadd.f32 0.0, %v3762
      %v3764 = vpop.f32.mrb[0].mxu0
      %v3765 = vadd.f32 0.0, %v3764
      %3766 = vdwg.mxu0
      %3767 = vmatprep.subr.mxu0 %v560
      %3768 = vmatpush1.msra.mxu0 %v559
      %3769 = vmatprep.subr.mxu0 %v569
      %3770 = vmatpush1.msra.mxu0 %v568
      %3771 = vmatprep.subr.mxu0 %v578
      %3772 = vmatpush1.msra.mxu0 %v577
      %3773 = vmatprep.subr.mxu0 %v587
      %3774 = vmatpush1.msra.mxu0 %v586
      %3775 = vmatprep.subr.mxu0 0.0
      %3776 = vmatpush1.msra.mxu0 0.0
      %3777 = vmatprep.subr.mxu0 0.0
      %3778 = vmatpush1.msra.mxu0 0.0
      %3779 = vmatprep.subr.mxu0 0.0
      %3780 = vmatpush1.msra.mxu0 0.0
      %3781 = vmatprep.subr.mxu0 0.0
      %3782 = vmatpush1.msra.mxu0 0.0
      %3783 = vmatprep.subr.mxu0 0.0
      %3784 = vmatpush1.msra.mxu0 0.0
      %3785 = vmatprep.subr.mxu0 0.0
      %3786 = vmatpush1.msra.mxu0 0.0
      %3787 = vmatprep.subr.mxu0 0.0
      %3788 = vmatpush1.msra.mxu0 0.0
      %3789 = vmatprep.subr.mxu0 0.0
      %3790 = vmatpush1.msra.mxu0 0.0
      %3791 = vmatprep.subr.mxu0 0.0
      %3792 = vmatpush1.msra.mxu0 0.0
      %3793 = vmatprep.subr.mxu0 0.0
      %3794 = vmatpush1.msra.mxu0 0.0
      %3795 = vmatprep.subr.mxu0 0.0
      %3796 = vmatpush1.msra.mxu0 0.0
      %3797 = vmatprep.subr.mxu0 0.0
      %3798 = vmatpush1.msra.mxu0 0.0
      %3799 = vmatprep.subr.mxu0 0.0
      %3800 = vmatpush1.msra.mxu0 0.0
      %3801 = vmatprep.subr.mxu0 0.0
      %3802 = vmatpush1.msra.mxu0 0.0
      %3803 = vmatprep.subr.mxu0 0.0
      %3804 = vmatpush1.msra.mxu0 0.0
      %3805 = vmatprep.subr.mxu0 0.0
      %3806 = vmatpush1.msra.mxu0 0.0
      %3807 = vmatprep.subr.mxu0 0.0
      %3808 = vmatpush1.msra.mxu0 0.0
      %3809 = vmatprep.subr.mxu0 0.0
      %3810 = vmatpush1.msra.mxu0 0.0
      %3811 = vmatprep.subr.mxu0 0.0
      %3812 = vmatpush1.msra.mxu0 0.0
      %3813 = vmatprep.subr.mxu0 0.0
      %3814 = vmatpush1.msra.mxu0 0.0
      %3815 = vmatprep.subr.mxu0 0.0
      %3816 = vmatpush1.msra.mxu0 0.0
      %3817 = vmatprep.subr.mxu0 0.0
      %3818 = vmatpush1.msra.mxu0 0.0
      %3819 = vmatprep.subr.mxu0 0.0
      %3820 = vmatpush1.msra.mxu0 0.0
      %3821 = vmatprep.subr.mxu0 0.0
      %3822 = vmatpush1.msra.mxu0 0.0
      %3823 = vmatprep.subr.mxu0 0.0
      %3824 = vmatpush1.msra.mxu0 0.0
      %3825 = vmatprep.subr.mxu0 0.0
      %3826 = vmatpush1.msra.mxu0 0.0
      %3827 = vmatprep.subr.mxu0 0.0
      %3828 = vmatpush1.msra.mxu0 0.0
      %3829 = vmatprep.subr.mxu0 0.0
      %3830 = vmatpush1.msra.mxu0 0.0
      %3831 = vmatprep.mubr.f32.mxu0 0.0
      %3832 = vmatmul.mubr.f32.gmra.mrb[0].mxu0 %v3623
      %v3833 = vpop.f32.mrb[0].mxu0
      %v3834 = vadd.f32 0.0, %v3833
      %v3835 = vpop.f32.mrb[0].mxu0
      %v3836 = vadd.f32 0.0, %v3835
      %3837 = vdwg.mxu0
      %3838 = vmatprep.subr.mxu0 %v562
      %3839 = vmatpush1.msra.mxu0 %v561
      %3840 = vmatprep.subr.mxu0 %v571
      %3841 = vmatpush1.msra.mxu0 %v570
      %3842 = vmatprep.subr.mxu0 %v580
      %3843 = vmatpush1.msra.mxu0 %v579
      %3844 = vmatprep.subr.mxu0 %v589
      %3845 = vmatpush1.msra.mxu0 %v588
      %3846 = vmatprep.subr.mxu0 0.0
      %3847 = vmatpush1.msra.mxu0 0.0
      %3848 = vmatprep.subr.mxu0 0.0
      %3849 = vmatpush1.msra.mxu0 0.0
      %3850 = vmatprep.subr.mxu0 0.0
      %3851 = vmatpush1.msra.mxu0 0.0
      %3852 = vmatprep.subr.mxu0 0.0
      %3853 = vmatpush1.msra.mxu0 0.0
      %3854 = vmatprep.subr.mxu0 0.0
      %3855 = vmatpush1.msra.mxu0 0.0
      %3856 = vmatprep.subr.mxu0 0.0
      %3857 = vmatpush1.msra.mxu0 0.0
      %3858 = vmatprep.subr.mxu0 0.0
      %3859 = vmatpush1.msra.mxu0 0.0
      %3860 = vmatprep.subr.mxu0 0.0
      %3861 = vmatpush1.msra.mxu0 0.0
      %3862 = vmatprep.subr.mxu0 0.0
      %3863 = vmatpush1.msra.mxu0 0.0
      %3864 = vmatprep.subr.mxu0 0.0
      %3865 = vmatpush1.msra.mxu0 0.0
      %3866 = vmatprep.subr.mxu0 0.0
      %3867 = vmatpush1.msra.mxu0 0.0
      %3868 = vmatprep.subr.mxu0 0.0
      %3869 = vmatpush1.msra.mxu0 0.0
      %3870 = vmatprep.subr.mxu0 0.0
      %3871 = vmatpush1.msra.mxu0 0.0
      %3872 = vmatprep.subr.mxu0 0.0
      %3873 = vmatpush1.msra.mxu0 0.0
      %3874 = vmatprep.subr.mxu0 0.0
      %3875 = vmatpush1.msra.mxu0 0.0
      %3876 = vmatprep.subr.mxu0 0.0
      %3877 = vmatpush1.msra.mxu0 0.0
      %3878 = vmatprep.subr.mxu0 0.0
      %3879 = vmatpush1.msra.mxu0 0.0
      %3880 = vmatprep.subr.mxu0 0.0
      %3881 = vmatpush1.msra.mxu0 0.0
      %3882 = vmatprep.subr.mxu0 0.0
      %3883 = vmatpush1.msra.mxu0 0.0
      %3884 = vmatprep.subr.mxu0 0.0
      %3885 = vmatpush1.msra.mxu0 0.0
      %3886 = vmatprep.subr.mxu0 0.0
      %3887 = vmatpush1.msra.mxu0 0.0
      %3888 = vmatprep.subr.mxu0 0.0
      %3889 = vmatpush1.msra.mxu0 0.0
      %3890 = vmatprep.subr.mxu0 0.0
      %3891 = vmatpush1.msra.mxu0 0.0
      %3892 = vmatprep.subr.mxu0 0.0
      %3893 = vmatpush1.msra.mxu0 0.0
      %3894 = vmatprep.subr.mxu0 0.0
      %3895 = vmatpush1.msra.mxu0 0.0
      %3896 = vmatprep.subr.mxu0 0.0
      %3897 = vmatpush1.msra.mxu0 0.0
      %3898 = vmatprep.subr.mxu0 0.0
      %3899 = vmatpush1.msra.mxu0 0.0
      %3900 = vmatprep.subr.mxu0 0.0
      %3901 = vmatpush1.msra.mxu0 0.0
      %3902 = vmatprep.mubr.f32.mxu0 0.0
      %3903 = vmatmul.mubr.f32.gmra.mrb[0].mxu0 %v3623
      %v3904 = vpop.f32.mrb[0].mxu0
      %v3905 = vadd.f32 0.0, %v3904
      %v3906 = vpop.f32.mrb[0].mxu0
      %v3907 = vadd.f32 0.0, %v3906
      %3908 = vdwg.mxu0
      %3909 = vmatprep.subr.mxu0 0.0
      %3910 = vmatpush1.msra.mxu0 %v563
      %3911 = vmatprep.subr.mxu0 0.0
      %3912 = vmatpush1.msra.mxu0 %v572
      %3913 = vmatprep.subr.mxu0 0.0
      %3914 = vmatpush1.msra.mxu0 %v581
      %3915 = vmatprep.subr.mxu0 0.0
      %3916 = vmatpush1.msra.mxu0 %v590
      %3917 = vmatprep.subr.mxu0 0.0
      %3918 = vmatpush1.msra.mxu0 0.0
      %3919 = vmatprep.subr.mxu0 0.0
      %3920 = vmatpush1.msra.mxu0 0.0
      %3921 = vmatprep.subr.mxu0 0.0
      %3922 = vmatpush1.msra.mxu0 0.0
      %3923 = vmatprep.subr.mxu0 0.0
      %3924 = vmatpush1.msra.mxu0 0.0
      %3925 = vmatprep.subr.mxu0 0.0
      %3926 = vmatpush1.msra.mxu0 0.0
      %3927 = vmatprep.subr.mxu0 0.0
      %3928 = vmatpush1.msra.mxu0 0.0
      %3929 = vmatprep.subr.mxu0 0.0
      %3930 = vmatpush1.msra.mxu0 0.0
      %3931 = vmatprep.subr.mxu0 0.0
      %3932 = vmatpush1.msra.mxu0 0.0
      %3933 = vmatprep.subr.mxu0 0.0
      %3934 = vmatpush1.msra.mxu0 0.0
      %3935 = vmatprep.subr.mxu0 0.0
      %3936 = vmatpush1.msra.mxu0 0.0
      %3937 = vmatprep.subr.mxu0 0.0
      %3938 = vmatpush1.msra.mxu0 0.0
      %3939 = vmatprep.subr.mxu0 0.0
      %3940 = vmatpush1.msra.mxu0 0.0
      %3941 = vmatprep.subr.mxu0 0.0
      %3942 = vmatpush1.msra.mxu0 0.0
      %3943 = vmatprep.subr.mxu0 0.0
      %3944 = vmatpush1.msra.mxu0 0.0
      %3945 = vmatprep.subr.mxu0 0.0
      %3946 = vmatpush1.msra.mxu0 0.0
      %3947 = vmatprep.subr.mxu0 0.0
      %3948 = vmatpush1.msra.mxu0 0.0
      %3949 = vmatprep.subr.mxu0 0.0
      %3950 = vmatpush1.msra.mxu0 0.0
      %3951 = vmatprep.subr.mxu0 0.0
      %3952 = vmatpush1.msra.mxu0 0.0
      %3953 = vmatprep.subr.mxu0 0.0
      %3954 = vmatpush1.msra.mxu0 0.0
      %3955 = vmatprep.subr.mxu0 0.0
      %3956 = vmatpush1.msra.mxu0 0.0
      %3957 = vmatprep.subr.mxu0 0.0
      %3958 = vmatpush1.msra.mxu0 0.0
      %3959 = vmatprep.subr.mxu0 0.0
      %3960 = vmatpush1.msra.mxu0 0.0
      %3961 = vmatprep.subr.mxu0 0.0
      %3962 = vmatpush1.msra.mxu0 0.0
      %3963 = vmatprep.subr.mxu0 0.0
      %3964 = vmatpush1.msra.mxu0 0.0
      %3965 = vmatprep.subr.mxu0 0.0
      %3966 = vmatpush1.msra.mxu0 0.0
      %3967 = vmatprep.subr.mxu0 0.0
      %3968 = vmatpush1.msra.mxu0 0.0
      %3969 = vmatprep.subr.mxu0 0.0
      %3970 = vmatpush1.msra.mxu0 0.0
      %3971 = vmatprep.subr.mxu0 0.0
      %3972 = vmatpush1.msra.mxu0 0.0
      %3973 = vmatprep.mubr.f32.mxu0 0.0
      %3974 = vmatmul.mubr.f32.gmra.mrb[0].mxu0 %v3623
      %v3975 = vpop.f32.mrb[0].mxu0
      %v3976 = vadd.f32 0.0, %v3975
      %v3977 = vpop.f32.mrb[0].mxu0
      %3978 = vdwg.mxu0
      %v3979 = vadd.f32 %v931, %v3692
      %v3980 = vadd.f32 %v933, %v3694
      %v3981 = vadd.f32 %v1020, %v3763
      %v3982 = vadd.f32 %v1022, %v3765
      %v3983 = vadd.f32 %v1109, %v3834
      %v3984 = vadd.f32 %v1111, %v3836
      %v3985 = vadd.f32 %v1198, %v3905
      %v3986 = vadd.f32 %v1200, %v3907
      %v3987 = vmul.f32 %v3320, 0.5
      %v3988 = vmul.f32 %v3321, 0.5
      %v3989 = vmul.f32 %v3322, 0.5
      %v3990 = vmul.f32 %v3323, 0.5
      %v3991 = vmul.f32 %v3324, 0.5
      %v3992 = vmul.f32 %v3325, 0.5
      %v3993 = vmul.f32 %v3326, 0.5
      %v3994 = vmul.f32 %v3327, 0.5
      %v3995 = vmul.f32 %v3979, 0.5
      %v3996 = vmul.f32 %v3980, 0.5
      %v3997 = vmul.f32 %v3981, 0.5
      %v3998 = vmul.f32 %v3982, 0.5
      %v3999 = vmul.f32 %v3983, 0.5
      %v4000 = vmul.f32 %v3984, 0.5
      %v4001 = vmul.f32 %v3985, 0.5
      %v4002 = vmul.f32 %v3986, 0.5
      %v4003 = vadd.f32 %v3987, %v3995
      %v4004 = vadd.f32 %v3988, %v3996
      %v4005 = vadd.f32 %v3989, %v3997
      %v4006 = vadd.f32 %v3990, %v3998
      %v4007 = vadd.f32 %v3991, %v3999
      %v4008 = vadd.f32 %v3992, %v4000
      %v4009 = vadd.f32 %v3993, %v4001
      %v4010 = vadd.f32 %v3994, %v4002
      %v4011 = vmul.f32 %v4003, %v1287
      %v4012 = vmul.f32 %v4004, %v1289
      %v4013 = vmul.f32 %v4005, %v1376
      %v4014 = vmul.f32 %v4006, %v1378
      %v4015 = vmul.f32 %v4007, %v1465
      %v4016 = vmul.f32 %v4008, %v1467
      %v4017 = vmul.f32 %v4009, %v1554
      %v4018 = vmul.f32 %v4010, %v1556
      %v4019 = vadd.f32 %v3976, %v1968
      %v4020 = vmul.f32 %v3620, 0.5
      %4021 = vmatprep.subr.mxu0 0.0
      %4022 = vmatpush1.msra.mxu0 %v592
      %4023 = vmatprep.subr.mxu0 0.0
      %4024 = vmatpush1.msra.mxu0 %v593
      %4025 = vmatprep.subr.mxu0 0.0
      %4026 = vmatpush1.msra.mxu0 %v594
      %4027 = vmatprep.subr.mxu0 0.0
      %4028 = vmatpush1.msra.mxu0 %v595
      %4029 = vmatprep.subr.mxu0 0.0
      %4030 = vmatpush1.msra.mxu0 %v596
      %4031 = vmatprep.subr.mxu0 0.0
      %4032 = vmatpush1.msra.mxu0 %v597
      %4033 = vmatprep.subr.mxu0 0.0
      %4034 = vmatpush1.msra.mxu0 %v598
      %4035 = vmatprep.subr.mxu0 0.0
      %4036 = vmatpush1.msra.mxu0 %v599
      %4037 = vmatprep.subr.mxu0 0.0
      %4038 = vmatpush1.msra.mxu0 %v600
      %4039 = vmatprep.subr.mxu0 0.0
      %4040 = vmatpush1.msra.mxu0 %v601
      %4041 = vmatprep.subr.mxu0 0.0
      %4042 = vmatpush1.msra.mxu0 %v602
      %4043 = vmatprep.subr.mxu0 0.0
      %4044 = vmatpush1.msra.mxu0 %v603
      %4045 = vmatprep.subr.mxu0 0.0
      %4046 = vmatpush1.msra.mxu0 %v604
      %4047 = vmatprep.subr.mxu0 0.0
      %4048 = vmatpush1.msra.mxu0 %v605
      %4049 = vmatprep.subr.mxu0 0.0
      %4050 = vmatpush1.msra.mxu0 %v606
      %4051 = vmatprep.subr.mxu0 0.0
      %4052 = vmatpush1.msra.mxu0 %v607
      %4053 = vmatprep.subr.mxu0 0.0
      %4054 = vmatpush1.msra.mxu0 %v608
      %4055 = vmatprep.subr.mxu0 0.0
      %4056 = vmatpush1.msra.mxu0 %v609
      %4057 = vmatprep.subr.mxu0 0.0
      %4058 = vmatpush1.msra.mxu0 %v610
      %4059 = vmatprep.subr.mxu0 0.0
      %4060 = vmatpush1.msra.mxu0 %v611
      %4061 = vmatprep.subr.mxu0 0.0
      %4062 = vmatpush1.msra.mxu0 %v612
      %4063 = vmatprep.subr.mxu0 0.0
      %4064 = vmatpush1.msra.mxu0 %v613
      %4065 = vmatprep.subr.mxu0 0.0
      %4066 = vmatpush1.msra.mxu0 %v614
      %4067 = vmatprep.subr.mxu0 0.0
      %4068 = vmatpush1.msra.mxu0 %v615
      %4069 = vmatprep.subr.mxu0 0.0
      %4070 = vmatpush1.msra.mxu0 %v616
      %4071 = vmatprep.subr.mxu0 0.0
      %4072 = vmatpush1.msra.mxu0 %v617
      %4073 = vmatprep.subr.mxu0 0.0
      %4074 = vmatpush1.msra.mxu0 %v618
      %4075 = vmatprep.subr.mxu0 0.0
      %4076 = vmatpush1.msra.mxu0 %v619
      %4077 = vmatprep.subr.mxu0 0.0
      %4078 = vmatpush1.msra.mxu0 %v620
      %4079 = vmatprep.subr.mxu0 0.0
      %4080 = vmatpush1.msra.mxu0 %v621
      %4081 = vmatprep.subr.mxu0 0.0
      %4082 = vmatpush1.msra.mxu0 %v622
      %4083 = vmatprep.subr.mxu0 0.0
      %4084 = vmatpush1.msra.mxu0 %v623
      %4085 = vmatprep.mubr.f32.mxu0 %v4012
      %4086 = vmatmul.mubr.f32.gmra.mrb[0].mxu0 %v4011
      %v4087 = vpop.f32.mrb[0].mxu0
      %v4088 = vadd.f32 %v4019, %v4087
      %v4089 = vpop.f32.mrb[0].mxu0
      %4090 = vdwg.mxu0
      %4091 = vmatprep.subr.mxu0 0.0
      %4092 = vmatpush1.msra.mxu0 %v624
      %4093 = vmatprep.subr.mxu0 0.0
      %4094 = vmatpush1.msra.mxu0 %v625
      %4095 = vmatprep.subr.mxu0 0.0
      %4096 = vmatpush1.msra.mxu0 %v626
      %4097 = vmatprep.subr.mxu0 0.0
      %4098 = vmatpush1.msra.mxu0 %v627
      %4099 = vmatprep.subr.mxu0 0.0
      %4100 = vmatpush1.msra.mxu0 %v628
      %4101 = vmatprep.subr.mxu0 0.0
      %4102 = vmatpush1.msra.mxu0 %v629
      %4103 = vmatprep.subr.mxu0 0.0
      %4104 = vmatpush1.msra.mxu0 %v630
      %4105 = vmatprep.subr.mxu0 0.0
      %4106 = vmatpush1.msra.mxu0 %v631
      %4107 = vmatprep.subr.mxu0 0.0
      %4108 = vmatpush1.msra.mxu0 %v632
      %4109 = vmatprep.subr.mxu0 0.0
      %4110 = vmatpush1.msra.mxu0 %v633
      %4111 = vmatprep.subr.mxu0 0.0
      %4112 = vmatpush1.msra.mxu0 %v634
      %4113 = vmatprep.subr.mxu0 0.0
      %4114 = vmatpush1.msra.mxu0 %v635
      %4115 = vmatprep.subr.mxu0 0.0
      %4116 = vmatpush1.msra.mxu0 %v636
      %4117 = vmatprep.subr.mxu0 0.0
      %4118 = vmatpush1.msra.mxu0 %v637
      %4119 = vmatprep.subr.mxu0 0.0
      %4120 = vmatpush1.msra.mxu0 %v638
      %4121 = vmatprep.subr.mxu0 0.0
      %4122 = vmatpush1.msra.mxu0 %v639
      %4123 = vmatprep.subr.mxu0 0.0
      %4124 = vmatpush1.msra.mxu0 %v640
      %4125 = vmatprep.subr.mxu0 0.0
      %4126 = vmatpush1.msra.mxu0 %v641
      %4127 = vmatprep.subr.mxu0 0.0
      %4128 = vmatpush1.msra.mxu0 %v642
      %4129 = vmatprep.subr.mxu0 0.0
      %4130 = vmatpush1.msra.mxu0 %v643
      %4131 = vmatprep.subr.mxu0 0.0
      %4132 = vmatpush1.msra.mxu0 %v644
      %4133 = vmatprep.subr.mxu0 0.0
      %4134 = vmatpush1.msra.mxu0 %v645
      %4135 = vmatprep.subr.mxu0 0.0
      %4136 = vmatpush1.msra.mxu0 %v646
      %4137 = vmatprep.subr.mxu0 0.0
      %4138 = vmatpush1.msra.mxu0 %v647
      %4139 = vmatprep.subr.mxu0 0.0
      %4140 = vmatpush1.msra.mxu0 %v648
      %4141 = vmatprep.subr.mxu0 0.0
      %4142 = vmatpush1.msra.mxu0 %v649
      %4143 = vmatprep.subr.mxu0 0.0
      %4144 = vmatpush1.msra.mxu0 %v650
      %4145 = vmatprep.subr.mxu0 0.0
      %4146 = vmatpush1.msra.mxu0 %v651
      %4147 = vmatprep.subr.mxu0 0.0
      %4148 = vmatpush1.msra.mxu0 %v652
      %4149 = vmatprep.subr.mxu0 0.0
      %4150 = vmatpush1.msra.mxu0 %v653
      %4151 = vmatprep.subr.mxu0 0.0
      %4152 = vmatpush1.msra.mxu0 %v654
      %4153 = vmatprep.subr.mxu0 0.0
      %4154 = vmatpush1.msra.mxu0 %v655
      %4155 = vmatprep.mubr.f32.mxu0 %v4014
      %4156 = vmatmul.mubr.f32.gmra.mrb[0].mxu0 %v4013
      %v4157 = vpop.f32.mrb[0].mxu0
      %v4158 = vadd.f32 %v4088, %v4157
      %v4159 = vpop.f32.mrb[0].mxu0
      %4160 = vdwg.mxu0
      %4161 = vmatprep.subr.mxu0 0.0
      %4162 = vmatpush1.msra.mxu0 %v656
      %4163 = vmatprep.subr.mxu0 0.0
      %4164 = vmatpush1.msra.mxu0 %v657
      %4165 = vmatprep.subr.mxu0 0.0
      %4166 = vmatpush1.msra.mxu0 %v658
      %4167 = vmatprep.subr.mxu0 0.0
      %4168 = vmatpush1.msra.mxu0 %v659
      %4169 = vmatprep.subr.mxu0 0.0
      %4170 = vmatpush1.msra.mxu0 %v660
      %4171 = vmatprep.subr.mxu0 0.0
      %4172 = vmatpush1.msra.mxu0 %v661
      %4173 = vmatprep.subr.mxu0 0.0
      %4174 = vmatpush1.msra.mxu0 %v662
      %4175 = vmatprep.subr.mxu0 0.0
      %4176 = vmatpush1.msra.mxu0 %v663
      %4177 = vmatprep.subr.mxu0 0.0
      %4178 = vmatpush1.msra.mxu0 %v664
      %4179 = vmatprep.subr.mxu0 0.0
      %4180 = vmatpush1.msra.mxu0 %v665
      %4181 = vmatprep.subr.mxu0 0.0
      %4182 = vmatpush1.msra.mxu0 %v666
      %4183 = vmatprep.subr.mxu0 0.0
      %4184 = vmatpush1.msra.mxu0 %v667
      %4185 = vmatprep.subr.mxu0 0.0
      %4186 = vmatpush1.msra.mxu0 %v668
      %4187 = vmatprep.subr.mxu0 0.0
      %4188 = vmatpush1.msra.mxu0 %v669
      %4189 = vmatprep.subr.mxu0 0.0
      %4190 = vmatpush1.msra.mxu0 %v670
      %4191 = vmatprep.subr.mxu0 0.0
      %4192 = vmatpush1.msra.mxu0 %v671
      %4193 = vmatprep.subr.mxu0 0.0
      %4194 = vmatpush1.msra.mxu0 %v672
      %4195 = vmatprep.subr.mxu0 0.0
      %4196 = vmatpush1.msra.mxu0 %v673
      %4197 = vmatprep.subr.mxu0 0.0
      %4198 = vmatpush1.msra.mxu0 %v674
      %4199 = vmatprep.subr.mxu0 0.0
      %4200 = vmatpush1.msra.mxu0 %v675
      %4201 = vmatprep.subr.mxu0 0.0
      %4202 = vmatpush1.msra.mxu0 %v676
      %4203 = vmatprep.subr.mxu0 0.0
      %4204 = vmatpush1.msra.mxu0 %v677
      %4205 = vmatprep.subr.mxu0 0.0
      %4206 = vmatpush1.msra.mxu0 %v678
      %4207 = vmatprep.subr.mxu0 0.0
      %4208 = vmatpush1.msra.mxu0 %v679
      %4209 = vmatprep.subr.mxu0 0.0
      %4210 = vmatpush1.msra.mxu0 %v680
      %4211 = vmatprep.subr.mxu0 0.0
      %4212 = vmatpush1.msra.mxu0 %v681
      %4213 = vmatprep.subr.mxu0 0.0
      %4214 = vmatpush1.msra.mxu0 %v682
      %4215 = vmatprep.subr.mxu0 0.0
      %4216 = vmatpush1.msra.mxu0 %v683
      %4217 = vmatprep.subr.mxu0 0.0
      %4218 = vmatpush1.msra.mxu0 %v684
      %4219 = vmatprep.subr.mxu0 0.0
      %4220 = vmatpush1.msra.mxu0 %v685
      %4221 = vmatprep.subr.mxu0 0.0
      %4222 = vmatpush1.msra.mxu0 %v686
      %4223 = vmatprep.subr.mxu0 0.0
      %4224 = vmatpush1.msra.mxu0 %v687
      %4225 = vmatprep.mubr.f32.mxu0 %v4016
      %4226 = vmatmul.mubr.f32.gmra.mrb[0].mxu0 %v4015
      %v4227 = vpop.f32.mrb[0].mxu0
      %v4228 = vadd.f32 %v4158, %v4227
      %v4229 = vpop.f32.mrb[0].mxu0
      %4230 = vdwg.mxu0
      %4231 = vmatprep.subr.mxu0 0.0
      %4232 = vmatpush1.msra.mxu0 %v688
      %4233 = vmatprep.subr.mxu0 0.0
      %4234 = vmatpush1.msra.mxu0 %v689
      %4235 = vmatprep.subr.mxu0 0.0
      %4236 = vmatpush1.msra.mxu0 %v690
      %4237 = vmatprep.subr.mxu0 0.0
      %4238 = vmatpush1.msra.mxu0 %v691
      %4239 = vmatprep.subr.mxu0 0.0
      %4240 = vmatpush1.msra.mxu0 %v692
      %4241 = vmatprep.subr.mxu0 0.0
      %4242 = vmatpush1.msra.mxu0 %v693
      %4243 = vmatprep.subr.mxu0 0.0
      %4244 = vmatpush1.msra.mxu0 %v694
      %4245 = vmatprep.subr.mxu0 0.0
      %4246 = vmatpush1.msra.mxu0 %v695
      %4247 = vmatprep.subr.mxu0 0.0
      %4248 = vmatpush1.msra.mxu0 %v696
      %4249 = vmatprep.subr.mxu0 0.0
      %4250 = vmatpush1.msra.mxu0 %v697
      %4251 = vmatprep.subr.mxu0 0.0
      %4252 = vmatpush1.msra.mxu0 %v698
      %4253 = vmatprep.subr.mxu0 0.0
      %4254 = vmatpush1.msra.mxu0 %v699
      %4255 = vmatprep.subr.mxu0 0.0
      %4256 = vmatpush1.msra.mxu0 %v700
      %4257 = vmatprep.subr.mxu0 0.0
      %4258 = vmatpush1.msra.mxu0 %v701
      %4259 = vmatprep.subr.mxu0 0.0
      %4260 = vmatpush1.msra.mxu0 %v702
      %4261 = vmatprep.subr.mxu0 0.0
      %4262 = vmatpush1.msra.mxu0 %v703
      %4263 = vmatprep.subr.mxu0 0.0
      %4264 = vmatpush1.msra.mxu0 %v704
      %4265 = vmatprep.subr.mxu0 0.0
      %4266 = vmatpush1.msra.mxu0 %v705
      %4267 = vmatprep.subr.mxu0 0.0
      %4268 = vmatpush1.msra.mxu0 %v706
      %4269 = vmatprep.subr.mxu0 0.0
      %4270 = vmatpush1.msra.mxu0 %v707
      %4271 = vmatprep.subr.mxu0 0.0
      %4272 = vmatpush1.msra.mxu0 %v708
      %4273 = vmatprep.subr.mxu0 0.0
      %4274 = vmatpush1.msra.mxu0 %v709
      %4275 = vmatprep.subr.mxu0 0.0
      %4276 = vmatpush1.msra.mxu0 %v710
      %4277 = vmatprep.subr.mxu0 0.0
      %4278 = vmatpush1.msra.mxu0 %v711
      %4279 = vmatprep.subr.mxu0 0.0
      %4280 = vmatpush1.msra.mxu0 %v712
      %4281 = vmatprep.subr.mxu0 0.0
      %4282 = vmatpush1.msra.mxu0 %v713
      %4283 = vmatprep.subr.mxu0 0.0
      %4284 = vmatpush1.msra.mxu0 %v714
      %4285 = vmatprep.subr.mxu0 0.0
      %4286 = vmatpush1.msra.mxu0 %v715
      %4287 = vmatprep.subr.mxu0 0.0
      %4288 = vmatpush1.msra.mxu0 %v716
      %4289 = vmatprep.subr.mxu0 0.0
      %4290 = vmatpush1.msra.mxu0 %v717
      %4291 = vmatprep.subr.mxu0 0.0
      %4292 = vmatpush1.msra.mxu0 %v718
      %4293 = vmatprep.subr.mxu0 0.0
      %4294 = vmatpush1.msra.mxu0 %v719
      %4295 = vmatprep.mubr.f32.mxu0 %v4018
      %4296 = vmatmul.mubr.f32.gmra.mrb[0].mxu0 %v4017
      %v4297 = vpop.f32.mrb[0].mxu0
      %v4298 = vadd.f32 %v4228, %v4297
      %v4299 = vpop.f32.mrb[0].mxu0
      %4300 = vdwg.mxu0
      %v4301 = vmax.f32 %v4298, 0.0
      %v4302 = vmul.f32 %v4301, 0.5
      %v4303 = vadd.f32 %v4020, %v4302
      %4304 = vst.msk [vmem:[%s429 + $0x18] sm:$0xff] %vm833, %v4303
      %4305 = vst.msk [vmem:[#allocation2] sm:$0xff] %vm833, %v4303
      %4306 = vst [vmem:[#allocation3] sm:$0xff] %v4003
      %4307 = vst [vmem:[#allocation3 + $0x8] sm:$0xff] %v4004
      %4308 = vst [vmem:[#allocation3 + $0x10] sm:$0xff] %v4005
      %4309 = vst [vmem:[#allocation3 + $0x18] sm:$0xff] %v4006
      %4310 = vst [vmem:[#allocation3 + $0x20] sm:$0xff] %v4007
      %4311 = vst [vmem:[#allocation3 + $0x28] sm:$0xff] %v4008
      %4312 = vst [vmem:[#allocation3 + $0x30] sm:$0xff] %v4009
      %4313 = vst [vmem:[#allocation3 + $0x38] sm:$0xff] %v4010
      %v4314 = vld [vmem:[%s429] sm:$0xff]
      %v4315 = vld [vmem:[%s429 + $0x8] sm:$0xff]
      %v4316 = vld [vmem:[%s429 + $0x10] sm:$0xff]
      %v4317 = vld [vmem:[%s429 + $0x18] sm:$0xff]
      %v4319 = vlaneseq
      %v4320 = vshrl.u32 %v4319, 7
      %v4321 = vsub.s32 0, %v4320
      %v4322 = vrot.slane %v724, %v4321
      %v4325 = vsel %vm833, %v4314, 0
      %v4328 = vsel %vm833, %v4315, 0
      %v4331 = vsel %vm833, %v4316, 0
      %v4334 = vsel %vm833, %v4317, 0
      %4336 = vmatprep.subr.mxu0 0.0
      %4337 = vmatpush1.msra.mxu0 %v720
      %4338 = vmatprep.subr.mxu0 0.0
      %4339 = vmatpush1.msra.mxu0 %v721
      %4340 = vmatprep.subr.mxu0 0.0
      %4341 = vmatpush1.msra.mxu0 %v722
      %4342 = vmatprep.subr.mxu0 0.0
      %4343 = vmatpush1.msra.mxu0 %v723
      %4344 = vmatprep.subr.mxu0 0.0
      %4345 = vmatpush1.msra.mxu0 0.0
      %4346 = vmatprep.subr.mxu0 0.0
      %4347 = vmatpush1.msra.mxu0 0.0
      %4348 = vmatprep.subr.mxu0 0.0
      %4349 = vmatpush1.msra.mxu0 0.0
      %4350 = vmatprep.subr.mxu0 0.0
      %4351 = vmatpush1.msra.mxu0 0.0
      %4352 = vmatprep.subr.mxu0 0.0
      %4353 = vmatpush1.msra.mxu0 0.0
      %4354 = vmatprep.subr.mxu0 0.0
      %4355 = vmatpush1.msra.mxu0 0.0
      %4356 = vmatprep.subr.mxu0 0.0
      %4357 = vmatpush1.msra.mxu0 0.0
      %4358 = vmatprep.subr.mxu0 0.0
      %4359 = vmatpush1.msra.mxu0 0.0
      %4360 = vmatprep.subr.mxu0 0.0
      %4361 = vmatpush1.msra.mxu0 0.0
      %4362 = vmatprep.subr.mxu0 0.0
      %4363 = vmatpush1.msra.mxu0 0.0
      %4364 = vmatprep.subr.mxu0 0.0
      %4365 = vmatpush1.msra.mxu0 0.0
      %4366 = vmatprep.subr.mxu0 0.0
      %4367 = vmatpush1.msra.mxu0 0.0
      %4368 = vmatprep.subr.mxu0 0.0
      %4369 = vmatpush1.msra.mxu0 0.0
      %4370 = vmatprep.subr.mxu0 0.0
      %4371 = vmatpush1.msra.mxu0 0.0
      %4372 = vmatprep.subr.mxu0 0.0
      %4373 = vmatpush1.msra.mxu0 0.0
      %4374 = vmatprep.subr.mxu0 0.0
      %4375 = vmatpush1.msra.mxu0 0.0
      %4376 = vmatprep.subr.mxu0 0.0
      %4377 = vmatpush1.msra.mxu0 0.0
      %4378 = vmatprep.subr.mxu0 0.0
      %4379 = vmatpush1.msra.mxu0 0.0
      %4380 = vmatprep.subr.mxu0 0.0
      %4381 = vmatpush1.msra.mxu0 0.0
      %4382 = vmatprep.subr.mxu0 0.0
      %4383 = vmatpush1.msra.mxu0 0.0
      %4384 = vmatprep.subr.mxu0 0.0
      %4385 = vmatpush1.msra.mxu0 0.0
      %4386 = vmatprep.subr.mxu0 0.0
      %4387 = vmatpush1.msra.mxu0 0.0
      %4388 = vmatprep.subr.mxu0 0.0
      %4389 = vmatpush1.msra.mxu0 0.0
      %4390 = vmatprep.subr.mxu0 0.0
      %4391 = vmatpush1.msra.mxu0 0.0
      %4392 = vmatprep.subr.mxu0 0.0
      %4393 = vmatpush1.msra.mxu0 0.0
      %4394 = vmatprep.subr.mxu0 0.0
      %4395 = vmatpush1.msra.mxu0 0.0
      %4396 = vmatprep.subr.mxu0 0.0
      %4397 = vmatpush1.msra.mxu0 0.0
      %4398 = vmatprep.subr.mxu0 0.0
      %4399 = vmatpush1.msra.mxu0 0.0
      %4400 = vmatprep.mubr.f32.mxu0 0.0
      %4401 = vmatmul.mubr.f32.gmra.mrb[0].mxu0 %v4325
      %v4402 = vpop.f32.mrb[0].mxu0
      %v4403 = vadd.f32 %v4322, %v4402
      %v4404 = vpop.f32.mrb[0].mxu0
      %4405 = vmatprep.mubr.f32.mxu0 0.0
      %4406 = vmatmul.mubr.f32.gmra.mrb[0].mxu0 %v4328
      %v4407 = vpop.f32.mrb[0].mxu0
      %v4408 = vadd.f32 %v4322, %v4407
      %v4409 = vpop.f32.mrb[0].mxu0
      %4410 = vmatprep.mubr.f32.mxu0 0.0
      %4411 = vmatmul.mubr.f32.gmra.mrb[0].mxu0 %v4331
      %v4412 = vpop.f32.mrb[0].mxu0
      %v4413 = vadd.f32 %v4322, %v4412
      %v4414 = vpop.f32.mrb[0].mxu0
      %4415 = vmatprep.mubr.f32.mxu0 0.0
      %4416 = vmatmul.mubr.f32.gmra.mrb[0].mxu0 %v4334
      %v4417 = vpop.f32.mrb[0].mxu0
      %v4418 = vadd.f32 %v4322, %v4417
      %v4419 = vpop.f32.mrb[0].mxu0
      %4420 = vdwg.mxu0
      %vm4421 = vcmask 64512
      %4422 = vst.msk [vmem:[%s423] sm:$0xff] %vm4421, %v4403
      %4423 = vst.msk [vmem:[%s423 + $0x8] sm:$0xff] %vm4421, %v4408
      %4424 = vst.msk [vmem:[%s423 + $0x10] sm:$0xff] %vm4421, %v4413
      %4425 = vst.msk [vmem:[%s423 + $0x18] sm:$0xff] %vm4421, %v4418
      %s4426 = smul.u32 4, %s24
      %p4427 = scmp.lt.s32.totalorder %s4426, 7
      %s4428 = scalar_select %p4427, %s4426, 7
      %s4429 = smul.addr %s4428, 8
      %s4430 = scalar_lea.vmem %s11, %s4429
      %s4431 = smul.u32 4, %s24
      %p4432 = scmp.lt.s32.totalorder %s4431, 7
      %s4433 = scalar_select %p4432, %s4431, 7
      %s4434 = smul.addr %s4433, 8
      %s4435 = scalar_lea.vmem %s12, %s4434
      // Predicated region
      $region69: #{tpu_custom_call.1} parent=63 // pred_check
        %p4436 = pneg %p278
      $region70: #{tpu_custom_call.1} parent=63 // pred_check_branch
        %4438 = sbr.rel (%p4436) target = $region72
      $region71: #{tpu_custom_call.1} parent=63 // pred_region
        %s4439 = smul.u32 4, %s24
      $region72: #{tpu_custom_call.1} parent=63 // pred_fallthru
        _
      // Predicated region
      $region73: #{tpu_custom_call.1} parent=63 // pred_check
        %p4440 = pneg %p304
      $region74: #{tpu_custom_call.1} parent=63 // pred_check_branch
        %4442 = sbr.rel (%p4440) target = $region76
      $region75: #{tpu_custom_call.1} parent=63 // pred_region
        %s4443 = smul.u32 4, %s24
      $region76: #{tpu_custom_call.1} parent=63 // pred_fallthru
        _
    $region64: #{tpu_custom_call.1} parent=5 // pred_fallthru
      _
    %p4444 = scmp.le.s32.totalorder 2, %s19
    // Predicated region
    $region77: #{tpu_custom_call.1} parent=5 // pred_check
      %p4445 = pneg %p4444
    $region78: #{tpu_custom_call.1} parent=5 // pred_check_branch
      %4447 = sbr.rel (%p4445) target = $region80
    $region79: #{tpu_custom_call.1} parent=5 // pred_region
      %s4448 = ssub.s32 %s19, 2
      // Predicated region
      $region81: #{tpu_custom_call.1} parent=79 // pred_check
        %p4449 = pneg %p284
      $region82: #{tpu_custom_call.1} parent=79 // pred_check_branch
        %4451 = sbr.rel (%p4449) target = $region84
      $region83: #{tpu_custom_call.1} parent=79 // pred_region
        %s4452 = smul.u32 4, %s25
        %p4453 = scmp.lt.s32.totalorder %s4452, 7
        %s4454 = scalar_select %p4453, %s4452, 7
        %s4455 = smul.addr %s4454, 8
        %s4456 = scalar_lea.vmem %s11, %s4455
      $region84: #{tpu_custom_call.1} parent=79 // pred_fallthru
        _
      // Predicated region
      $region85: #{tpu_custom_call.1} parent=79 // pred_check
        %p4457 = pneg %p310
      $region86: #{tpu_custom_call.1} parent=79 // pred_check_branch
        %4459 = sbr.rel (%p4457) target = $region88
      $region87: #{tpu_custom_call.1} parent=79 // pred_region
        %s4460 = smul.u32 4, %s25
        %p4461 = scmp.lt.s32.totalorder %s4460, 7
        %s4462 = scalar_select %p4461, %s4460, 7
        %s4463 = smul.addr %s4462, 8
        %s4464 = scalar_lea.vmem %s12, %s4463
      $region88: #{tpu_custom_call.1} parent=79 // pred_fallthru
        _
    $region80: #{tpu_custom_call.1} parent=5 // pred_fallthru
      _
  $region6: #{tpu_custom_call.1} parent=0 // loop_footer
    %s23 = sadd.s32 1, %s19
  $region7: #{tpu_custom_call.1} parent=0 // loop_footer_branch
    %18 = sbr.rel target = $region3
  $region8: #{tpu_custom_call.1} parent=0 // loop_exit
    _

</llo_original>
